<compile_context>
chip_gen: v7x
topology: tpu7x:2x2x1
jax: 0.10.0
libtpu: 0.0.40
codegen_flags: <defaults>
</compile_context>

<pallas_src>
import functools

import jax
import jax.numpy as jnp
from jax.experimental import pallas as pl


# -----------------------------------------------------------------------------
# Pallas kernel: full unrolled decode (GRU recurrence + output MLP + argmax)
# -----------------------------------------------------------------------------
def _decoder_kernel(inp_ref, ctx_ref, wx_ref, wc_ref, wh_ref, w1h_ref, b1_ref,
                    w2_ref, b2_ref, logits_ref, preds_ref):
    T, B, E = inp_ref.shape
    H = ctx_ref.shape[1]
    O = w2_ref.shape[1]

    ctx = ctx_ref[...]          # (B, H)
    wx = wx_ref[...]            # (E, 4H)  token path: [GRU r|z|n gates | MLP-1]
    wh = wh_ref[...]            # (H, 3H)  hidden path: [r|z|n]
    w1h = w1h_ref[...]          # (H, H)   h_new contribution to MLP-1
    w2 = w2_ref[...]            # (H, O)
    b2 = b2_ref[...]            # (1, O)

    # Context contribution is constant over time: one dot before the loop.
    ctx_all = jnp.dot(ctx, wc_ref[...], preferred_element_type=jnp.float32)  # (B, 4H)
    gate_ctx = ctx_all[:, :3 * H]                    # context part of GRU input gates
    mlp_ctx = ctx_all[:, 3 * H:] + b1_ref[...]       # context part of MLP-1 (+ bias)

    iota_o = jax.lax.broadcasted_iota(jnp.int32, (B, O), 1)

    h = ctx                     # rnn_hxs initialised from encoder embeddings
    pred_cols = []
    for t in range(T):          # fully unrolled: T is small and static
        tok = inp_ref[t]        # (B, E) token embedding at step t
        x_all = jnp.dot(tok, wx, preferred_element_type=jnp.float32)      # (B, 4H)
        gi = x_all[:, :3 * H] + gate_ctx                                    # (B, 3H)
        gh = jnp.dot(h, wh, preferred_element_type=jnp.float32)            # (B, 3H)

        # PyTorch GRU cell (biases are zero by module init):
        #   r = sigmoid(x Wir + h Whr); z = sigmoid(x Wiz + h Whz)
        #   n = tanh(x Win + r * (h Whn)); h' = (1-z)*n + z*h
        r = jax.nn.sigmoid(gi[:, :H] + gh[:, :H])
        z = jax.nn.sigmoid(gi[:, H:2 * H] + gh[:, H:2 * H])
        n = jnp.tanh(gi[:, 2 * H:] + r * gh[:, 2 * H:])
        h = (1.0 - z) * n + z * h          # gru_mask is all-ones -> h * mask == h

        # token_output_layer: tanh(W1 [h_new, tok, ctx] + b1) -> Linear(H, O)
        hid = jnp.tanh(jnp.dot(h, w1h, preferred_element_type=jnp.float32)
                       + x_all[:, 3 * H:] + mlp_ctx)
        logits = jnp.dot(hid, w2, preferred_element_type=jnp.float32) + b2  # (B, O)
        logits_ref[t] = logits.astype(logits_ref.dtype)

        # argmax(log_softmax(logits)) == argmax(logits); first-max tie-break.
        m = jnp.max(logits, axis=-1, keepdims=True)
        pred = jnp.min(jnp.where(logits >= m, iota_o, O), axis=-1, keepdims=True)
        pred_cols.append(pred)                                              # (B, 1)

    preds_ref[...] = jnp.concatenate(pred_cols, axis=1).astype(jnp.int32)   # (B, T)


def decoder_pallas(inputs_tbe, context, params):
    """inputs_tbe: (T, B, E) f32 token embeddings, context: (B, H) f32.
    Returns (logits (T, B, O) f32, preds (B, T) int32). Single kernel call;
    all operands/outputs are VMEM-resident for the whole recurrence."""
    T, B, E = inputs_tbe.shape
    O = params["w2"].shape[1]
    return pl.pallas_call(
        _decoder_kernel,
        out_shape=(jax.ShapeDtypeStruct((T, B, O), jnp.float32),
                   jax.ShapeDtypeStruct((B, T), jnp.int32)),
    )(inputs_tbe, context,
      params["wx_all"], params["wc_all"], params["wh"],
      params["w1h"], params["b1"], params["w2"], params["b2"])


# -----------------------------------------------------------------------------
# Parameter construction (deterministic, mirrors the PyTorch __init__)
# -----------------------------------------------------------------------------
def make_params(key, num_inputs, num_outputs, hidden_size):
    E, H, O = num_inputs, hidden_size, num_outputs
    k_emb, k_ih, k_hh, k_l1, k_l2 = jax.random.split(key, 5)

    orth = jax.nn.initializers.orthogonal()
    orth_g = jax.nn.initializers.orthogonal(scale=2.0 ** 0.5)

    # nn.Embedding(num_inputs, num_inputs) (default normal init).
    emb = jax.random.normal(k_emb, (E, E), dtype=jnp.float32)

    # GRU(E+H -> H): weight_ih (3H, E+H) rows [r; z; n], weight_hh (3H, H),
    # orthogonal init, zero biases.
    w_ih = orth(k_ih, (3 * H, E + H), jnp.float32)
    w_hh = orth(k_hh, (3 * H, H), jnp.float32)

    # token_output_layer: Linear(H+E+H -> H) [gain sqrt(2), zero bias], Tanh,
    # Linear(H -> O). Input order: [h_new (H), token_embedding (E), context (H)].
    W1 = orth_g(k_l1, (H, 2 * H + E), jnp.float32)
    W2 = orth_g(k_l2, (O, H), jnp.float32)

    # ---- packing for the kernel (pre-transposed so the kernel does x @ W) ----
    wi = w_ih.T                       # (E+H, 3H), columns [r | z | n]
    w1t = W1.T                        # (H+E+H, H), rows [h_new | tok | ctx]
    wx_all = jnp.concatenate([wi[:E, :], w1t[H:H + E, :]], axis=1)   # (E, 4H)
    wc_all = jnp.concatenate([wi[E:, :], w1t[H + E:, :]], axis=1)    # (H, 4H)

    params = dict(
        emb=emb,
        wx_all=wx_all,                # token path:   GRU gates (3H) | MLP-1 (H)
        wc_all=wc_all,                # context path: GRU gates (3H) | MLP-1 (H)
        wh=w_hh.T,                    # (H, 3H) hidden path, columns [r | z | n]
        w1h=w1t[:H, :],               # (H, H)  h_new contribution to MLP-1
        b1=jnp.zeros((1, H), jnp.float32),
        w2=W2.T,                      # (H, O)
        b2=jnp.zeros((1, O), jnp.float32),
    )
    raw = dict(emb=emb, w_ih=w_ih, w_hh=w_hh, W1=W1, W2=W2)
    return params, raw


def _teacher_tokens(gt_programs, max_program_len):
    """current_tokens per step: 0 at step 0, gt_programs[:, i] at step i > 0."""
    B = gt_programs.shape[0]
    return jnp.concatenate(
        [jnp.zeros((B, 1), jnp.int32),
         gt_programs[:, 1:max_program_len].astype(jnp.int32)], axis=1)     # (B, T)


# -----------------------------------------------------------------------------
# Full forward (teacher_enforcing=True, reinforce_step=False, evaluate=False)
# -----------------------------------------------------------------------------
@functools.partial(jax.jit, static_argnames=("max_program_len", "num_program_tokens"))
def decoder_forward(params, gt_programs, embeddings, *,
                    max_program_len, num_program_tokens):
    B, H = embeddings.shape
    T = max_program_len
    end_tok = num_program_tokens - 1

    tokens_bt = _teacher_tokens(gt_programs, T)             # (B, T)
    tok_emb = params["emb"][tokens_bt]                      # (B, T, E) gather (glue)
    inputs_tbe = jnp.transpose(tok_emb, (1, 0, 2))          # (T, B, E)

    logits_tbo, preds_bt = decoder_pallas(inputs_tbe, embeddings, params)

    # output_mask bookkeeping: cumulative AND of (pred != end_token).
    not_end = preds_bt != end_tok
    output_mask_all = jnp.cumprod(not_end.astype(jnp.int32), axis=1).astype(bool)
    first_end_idx = jnp.sum(output_mask_all, axis=1)        # (B,)

    # TODO(synk): unmask_idx source not provided; assuming it re-enables the first
    # end-token position so the <end> token is counted in the program length.
    unmask = (jnp.arange(T)[None, :] == first_end_idx[:, None]) & \
             (first_end_idx[:, None] < T)
    output_mask_all = output_mask_all | unmask

    raw_output_logits_all = jnp.transpose(logits_tbo, (1, 0, 2))     # (B, T, O)
    pred_programs_all = jnp.where(output_mask_all, preds_bt,
                                  jnp.full_like(preds_bt, end_tok))
    pred_programs_len = jnp.sum(output_mask_all.astype(jnp.int32), axis=1, keepdims=True)
    eop_pred_programs_all = -jnp.ones_like(pred_programs_all)

    # (pred_programs_all, pred_programs_len, pred_programs_log_probs_all,
    #  raw_output_logits_all, eop_pred_programs_all, raw_eop_output_logits_all,
    #  output_mask_all, dist_entropy_all)
    return (pred_programs_all, pred_programs_len, (),
            raw_output_logits_all, eop_pred_programs_all, None,
            output_mask_all, None)


# -----------------------------------------------------------------------------
# Plain-JAX, un-fused reference (mirrors the PyTorch math) for correctness check
# -----------------------------------------------------------------------------
def reference_logits(raw, gt_programs, embeddings, max_program_len):
    B, H = embeddings.shape
    tokens_bt = _teacher_tokens(gt_programs, max_program_len)
    h = embeddings
    outs = []
    for t in range(max_program_len):
        tok = raw["emb"][tokens_bt[:, t]]
        x = jnp.concatenate([tok, embeddings], axis=1)
        gi = x @ raw["w_ih"].T
        gh = h @ raw["w_hh"].T
        r = jax.nn.sigmoid(gi[:, :H] + gh[:, :H])
        z = jax.nn.sigmoid(gi[:, H:2 * H] + gh[:, H:2 * H])
        n = jnp.tanh(gi[:, 2 * H:] + r * gh[:, 2 * H:])
        h = (1.0 - z) * n + z * h
        pre = jnp.concatenate([h, tok, embeddings], axis=1)
        hid = jnp.tanh(pre @ raw["W1"].T)
        outs.append(hid @ raw["W2"].T)
    return jnp.stack(outs, axis=1)   # (B, T, O)


if __name__ == "__main__":
    # Small config consistent with the module:
    #   num_inputs = num_program_tokens = num_outputs = 16, hidden = 32,
    #   batch = 8, max_program_len = 8
    NUM_INPUTS = 16
    NUM_OUTPUTS = 16
    NUM_PROGRAM_TOKENS = 16
    HIDDEN = 32
    BATCH = 8
    MAX_PROGRAM_LEN = 8

    key = jax.random.PRNGKey(0)
    k_params, k_prog, k_emb = jax.random.split(key, 3)

    params, raw = make_params(k_params, NUM_INPUTS, NUM_OUTPUTS, HIDDEN)
    gt_programs = jax.random.randint(
        k_prog, (BATCH, MAX_PROGRAM_LEN + 1), 0, NUM_INPUTS, dtype=jnp.int32)
    embeddings = jax.random.normal(k_emb, (BATCH, HIDDEN), dtype=jnp.float32)

    outs = decoder_forward(params, gt_programs, embeddings,
                           max_program_len=MAX_PROGRAM_LEN,
                           num_program_tokens=NUM_PROGRAM_TOKENS)
    (pred_programs_all, pred_programs_len, _log_probs,
     raw_output_logits_all, eop_pred_programs_all, _raw_eop,
     output_mask_all, _entropy) = jax.block_until_ready(outs)

    # Shape / dtype checks (mirror the PyTorch forward outputs).
    assert pred_programs_all.shape == (BATCH, MAX_PROGRAM_LEN)
    assert pred_programs_len.shape == (BATCH, 1)
    assert raw_output_logits_all.shape == (BATCH, MAX_PROGRAM_LEN, NUM_OUTPUTS)
    assert output_mask_all.dtype == jnp.bool_

    # Numerical check of the fused / context-hoisted kernel vs un-fused reference.
    ref = reference_logits(raw, gt_programs, embeddings, MAX_PROGRAM_LEN)
    max_err = float(jnp.max(jnp.abs(raw_output_logits_all - ref)))
    assert max_err < 5e-3, f"logits mismatch vs reference: {max_err}"

    print("KERNEL_OK")
</pallas_src>

<mosaic_0001>
module attributes {stable_mosaic.version = 11 : i64} {
  func.func @_decoder_kernel(%arg0: memref<8x8x16xf32, #tpu.memory_space<vmem>>, %arg1: memref<8x32xf32, #tpu.memory_space<vmem>>, %arg2: memref<16x128xf32, #tpu.memory_space<vmem>>, %arg3: memref<32x128xf32, #tpu.memory_space<vmem>>, %arg4: memref<32x96xf32, #tpu.memory_space<vmem>>, %arg5: memref<32x32xf32, #tpu.memory_space<vmem>>, %arg6: memref<1x32xf32, #tpu.memory_space<vmem>>, %arg7: memref<32x16xf32, #tpu.memory_space<vmem>>, %arg8: memref<1x16xf32, #tpu.memory_space<vmem>>, %arg9: memref<8x8x16xf32, #tpu.memory_space<vmem>>, %arg10: memref<8x8xi32, #tpu.memory_space<vmem>>) attributes {dimension_semantics = [], scalar_prefetch = 0 : i64, scratch_operands = 0 : i64, tpu.core_type = #tpu.core_type<tc>} {
    %c0 = arith.constant 0 : index
    %c0_0 = arith.constant 0 : index
    %0 = vector.load %arg1[%c0, %c0_0] : memref<8x32xf32, #tpu.memory_space<vmem>>, vector<8x32xf32>
    %c0_1 = arith.constant 0 : index
    %c0_2 = arith.constant 0 : index
    %1 = vector.load %arg2[%c0_1, %c0_2] : memref<16x128xf32, #tpu.memory_space<vmem>>, vector<16x128xf32>
    %c0_3 = arith.constant 0 : index
    %c0_4 = arith.constant 0 : index
    %2 = vector.load %arg4[%c0_3, %c0_4] : memref<32x96xf32, #tpu.memory_space<vmem>>, vector<32x96xf32>
    %c0_5 = arith.constant 0 : index
    %c0_6 = arith.constant 0 : index
    %3 = vector.load %arg5[%c0_5, %c0_6] : memref<32x32xf32, #tpu.memory_space<vmem>>, vector<32x32xf32>
    %c0_7 = arith.constant 0 : index
    %c0_8 = arith.constant 0 : index
    %4 = vector.load %arg7[%c0_7, %c0_8] : memref<32x16xf32, #tpu.memory_space<vmem>>, vector<32x16xf32>
    %c0_9 = arith.constant 0 : index
    %c0_10 = arith.constant 0 : index
    %5 = vector.load %arg8[%c0_9, %c0_10] : memref<1x16xf32, #tpu.memory_space<vmem>>, vector<1x16xf32>
    %c0_11 = arith.constant 0 : index
    %c0_12 = arith.constant 0 : index
    %6 = vector.load %arg3[%c0_11, %c0_12] : memref<32x128xf32, #tpu.memory_space<vmem>>, vector<32x128xf32>
    %cst = arith.constant dense<0.000000e+00> : vector<8x128xf32>
    %7 = tpu.matmul %0, %6, %cst {dimension_numbers = #tpu.dot_dimension_numbers<[1], [0], [0], [1], [0, 0, 1, 1], [], []>} : vector<8x32xf32>, vector<32x128xf32>, vector<8x128xf32> -> vector<8x128xf32>
    %8 = vector.extract_strided_slice %7 {offsets = [0, 0], sizes = [8, 96], strides = [1, 1]} : vector<8x128xf32> to vector<8x96xf32>
    %9 = vector.extract_strided_slice %7 {offsets = [0, 96], sizes = [8, 32], strides = [1, 1]} : vector<8x128xf32> to vector<8x32xf32>
    %c0_13 = arith.constant 0 : index
    %c0_14 = arith.constant 0 : index
    %10 = vector.load %arg6[%c0_13, %c0_14] : memref<1x32xf32, #tpu.memory_space<vmem>>, vector<1x32xf32>
    %11 = vector.broadcast %10 : vector<1x32xf32> to vector<8x32xf32>
    %12 = arith.addf %9, %11 : vector<8x32xf32>
    %13 = tpu.iota {dimensions = array<i32: 1>} : vector<8x16xi32>
    %c0_15 = arith.constant 0 : index
    %c0_16 = arith.constant 0 : index
    %c0_17 = arith.constant 0 : index
    %14 = vector.load %arg0[%c0_15, %c0_16, %c0_17] : memref<8x8x16xf32, #tpu.memory_space<vmem>>, vector<1x8x16xf32>
    %15 = vector.shape_cast %14 : vector<1x8x16xf32> to vector<8x16xf32>
    %cst_18 = arith.constant dense<0.000000e+00> : vector<8x128xf32>
    %16 = tpu.matmul %15, %1, %cst_18 {dimension_numbers = #tpu.dot_dimension_numbers<[1], [0], [0], [1], [0, 0, 1, 1], [], []>} : vector<8x16xf32>, vector<16x128xf32>, vector<8x128xf32> -> vector<8x128xf32>
    %17 = vector.extract_strided_slice %16 {offsets = [0, 0], sizes = [8, 96], strides = [1, 1]} : vector<8x128xf32> to vector<8x96xf32>
    %18 = arith.addf %17, %8 : vector<8x96xf32>
    %cst_19 = arith.constant dense<0.000000e+00> : vector<8x96xf32>
    %19 = tpu.matmul %0, %2, %cst_19 {dimension_numbers = #tpu.dot_dimension_numbers<[1], [0], [0], [1], [0, 0, 1, 1], [], []>} : vector<8x32xf32>, vector<32x96xf32>, vector<8x96xf32> -> vector<8x96xf32>
    %20 = vector.extract_strided_slice %18 {offsets = [0, 0], sizes = [8, 32], strides = [1, 1]} : vector<8x96xf32> to vector<8x32xf32>
    %21 = vector.extract_strided_slice %19 {offsets = [0, 0], sizes = [8, 32], strides = [1, 1]} : vector<8x96xf32> to vector<8x32xf32>
    %22 = arith.addf %20, %21 : vector<8x32xf32>
    %23 = arith.negf %22 : vector<8x32xf32>
    %24 = math.exp %23 : vector<8x32xf32>
    %cst_20 = arith.constant 1.000000e+00 : f32
    %25 = vector.broadcast %cst_20 : f32 to vector<8x32xf32>
    %26 = arith.addf %25, %24 : vector<8x32xf32>
    %27 = arith.divf %25, %26 : vector<8x32xf32>
    %28 = vector.extract_strided_slice %18 {offsets = [0, 32], sizes = [8, 32], strides = [1, 1]} : vector<8x96xf32> to vector<8x32xf32>
    %29 = vector.extract_strided_slice %19 {offsets = [0, 32], sizes = [8, 32], strides = [1, 1]} : vector<8x96xf32> to vector<8x32xf32>
    %30 = arith.addf %28, %29 : vector<8x32xf32>
    %31 = arith.negf %30 : vector<8x32xf32>
    %32 = math.exp %31 : vector<8x32xf32>
    %cst_21 = arith.constant 1.000000e+00 : f32
    %33 = vector.broadcast %cst_21 : f32 to vector<8x32xf32>
    %34 = arith.addf %33, %32 : vector<8x32xf32>
    %35 = arith.divf %33, %34 : vector<8x32xf32>
    %36 = vector.extract_strided_slice %18 {offsets = [0, 64], sizes = [8, 32], strides = [1, 1]} : vector<8x96xf32> to vector<8x32xf32>
    %37 = vector.extract_strided_slice %19 {offsets = [0, 64], sizes = [8, 32], strides = [1, 1]} : vector<8x96xf32> to vector<8x32xf32>
    %38 = arith.mulf %27, %37 : vector<8x32xf32>
    %39 = arith.addf %36, %38 : vector<8x32xf32>
    %40 = math.tanh %39 : vector<8x32xf32>
    %cst_22 = arith.constant 1.000000e+00 : f32
    %41 = vector.broadcast %cst_22 : f32 to vector<8x32xf32>
    %42 = arith.subf %41, %35 : vector<8x32xf32>
    %43 = arith.mulf %42, %40 : vector<8x32xf32>
    %44 = arith.mulf %35, %0 : vector<8x32xf32>
    %45 = arith.addf %43, %44 : vector<8x32xf32>
    %cst_23 = arith.constant dense<0.000000e+00> : vector<8x32xf32>
    %46 = tpu.matmul %45, %3, %cst_23 {dimension_numbers = #tpu.dot_dimension_numbers<[1], [0], [0], [1], [0, 0, 1, 1], [], []>} : vector<8x32xf32>, vector<32x32xf32>, vector<8x32xf32> -> vector<8x32xf32>
    %47 = vector.extract_strided_slice %16 {offsets = [0, 96], sizes = [8, 32], strides = [1, 1]} : vector<8x128xf32> to vector<8x32xf32>
    %48 = arith.addf %46, %47 : vector<8x32xf32>
    %49 = arith.addf %48, %12 : vector<8x32xf32>
    %50 = math.tanh %49 : vector<8x32xf32>
    %cst_24 = arith.constant dense<0.000000e+00> : vector<8x16xf32>
    %51 = tpu.matmul %50, %4, %cst_24 {dimension_numbers = #tpu.dot_dimension_numbers<[1], [0], [0], [1], [0, 0, 1, 1], [], []>} : vector<8x32xf32>, vector<32x16xf32>, vector<8x16xf32> -> vector<8x16xf32>
    %52 = vector.broadcast %5 : vector<1x16xf32> to vector<8x16xf32>
    %53 = arith.addf %51, %52 : vector<8x16xf32>
    %c0_25 = arith.constant 0 : index
    %c0_26 = arith.constant 0 : index
    %c0_27 = arith.constant 0 : index
    %54 = vector.load %arg9[%c0_25, %c0_26, %c0_27] : memref<8x8x16xf32, #tpu.memory_space<vmem>>, vector<1x8x16xf32>
    %55 = vector.shape_cast %54 : vector<1x8x16xf32> to vector<8x16xf32>
    %56 = vector.shape_cast %53 : vector<8x16xf32> to vector<1x8x16xf32>
    tpu.vector_store %arg9[%c0_25, %c0_26, %c0_27], %56 {strides = array<i32>} : memref<8x8x16xf32, #tpu.memory_space<vmem>>, vector<1x8x16xf32>,
    %cst_28 = arith.constant dense<0xFF800000> : vector<8xf32>
    %57 = vector.multi_reduction <maximumf>, %53, %cst_28 [1] : vector<8x16xf32> to vector<8xf32>
    %58 = vector.shape_cast %57 : vector<8xf32> to vector<8x1xf32>
    %59 = vector.broadcast %58 : vector<8x1xf32> to vector<8x16xf32>
    %60 = arith.cmpf oge, %53, %59 : vector<8x16xf32>
    %c16_i32 = arith.constant 16 : i32
    %61 = vector.broadcast %c16_i32 : i32 to vector<8x16xi32>
    %62 = arith.select %60, %13, %61 : vector<8x16xi1>, vector<8x16xi32>
    %cst_29 = arith.constant dense<2147483647> : vector<8xi32>
    %63 = vector.multi_reduction <minsi>, %62, %cst_29 [1] : vector<8x16xi32> to vector<8xi32>
    %64 = vector.shape_cast %63 : vector<8xi32> to vector<8x1xi32>
    %c1 = arith.constant 1 : index
    %c0_30 = arith.constant 0 : index
    %c0_31 = arith.constant 0 : index
    %65 = vector.load %arg0[%c1, %c0_30, %c0_31] : memref<8x8x16xf32, #tpu.memory_space<vmem>>, vector<1x8x16xf32>
    %66 = vector.shape_cast %65 : vector<1x8x16xf32> to vector<8x16xf32>
    %cst_32 = arith.constant dense<0.000000e+00> : vector<8x128xf32>
    %67 = tpu.matmul %66, %1, %cst_32 {dimension_numbers = #tpu.dot_dimension_numbers<[1], [0], [0], [1], [0, 0, 1, 1], [], []>} : vector<8x16xf32>, vector<16x128xf32>, vector<8x128xf32> -> vector<8x128xf32>
    %68 = vector.extract_strided_slice %67 {offsets = [0, 0], sizes = [8, 96], strides = [1, 1]} : vector<8x128xf32> to vector<8x96xf32>
    %69 = arith.addf %68, %8 : vector<8x96xf32>
    %cst_33 = arith.constant dense<0.000000e+00> : vector<8x96xf32>
    %70 = tpu.matmul %45, %2, %cst_33 {dimension_numbers = #tpu.dot_dimension_numbers<[1], [0], [0], [1], [0, 0, 1, 1], [], []>} : vector<8x32xf32>, vector<32x96xf32>, vector<8x96xf32> -> vector<8x96xf32>
    %71 = vector.extract_strided_slice %69 {offsets = [0, 0], sizes = [8, 32], strides = [1, 1]} : vector<8x96xf32> to vector<8x32xf32>
    %72 = vector.extract_strided_slice %70 {offsets = [0, 0], sizes = [8, 32], strides = [1, 1]} : vector<8x96xf32> to vector<8x32xf32>
    %73 = arith.addf %71, %72 : vector<8x32xf32>
    %74 = arith.negf %73 : vector<8x32xf32>
    %75 = math.exp %74 : vector<8x32xf32>
    %cst_34 = arith.constant 1.000000e+00 : f32
    %76 = vector.broadcast %cst_34 : f32 to vector<8x32xf32>
    %77 = arith.addf %76, %75 : vector<8x32xf32>
    %78 = arith.divf %76, %77 : vector<8x32xf32>
    %79 = vector.extract_strided_slice %69 {offsets = [0, 32], sizes = [8, 32], strides = [1, 1]} : vector<8x96xf32> to vector<8x32xf32>
    %80 = vector.extract_strided_slice %70 {offsets = [0, 32], sizes = [8, 32], strides = [1, 1]} : vector<8x96xf32> to vector<8x32xf32>
    %81 = arith.addf %79, %80 : vector<8x32xf32>
    %82 = arith.negf %81 : vector<8x32xf32>
    %83 = math.exp %82 : vector<8x32xf32>
    %cst_35 = arith.constant 1.000000e+00 : f32
    %84 = vector.broadcast %cst_35 : f32 to vector<8x32xf32>
    %85 = arith.addf %84, %83 : vector<8x32xf32>
    %86 = arith.divf %84, %85 : vector<8x32xf32>
    %87 = vector.extract_strided_slice %69 {offsets = [0, 64], sizes = [8, 32], strides = [1, 1]} : vector<8x96xf32> to vector<8x32xf32>
    %88 = vector.extract_strided_slice %70 {offsets = [0, 64], sizes = [8, 32], strides = [1, 1]} : vector<8x96xf32> to vector<8x32xf32>
    %89 = arith.mulf %78, %88 : vector<8x32xf32>
    %90 = arith.addf %87, %89 : vector<8x32xf32>
    %91 = math.tanh %90 : vector<8x32xf32>
    %cst_36 = arith.constant 1.000000e+00 : f32
    %92 = vector.broadcast %cst_36 : f32 to vector<8x32xf32>
    %93 = arith.subf %92, %86 : vector<8x32xf32>
    %94 = arith.mulf %93, %91 : vector<8x32xf32>
    %95 = arith.mulf %86, %45 : vector<8x32xf32>
    %96 = arith.addf %94, %95 : vector<8x32xf32>
    %cst_37 = arith.constant dense<0.000000e+00> : vector<8x32xf32>
    %97 = tpu.matmul %96, %3, %cst_37 {dimension_numbers = #tpu.dot_dimension_numbers<[1], [0], [0], [1], [0, 0, 1, 1], [], []>} : vector<8x32xf32>, vector<32x32xf32>, vector<8x32xf32> -> vector<8x32xf32>
    %98 = vector.extract_strided_slice %67 {offsets = [0, 96], sizes = [8, 32], strides = [1, 1]} : vector<8x128xf32> to vector<8x32xf32>
    %99 = arith.addf %97, %98 : vector<8x32xf32>
    %100 = arith.addf %99, %12 : vector<8x32xf32>
    %101 = math.tanh %100 : vector<8x32xf32>
    %cst_38 = arith.constant dense<0.000000e+00> : vector<8x16xf32>
    %102 = tpu.matmul %101, %4, %cst_38 {dimension_numbers = #tpu.dot_dimension_numbers<[1], [0], [0], [1], [0, 0, 1, 1], [], []>} : vector<8x32xf32>, vector<32x16xf32>, vector<8x16xf32> -> vector<8x16xf32>
    %103 = vector.broadcast %5 : vector<1x16xf32> to vector<8x16xf32>
    %104 = arith.addf %102, %103 : vector<8x16xf32>
    %c1_39 = arith.constant 1 : index
    %c0_40 = arith.constant 0 : index
    %c0_41 = arith.constant 0 : index
    %105 = vector.load %arg9[%c1_39, %c0_40, %c0_41] : memref<8x8x16xf32, #tpu.memory_space<vmem>>, vector<1x8x16xf32>
    %106 = vector.shape_cast %105 : vector<1x8x16xf32> to vector<8x16xf32>
    %107 = vector.shape_cast %104 : vector<8x16xf32> to vector<1x8x16xf32>
    tpu.vector_store %arg9[%c1_39, %c0_40, %c0_41], %107 {strides = array<i32>} : memref<8x8x16xf32, #tpu.memory_space<vmem>>, vector<1x8x16xf32>,
    %cst_42 = arith.constant dense<0xFF800000> : vector<8xf32>
    %108 = vector.multi_reduction <maximumf>, %104, %cst_42 [1] : vector<8x16xf32> to vector<8xf32>
    %109 = vector.shape_cast %108 : vector<8xf32> to vector<8x1xf32>
    %110 = vector.broadcast %109 : vector<8x1xf32> to vector<8x16xf32>
    %111 = arith.cmpf oge, %104, %110 : vector<8x16xf32>
    %c16_i32_43 = arith.constant 16 : i32
    %112 = vector.broadcast %c16_i32_43 : i32 to vector<8x16xi32>
    %113 = arith.select %111, %13, %112 : vector<8x16xi1>, vector<8x16xi32>
    %cst_44 = arith.constant dense<2147483647> : vector<8xi32>
    %114 = vector.multi_reduction <minsi>, %113, %cst_44 [1] : vector<8x16xi32> to vector<8xi32>
    %115 = vector.shape_cast %114 : vector<8xi32> to vector<8x1xi32>
    %c2 = arith.constant 2 : index
    %c0_45 = arith.constant 0 : index
    %c0_46 = arith.constant 0 : index
    %116 = vector.load %arg0[%c2, %c0_45, %c0_46] : memref<8x8x16xf32, #tpu.memory_space<vmem>>, vector<1x8x16xf32>
    %117 = vector.shape_cast %116 : vector<1x8x16xf32> to vector<8x16xf32>
    %cst_47 = arith.constant dense<0.000000e+00> : vector<8x128xf32>
    %118 = tpu.matmul %117, %1, %cst_47 {dimension_numbers = #tpu.dot_dimension_numbers<[1], [0], [0], [1], [0, 0, 1, 1], [], []>} : vector<8x16xf32>, vector<16x128xf32>, vector<8x128xf32> -> vector<8x128xf32>
    %119 = vector.extract_strided_slice %118 {offsets = [0, 0], sizes = [8, 96], strides = [1, 1]} : vector<8x128xf32> to vector<8x96xf32>
    %120 = arith.addf %119, %8 : vector<8x96xf32>
    %cst_48 = arith.constant dense<0.000000e+00> : vector<8x96xf32>
    %121 = tpu.matmul %96, %2, %cst_48 {dimension_numbers = #tpu.dot_dimension_numbers<[1], [0], [0], [1], [0, 0, 1, 1], [], []>} : vector<8x32xf32>, vector<32x96xf32>, vector<8x96xf32> -> vector<8x96xf32>
    %122 = vector.extract_strided_slice %120 {offsets = [0, 0], sizes = [8, 32], strides = [1, 1]} : vector<8x96xf32> to vector<8x32xf32>
    %123 = vector.extract_strided_slice %121 {offsets = [0, 0], sizes = [8, 32], strides = [1, 1]} : vector<8x96xf32> to vector<8x32xf32>
    %124 = arith.addf %122, %123 : vector<8x32xf32>
    %125 = arith.negf %124 : vector<8x32xf32>
    %126 = math.exp %125 : vector<8x32xf32>
    %cst_49 = arith.constant 1.000000e+00 : f32
    %127 = vector.broadcast %cst_49 : f32 to vector<8x32xf32>
    %128 = arith.addf %127, %126 : vector<8x32xf32>
    %129 = arith.divf %127, %128 : vector<8x32xf32>
    %130 = vector.extract_strided_slice %120 {offsets = [0, 32], sizes = [8, 32], strides = [1, 1]} : vector<8x96xf32> to vector<8x32xf32>
    %131 = vector.extract_strided_slice %121 {offsets = [0, 32], sizes = [8, 32], strides = [1, 1]} : vector<8x96xf32> to vector<8x32xf32>
    %132 = arith.addf %130, %131 : vector<8x32xf32>
    %133 = arith.negf %132 : vector<8x32xf32>
    %134 = math.exp %133 : vector<8x32xf32>
    %cst_50 = arith.constant 1.000000e+00 : f32
    %135 = vector.broadcast %cst_50 : f32 to vector<8x32xf32>
    %136 = arith.addf %135, %134 : vector<8x32xf32>
    %137 = arith.divf %135, %136 : vector<8x32xf32>
    %138 = vector.extract_strided_slice %120 {offsets = [0, 64], sizes = [8, 32], strides = [1, 1]} : vector<8x96xf32> to vector<8x32xf32>
    %139 = vector.extract_strided_slice %121 {offsets = [0, 64], sizes = [8, 32], strides = [1, 1]} : vector<8x96xf32> to vector<8x32xf32>
    %140 = arith.mulf %129, %139 : vector<8x32xf32>
    %141 = arith.addf %138, %140 : vector<8x32xf32>
    %142 = math.tanh %141 : vector<8x32xf32>
    %cst_51 = arith.constant 1.000000e+00 : f32
    %143 = vector.broadcast %cst_51 : f32 to vector<8x32xf32>
    %144 = arith.subf %143, %137 : vector<8x32xf32>
    %145 = arith.mulf %144, %142 : vector<8x32xf32>
    %146 = arith.mulf %137, %96 : vector<8x32xf32>
    %147 = arith.addf %145, %146 : vector<8x32xf32>
    %cst_52 = arith.constant dense<0.000000e+00> : vector<8x32xf32>
    %148 = tpu.matmul %147, %3, %cst_52 {dimension_numbers = #tpu.dot_dimension_numbers<[1], [0], [0], [1], [0, 0, 1, 1], [], []>} : vector<8x32xf32>, vector<32x32xf32>, vector<8x32xf32> -> vector<8x32xf32>
    %149 = vector.extract_strided_slice %118 {offsets = [0, 96], sizes = [8, 32], strides = [1, 1]} : vector<8x128xf32> to vector<8x32xf32>
    %150 = arith.addf %148, %149 : vector<8x32xf32>
    %151 = arith.addf %150, %12 : vector<8x32xf32>
    %152 = math.tanh %151 : vector<8x32xf32>
    %cst_53 = arith.constant dense<0.000000e+00> : vector<8x16xf32>
    %153 = tpu.matmul %152, %4, %cst_53 {dimension_numbers = #tpu.dot_dimension_numbers<[1], [0], [0], [1], [0, 0, 1, 1], [], []>} : vector<8x32xf32>, vector<32x16xf32>, vector<8x16xf32> -> vector<8x16xf32>
    %154 = vector.broadcast %5 : vector<1x16xf32> to vector<8x16xf32>
    %155 = arith.addf %153, %154 : vector<8x16xf32>
    %c2_54 = arith.constant 2 : index
    %c0_55 = arith.constant 0 : index
    %c0_56 = arith.constant 0 : index
    %156 = vector.load %arg9[%c2_54, %c0_55, %c0_56] : memref<8x8x16xf32, #tpu.memory_space<vmem>>, vector<1x8x16xf32>
    %157 = vector.shape_cast %156 : vector<1x8x16xf32> to vector<8x16xf32>
    %158 = vector.shape_cast %155 : vector<8x16xf32> to vector<1x8x16xf32>
    tpu.vector_store %arg9[%c2_54, %c0_55, %c0_56], %158 {strides = array<i32>} : memref<8x8x16xf32, #tpu.memory_space<vmem>>, vector<1x8x16xf32>,
    %cst_57 = arith.constant dense<0xFF800000> : vector<8xf32>
    %159 = vector.multi_reduction <maximumf>, %155, %cst_57 [1] : vector<8x16xf32> to vector<8xf32>
    %160 = vector.shape_cast %159 : vector<8xf32> to vector<8x1xf32>
    %161 = vector.broadcast %160 : vector<8x1xf32> to vector<8x16xf32>
    %162 = arith.cmpf oge, %155, %161 : vector<8x16xf32>
    %c16_i32_58 = arith.constant 16 : i32
    %163 = vector.broadcast %c16_i32_58 : i32 to vector<8x16xi32>
    %164 = arith.select %162, %13, %163 : vector<8x16xi1>, vector<8x16xi32>
    %cst_59 = arith.constant dense<2147483647> : vector<8xi32>
    %165 = vector.multi_reduction <minsi>, %164, %cst_59 [1] : vector<8x16xi32> to vector<8xi32>
    %166 = vector.shape_cast %165 : vector<8xi32> to vector<8x1xi32>
    %c3 = arith.constant 3 : index
    %c0_60 = arith.constant 0 : index
    %c0_61 = arith.constant 0 : index
    %167 = vector.load %arg0[%c3, %c0_60, %c0_61] : memref<8x8x16xf32, #tpu.memory_space<vmem>>, vector<1x8x16xf32>
    %168 = vector.shape_cast %167 : vector<1x8x16xf32> to vector<8x16xf32>
    %cst_62 = arith.constant dense<0.000000e+00> : vector<8x128xf32>
    %169 = tpu.matmul %168, %1, %cst_62 {dimension_numbers = #tpu.dot_dimension_numbers<[1], [0], [0], [1], [0, 0, 1, 1], [], []>} : vector<8x16xf32>, vector<16x128xf32>, vector<8x128xf32> -> vector<8x128xf32>
    %170 = vector.extract_strided_slice %169 {offsets = [0, 0], sizes = [8, 96], strides = [1, 1]} : vector<8x128xf32> to vector<8x96xf32>
    %171 = arith.addf %170, %8 : vector<8x96xf32>
    %cst_63 = arith.constant dense<0.000000e+00> : vector<8x96xf32>
    %172 = tpu.matmul %147, %2, %cst_63 {dimension_numbers = #tpu.dot_dimension_numbers<[1], [0], [0], [1], [0, 0, 1, 1], [], []>} : vector<8x32xf32>, vector<32x96xf32>, vector<8x96xf32> -> vector<8x96xf32>
    %173 = vector.extract_strided_slice %171 {offsets = [0, 0], sizes = [8, 32], strides = [1, 1]} : vector<8x96xf32> to vector<8x32xf32>
    %174 = vector.extract_strided_slice %172 {offsets = [0, 0], sizes = [8, 32], strides = [1, 1]} : vector<8x96xf32> to vector<8x32xf32>
    %175 = arith.addf %173, %174 : vector<8x32xf32>
    %176 = arith.negf %175 : vector<8x32xf32>
    %177 = math.exp %176 : vector<8x32xf32>
    %cst_64 = arith.constant 1.000000e+00 : f32
    %178 = vector.broadcast %cst_64 : f32 to vector<8x32xf32>
    %179 = arith.addf %178, %177 : vector<8x32xf32>
    %180 = arith.divf %178, %179 : vector<8x32xf32>
    %181 = vector.extract_strided_slice %171 {offsets = [0, 32], sizes = [8, 32], strides = [1, 1]} : vector<8x96xf32> to vector<8x32xf32>
    %182 = vector.extract_strided_slice %172 {offsets = [0, 32], sizes = [8, 32], strides = [1, 1]} : vector<8x96xf32> to vector<8x32xf32>
    %183 = arith.addf %181, %182 : vector<8x32xf32>
    %184 = arith.negf %183 : vector<8x32xf32>
    %185 = math.exp %184 : vector<8x32xf32>
    %cst_65 = arith.constant 1.000000e+00 : f32
    %186 = vector.broadcast %cst_65 : f32 to vector<8x32xf32>
    %187 = arith.addf %186, %185 : vector<8x32xf32>
    %188 = arith.divf %186, %187 : vector<8x32xf32>
    %189 = vector.extract_strided_slice %171 {offsets = [0, 64], sizes = [8, 32], strides = [1, 1]} : vector<8x96xf32> to vector<8x32xf32>
    %190 = vector.extract_strided_slice %172 {offsets = [0, 64], sizes = [8, 32], strides = [1, 1]} : vector<8x96xf32> to vector<8x32xf32>
    %191 = arith.mulf %180, %190 : vector<8x32xf32>
    %192 = arith.addf %189, %191 : vector<8x32xf32>
    %193 = math.tanh %192 : vector<8x32xf32>
    %cst_66 = arith.constant 1.000000e+00 : f32
    %194 = vector.broadcast %cst_66 : f32 to vector<8x32xf32>
    %195 = arith.subf %194, %188 : vector<8x32xf32>
    %196 = arith.mulf %195, %193 : vector<8x32xf32>
    %197 = arith.mulf %188, %147 : vector<8x32xf32>
    %198 = arith.addf %196, %197 : vector<8x32xf32>
    %cst_67 = arith.constant dense<0.000000e+00> : vector<8x32xf32>
    %199 = tpu.matmul %198, %3, %cst_67 {dimension_numbers = #tpu.dot_dimension_numbers<[1], [0], [0], [1], [0, 0, 1, 1], [], []>} : vector<8x32xf32>, vector<32x32xf32>, vector<8x32xf32> -> vector<8x32xf32>
    %200 = vector.extract_strided_slice %169 {offsets = [0, 96], sizes = [8, 32], strides = [1, 1]} : vector<8x128xf32> to vector<8x32xf32>
    %201 = arith.addf %199, %200 : vector<8x32xf32>
    %202 = arith.addf %201, %12 : vector<8x32xf32>
    %203 = math.tanh %202 : vector<8x32xf32>
    %cst_68 = arith.constant dense<0.000000e+00> : vector<8x16xf32>
    %204 = tpu.matmul %203, %4, %cst_68 {dimension_numbers = #tpu.dot_dimension_numbers<[1], [0], [0], [1], [0, 0, 1, 1], [], []>} : vector<8x32xf32>, vector<32x16xf32>, vector<8x16xf32> -> vector<8x16xf32>
    %205 = vector.broadcast %5 : vector<1x16xf32> to vector<8x16xf32>
    %206 = arith.addf %204, %205 : vector<8x16xf32>
    %c3_69 = arith.constant 3 : index
    %c0_70 = arith.constant 0 : index
    %c0_71 = arith.constant 0 : index
    %207 = vector.load %arg9[%c3_69, %c0_70, %c0_71] : memref<8x8x16xf32, #tpu.memory_space<vmem>>, vector<1x8x16xf32>
    %208 = vector.shape_cast %207 : vector<1x8x16xf32> to vector<8x16xf32>
    %209 = vector.shape_cast %206 : vector<8x16xf32> to vector<1x8x16xf32>
    tpu.vector_store %arg9[%c3_69, %c0_70, %c0_71], %209 {strides = array<i32>} : memref<8x8x16xf32, #tpu.memory_space<vmem>>, vector<1x8x16xf32>,
    %cst_72 = arith.constant dense<0xFF800000> : vector<8xf32>
    %210 = vector.multi_reduction <maximumf>, %206, %cst_72 [1] : vector<8x16xf32> to vector<8xf32>
    %211 = vector.shape_cast %210 : vector<8xf32> to vector<8x1xf32>
    %212 = vector.broadcast %211 : vector<8x1xf32> to vector<8x16xf32>
    %213 = arith.cmpf oge, %206, %212 : vector<8x16xf32>
    %c16_i32_73 = arith.constant 16 : i32
    %214 = vector.broadcast %c16_i32_73 : i32 to vector<8x16xi32>
    %215 = arith.select %213, %13, %214 : vector<8x16xi1>, vector<8x16xi32>
    %cst_74 = arith.constant dense<2147483647> : vector<8xi32>
    %216 = vector.multi_reduction <minsi>, %215, %cst_74 [1] : vector<8x16xi32> to vector<8xi32>
    %217 = vector.shape_cast %216 : vector<8xi32> to vector<8x1xi32>
    %c4 = arith.constant 4 : index
    %c0_75 = arith.constant 0 : index
    %c0_76 = arith.constant 0 : index
    %218 = vector.load %arg0[%c4, %c0_75, %c0_76] : memref<8x8x16xf32, #tpu.memory_space<vmem>>, vector<1x8x16xf32>
    %219 = vector.shape_cast %218 : vector<1x8x16xf32> to vector<8x16xf32>
    %cst_77 = arith.constant dense<0.000000e+00> : vector<8x128xf32>
    %220 = tpu.matmul %219, %1, %cst_77 {dimension_numbers = #tpu.dot_dimension_numbers<[1], [0], [0], [1], [0, 0, 1, 1], [], []>} : vector<8x16xf32>, vector<16x128xf32>, vector<8x128xf32> -> vector<8x128xf32>
    %221 = vector.extract_strided_slice %220 {offsets = [0, 0], sizes = [8, 96], strides = [1, 1]} : vector<8x128xf32> to vector<8x96xf32>
    %222 = arith.addf %221, %8 : vector<8x96xf32>
    %cst_78 = arith.constant dense<0.000000e+00> : vector<8x96xf32>
    %223 = tpu.matmul %198, %2, %cst_78 {dimension_numbers = #tpu.dot_dimension_numbers<[1], [0], [0], [1], [0, 0, 1, 1], [], []>} : vector<8x32xf32>, vector<32x96xf32>, vector<8x96xf32> -> vector<8x96xf32>
    %224 = vector.extract_strided_slice %222 {offsets = [0, 0], sizes = [8, 32], strides = [1, 1]} : vector<8x96xf32> to vector<8x32xf32>
    %225 = vector.extract_strided_slice %223 {offsets = [0, 0], sizes = [8, 32], strides = [1, 1]} : vector<8x96xf32> to vector<8x32xf32>
    %226 = arith.addf %224, %225 : vector<8x32xf32>
    %227 = arith.negf %226 : vector<8x32xf32>
    %228 = math.exp %227 : vector<8x32xf32>
    %cst_79 = arith.constant 1.000000e+00 : f32
    %229 = vector.broadcast %cst_79 : f32 to vector<8x32xf32>
    %230 = arith.addf %229, %228 : vector<8x32xf32>
    %231 = arith.divf %229, %230 : vector<8x32xf32>
    %232 = vector.extract_strided_slice %222 {offsets = [0, 32], sizes = [8, 32], strides = [1, 1]} : vector<8x96xf32> to vector<8x32xf32>
    %233 = vector.extract_strided_slice %223 {offsets = [0, 32], sizes = [8, 32], strides = [1, 1]} : vector<8x96xf32> to vector<8x32xf32>
    %234 = arith.addf %232, %233 : vector<8x32xf32>
    %235 = arith.negf %234 : vector<8x32xf32>
    %236 = math.exp %235 : vector<8x32xf32>
    %cst_80 = arith.constant 1.000000e+00 : f32
    %237 = vector.broadcast %cst_80 : f32 to vector<8x32xf32>
    %238 = arith.addf %237, %236 : vector<8x32xf32>
    %239 = arith.divf %237, %238 : vector<8x32xf32>
    %240 = vector.extract_strided_slice %222 {offsets = [0, 64], sizes = [8, 32], strides = [1, 1]} : vector<8x96xf32> to vector<8x32xf32>
    %241 = vector.extract_strided_slice %223 {offsets = [0, 64], sizes = [8, 32], strides = [1, 1]} : vector<8x96xf32> to vector<8x32xf32>
    %242 = arith.mulf %231, %241 : vector<8x32xf32>
    %243 = arith.addf %240, %242 : vector<8x32xf32>
    %244 = math.tanh %243 : vector<8x32xf32>
    %cst_81 = arith.constant 1.000000e+00 : f32
    %245 = vector.broadcast %cst_81 : f32 to vector<8x32xf32>
    %246 = arith.subf %245, %239 : vector<8x32xf32>
    %247 = arith.mulf %246, %244 : vector<8x32xf32>
    %248 = arith.mulf %239, %198 : vector<8x32xf32>
    %249 = arith.addf %247, %248 : vector<8x32xf32>
    %cst_82 = arith.constant dense<0.000000e+00> : vector<8x32xf32>
    %250 = tpu.matmul %249, %3, %cst_82 {dimension_numbers = #tpu.dot_dimension_numbers<[1], [0], [0], [1], [0, 0, 1, 1], [], []>} : vector<8x32xf32>, vector<32x32xf32>, vector<8x32xf32> -> vector<8x32xf32>
    %251 = vector.extract_strided_slice %220 {offsets = [0, 96], sizes = [8, 32], strides = [1, 1]} : vector<8x128xf32> to vector<8x32xf32>
    %252 = arith.addf %250, %251 : vector<8x32xf32>
    %253 = arith.addf %252, %12 : vector<8x32xf32>
    %254 = math.tanh %253 : vector<8x32xf32>
    %cst_83 = arith.constant dense<0.000000e+00> : vector<8x16xf32>
    %255 = tpu.matmul %254, %4, %cst_83 {dimension_numbers = #tpu.dot_dimension_numbers<[1], [0], [0], [1], [0, 0, 1, 1], [], []>} : vector<8x32xf32>, vector<32x16xf32>, vector<8x16xf32> -> vector<8x16xf32>
    %256 = vector.broadcast %5 : vector<1x16xf32> to vector<8x16xf32>
    %257 = arith.addf %255, %256 : vector<8x16xf32>
    %c4_84 = arith.constant 4 : index
    %c0_85 = arith.constant 0 : index
    %c0_86 = arith.constant 0 : index
    %258 = vector.load %arg9[%c4_84, %c0_85, %c0_86] : memref<8x8x16xf32, #tpu.memory_space<vmem>>, vector<1x8x16xf32>
    %259 = vector.shape_cast %258 : vector<1x8x16xf32> to vector<8x16xf32>
    %260 = vector.shape_cast %257 : vector<8x16xf32> to vector<1x8x16xf32>
    tpu.vector_store %arg9[%c4_84, %c0_85, %c0_86], %260 {strides = array<i32>} : memref<8x8x16xf32, #tpu.memory_space<vmem>>, vector<1x8x16xf32>,
    %cst_87 = arith.constant dense<0xFF800000> : vector<8xf32>
    %261 = vector.multi_reduction <maximumf>, %257, %cst_87 [1] : vector<8x16xf32> to vector<8xf32>
    %262 = vector.shape_cast %261 : vector<8xf32> to vector<8x1xf32>
    %263 = vector.broadcast %262 : vector<8x1xf32> to vector<8x16xf32>
    %264 = arith.cmpf oge, %257, %263 : vector<8x16xf32>
    %c16_i32_88 = arith.constant 16 : i32
    %265 = vector.broadcast %c16_i32_88 : i32 to vector<8x16xi32>
    %266 = arith.select %264, %13, %265 : vector<8x16xi1>, vector<8x16xi32>
    %cst_89 = arith.constant dense<2147483647> : vector<8xi32>
    %267 = vector.multi_reduction <minsi>, %266, %cst_89 [1] : vector<8x16xi32> to vector<8xi32>
    %268 = vector.shape_cast %267 : vector<8xi32> to vector<8x1xi32>
    %c5 = arith.constant 5 : index
    %c0_90 = arith.constant 0 : index
    %c0_91 = arith.constant 0 : index
    %269 = vector.load %arg0[%c5, %c0_90, %c0_91] : memref<8x8x16xf32, #tpu.memory_space<vmem>>, vector<1x8x16xf32>
    %270 = vector.shape_cast %269 : vector<1x8x16xf32> to vector<8x16xf32>
    %cst_92 = arith.constant dense<0.000000e+00> : vector<8x128xf32>
    %271 = tpu.matmul %270, %1, %cst_92 {dimension_numbers = #tpu.dot_dimension_numbers<[1], [0], [0], [1], [0, 0, 1, 1], [], []>} : vector<8x16xf32>, vector<16x128xf32>, vector<8x128xf32> -> vector<8x128xf32>
    %272 = vector.extract_strided_slice %271 {offsets = [0, 0], sizes = [8, 96], strides = [1, 1]} : vector<8x128xf32> to vector<8x96xf32>
    %273 = arith.addf %272, %8 : vector<8x96xf32>
    %cst_93 = arith.constant dense<0.000000e+00> : vector<8x96xf32>
    %274 = tpu.matmul %249, %2, %cst_93 {dimension_numbers = #tpu.dot_dimension_numbers<[1], [0], [0], [1], [0, 0, 1, 1], [], []>} : vector<8x32xf32>, vector<32x96xf32>, vector<8x96xf32> -> vector<8x96xf32>
    %275 = vector.extract_strided_slice %273 {offsets = [0, 0], sizes = [8, 32], strides = [1, 1]} : vector<8x96xf32> to vector<8x32xf32>
    %276 = vector.extract_strided_slice %274 {offsets = [0, 0], sizes = [8, 32], strides = [1, 1]} : vector<8x96xf32> to vector<8x32xf32>
    %277 = arith.addf %275, %276 : vector<8x32xf32>
    %278 = arith.negf %277 : vector<8x32xf32>
    %279 = math.exp %278 : vector<8x32xf32>
    %cst_94 = arith.constant 1.000000e+00 : f32
    %280 = vector.broadcast %cst_94 : f32 to vector<8x32xf32>
    %281 = arith.addf %280, %279 : vector<8x32xf32>
    %282 = arith.divf %280, %281 : vector<8x32xf32>
    %283 = vector.extract_strided_slice %273 {offsets = [0, 32], sizes = [8, 32], strides = [1, 1]} : vector<8x96xf32> to vector<8x32xf32>
    %284 = vector.extract_strided_slice %274 {offsets = [0, 32], sizes = [8, 32], strides = [1, 1]} : vector<8x96xf32> to vector<8x32xf32>
    %285 = arith.addf %283, %284 : vector<8x32xf32>
    %286 = arith.negf %285 : vector<8x32xf32>
    %287 = math.exp %286 : vector<8x32xf32>
    %cst_95 = arith.constant 1.000000e+00 : f32
    %288 = vector.broadcast %cst_95 : f32 to vector<8x32xf32>
    %289 = arith.addf %288, %287 : vector<8x32xf32>
    %290 = arith.divf %288, %289 : vector<8x32xf32>
    %291 = vector.extract_strided_slice %273 {offsets = [0, 64], sizes = [8, 32], strides = [1, 1]} : vector<8x96xf32> to vector<8x32xf32>
    %292 = vector.extract_strided_slice %274 {offsets = [0, 64], sizes = [8, 32], strides = [1, 1]} : vector<8x96xf32> to vector<8x32xf32>
    %293 = arith.mulf %282, %292 : vector<8x32xf32>
    %294 = arith.addf %291, %293 : vector<8x32xf32>
    %295 = math.tanh %294 : vector<8x32xf32>
    %cst_96 = arith.constant 1.000000e+00 : f32
    %296 = vector.broadcast %cst_96 : f32 to vector<8x32xf32>
    %297 = arith.subf %296, %290 : vector<8x32xf32>
    %298 = arith.mulf %297, %295 : vector<8x32xf32>
    %299 = arith.mulf %290, %249 : vector<8x32xf32>
    %300 = arith.addf %298, %299 : vector<8x32xf32>
    %cst_97 = arith.constant dense<0.000000e+00> : vector<8x32xf32>
    %301 = tpu.matmul %300, %3, %cst_97 {dimension_numbers = #tpu.dot_dimension_numbers<[1], [0], [0], [1], [0, 0, 1, 1], [], []>} : vector<8x32xf32>, vector<32x32xf32>, vector<8x32xf32> -> vector<8x32xf32>
    %302 = vector.extract_strided_slice %271 {offsets = [0, 96], sizes = [8, 32], strides = [1, 1]} : vector<8x128xf32> to vector<8x32xf32>
    %303 = arith.addf %301, %302 : vector<8x32xf32>
    %304 = arith.addf %303, %12 : vector<8x32xf32>
    %305 = math.tanh %304 : vector<8x32xf32>
    %cst_98 = arith.constant dense<0.000000e+00> : vector<8x16xf32>
    %306 = tpu.matmul %305, %4, %cst_98 {dimension_numbers = #tpu.dot_dimension_numbers<[1], [0], [0], [1], [0, 0, 1, 1], [], []>} : vector<8x32xf32>, vector<32x16xf32>, vector<8x16xf32> -> vector<8x16xf32>
    %307 = vector.broadcast %5 : vector<1x16xf32> to vector<8x16xf32>
    %308 = arith.addf %306, %307 : vector<8x16xf32>
    %c5_99 = arith.constant 5 : index
    %c0_100 = arith.constant 0 : index
    %c0_101 = arith.constant 0 : index
    %309 = vector.load %arg9[%c5_99, %c0_100, %c0_101] : memref<8x8x16xf32, #tpu.memory_space<vmem>>, vector<1x8x16xf32>
    %310 = vector.shape_cast %309 : vector<1x8x16xf32> to vector<8x16xf32>
    %311 = vector.shape_cast %308 : vector<8x16xf32> to vector<1x8x16xf32>
    tpu.vector_store %arg9[%c5_99, %c0_100, %c0_101], %311 {strides = array<i32>} : memref<8x8x16xf32, #tpu.memory_space<vmem>>, vector<1x8x16xf32>,
    %cst_102 = arith.constant dense<0xFF800000> : vector<8xf32>
    %312 = vector.multi_reduction <maximumf>, %308, %cst_102 [1] : vector<8x16xf32> to vector<8xf32>
    %313 = vector.shape_cast %312 : vector<8xf32> to vector<8x1xf32>
    %314 = vector.broadcast %313 : vector<8x1xf32> to vector<8x16xf32>
    %315 = arith.cmpf oge, %308, %314 : vector<8x16xf32>
    %c16_i32_103 = arith.constant 16 : i32
    %316 = vector.broadcast %c16_i32_103 : i32 to vector<8x16xi32>
    %317 = arith.select %315, %13, %316 : vector<8x16xi1>, vector<8x16xi32>
    %cst_104 = arith.constant dense<2147483647> : vector<8xi32>
    %318 = vector.multi_reduction <minsi>, %317, %cst_104 [1] : vector<8x16xi32> to vector<8xi32>
    %319 = vector.shape_cast %318 : vector<8xi32> to vector<8x1xi32>
    %c6 = arith.constant 6 : index
    %c0_105 = arith.constant 0 : index
    %c0_106 = arith.constant 0 : index
    %320 = vector.load %arg0[%c6, %c0_105, %c0_106] : memref<8x8x16xf32, #tpu.memory_space<vmem>>, vector<1x8x16xf32>
    %321 = vector.shape_cast %320 : vector<1x8x16xf32> to vector<8x16xf32>
    %cst_107 = arith.constant dense<0.000000e+00> : vector<8x128xf32>
    %322 = tpu.matmul %321, %1, %cst_107 {dimension_numbers = #tpu.dot_dimension_numbers<[1], [0], [0], [1], [0, 0, 1, 1], [], []>} : vector<8x16xf32>, vector<16x128xf32>, vector<8x128xf32> -> vector<8x128xf32>
    %323 = vector.extract_strided_slice %322 {offsets = [0, 0], sizes = [8, 96], strides = [1, 1]} : vector<8x128xf32> to vector<8x96xf32>
    %324 = arith.addf %323, %8 : vector<8x96xf32>
    %cst_108 = arith.constant dense<0.000000e+00> : vector<8x96xf32>
    %325 = tpu.matmul %300, %2, %cst_108 {dimension_numbers = #tpu.dot_dimension_numbers<[1], [0], [0], [1], [0, 0, 1, 1], [], []>} : vector<8x32xf32>, vector<32x96xf32>, vector<8x96xf32> -> vector<8x96xf32>
    %326 = vector.extract_strided_slice %324 {offsets = [0, 0], sizes = [8, 32], strides = [1, 1]} : vector<8x96xf32> to vector<8x32xf32>
    %327 = vector.extract_strided_slice %325 {offsets = [0, 0], sizes = [8, 32], strides = [1, 1]} : vector<8x96xf32> to vector<8x32xf32>
    %328 = arith.addf %326, %327 : vector<8x32xf32>
    %329 = arith.negf %328 : vector<8x32xf32>
    %330 = math.exp %329 : vector<8x32xf32>
    %cst_109 = arith.constant 1.000000e+00 : f32
    %331 = vector.broadcast %cst_109 : f32 to vector<8x32xf32>
    %332 = arith.addf %331, %330 : vector<8x32xf32>
    %333 = arith.divf %331, %332 : vector<8x32xf32>
    %334 = vector.extract_strided_slice %324 {offsets = [0, 32], sizes = [8, 32], strides = [1, 1]} : vector<8x96xf32> to vector<8x32xf32>
    %335 = vector.extract_strided_slice %325 {offsets = [0, 32], sizes = [8, 32], strides = [1, 1]} : vector<8x96xf32> to vector<8x32xf32>
    %336 = arith.addf %334, %335 : vector<8x32xf32>
    %337 = arith.negf %336 : vector<8x32xf32>
    %338 = math.exp %337 : vector<8x32xf32>
    %cst_110 = arith.constant 1.000000e+00 : f32
    %339 = vector.broadcast %cst_110 : f32 to vector<8x32xf32>
    %340 = arith.addf %339, %338 : vector<8x32xf32>
    %341 = arith.divf %339, %340 : vector<8x32xf32>
    %342 = vector.extract_strided_slice %324 {offsets = [0, 64], sizes = [8, 32], strides = [1, 1]} : vector<8x96xf32> to vector<8x32xf32>
    %343 = vector.extract_strided_slice %325 {offsets = [0, 64], sizes = [8, 32], strides = [1, 1]} : vector<8x96xf32> to vector<8x32xf32>
    %344 = arith.mulf %333, %343 : vector<8x32xf32>
    %345 = arith.addf %342, %344 : vector<8x32xf32>
    %346 = math.tanh %345 : vector<8x32xf32>
    %cst_111 = arith.constant 1.000000e+00 : f32
    %347 = vector.broadcast %cst_111 : f32 to vector<8x32xf32>
    %348 = arith.subf %347, %341 : vector<8x32xf32>
    %349 = arith.mulf %348, %346 : vector<8x32xf32>
    %350 = arith.mulf %341, %300 : vector<8x32xf32>
    %351 = arith.addf %349, %350 : vector<8x32xf32>
    %cst_112 = arith.constant dense<0.000000e+00> : vector<8x32xf32>
    %352 = tpu.matmul %351, %3, %cst_112 {dimension_numbers = #tpu.dot_dimension_numbers<[1], [0], [0], [1], [0, 0, 1, 1], [], []>} : vector<8x32xf32>, vector<32x32xf32>, vector<8x32xf32> -> vector<8x32xf32>
    %353 = vector.extract_strided_slice %322 {offsets = [0, 96], sizes = [8, 32], strides = [1, 1]} : vector<8x128xf32> to vector<8x32xf32>
    %354 = arith.addf %352, %353 : vector<8x32xf32>
    %355 = arith.addf %354, %12 : vector<8x32xf32>
    %356 = math.tanh %355 : vector<8x32xf32>
    %cst_113 = arith.constant dense<0.000000e+00> : vector<8x16xf32>
    %357 = tpu.matmul %356, %4, %cst_113 {dimension_numbers = #tpu.dot_dimension_numbers<[1], [0], [0], [1], [0, 0, 1, 1], [], []>} : vector<8x32xf32>, vector<32x16xf32>, vector<8x16xf32> -> vector<8x16xf32>
    %358 = vector.broadcast %5 : vector<1x16xf32> to vector<8x16xf32>
    %359 = arith.addf %357, %358 : vector<8x16xf32>
    %c6_114 = arith.constant 6 : index
    %c0_115 = arith.constant 0 : index
    %c0_116 = arith.constant 0 : index
    %360 = vector.load %arg9[%c6_114, %c0_115, %c0_116] : memref<8x8x16xf32, #tpu.memory_space<vmem>>, vector<1x8x16xf32>
    %361 = vector.shape_cast %360 : vector<1x8x16xf32> to vector<8x16xf32>
    %362 = vector.shape_cast %359 : vector<8x16xf32> to vector<1x8x16xf32>
    tpu.vector_store %arg9[%c6_114, %c0_115, %c0_116], %362 {strides = array<i32>} : memref<8x8x16xf32, #tpu.memory_space<vmem>>, vector<1x8x16xf32>,
    %cst_117 = arith.constant dense<0xFF800000> : vector<8xf32>
    %363 = vector.multi_reduction <maximumf>, %359, %cst_117 [1] : vector<8x16xf32> to vector<8xf32>
    %364 = vector.shape_cast %363 : vector<8xf32> to vector<8x1xf32>
    %365 = vector.broadcast %364 : vector<8x1xf32> to vector<8x16xf32>
    %366 = arith.cmpf oge, %359, %365 : vector<8x16xf32>
    %c16_i32_118 = arith.constant 16 : i32
    %367 = vector.broadcast %c16_i32_118 : i32 to vector<8x16xi32>
    %368 = arith.select %366, %13, %367 : vector<8x16xi1>, vector<8x16xi32>
    %cst_119 = arith.constant dense<2147483647> : vector<8xi32>
    %369 = vector.multi_reduction <minsi>, %368, %cst_119 [1] : vector<8x16xi32> to vector<8xi32>
    %370 = vector.shape_cast %369 : vector<8xi32> to vector<8x1xi32>
    %c7 = arith.constant 7 : index
    %c0_120 = arith.constant 0 : index
    %c0_121 = arith.constant 0 : index
    %371 = vector.load %arg0[%c7, %c0_120, %c0_121] : memref<8x8x16xf32, #tpu.memory_space<vmem>>, vector<1x8x16xf32>
    %372 = vector.shape_cast %371 : vector<1x8x16xf32> to vector<8x16xf32>
    %cst_122 = arith.constant dense<0.000000e+00> : vector<8x128xf32>
    %373 = tpu.matmul %372, %1, %cst_122 {dimension_numbers = #tpu.dot_dimension_numbers<[1], [0], [0], [1], [0, 0, 1, 1], [], []>} : vector<8x16xf32>, vector<16x128xf32>, vector<8x128xf32> -> vector<8x128xf32>
    %374 = vector.extract_strided_slice %373 {offsets = [0, 0], sizes = [8, 96], strides = [1, 1]} : vector<8x128xf32> to vector<8x96xf32>
    %375 = arith.addf %374, %8 : vector<8x96xf32>
    %cst_123 = arith.constant dense<0.000000e+00> : vector<8x96xf32>
    %376 = tpu.matmul %351, %2, %cst_123 {dimension_numbers = #tpu.dot_dimension_numbers<[1], [0], [0], [1], [0, 0, 1, 1], [], []>} : vector<8x32xf32>, vector<32x96xf32>, vector<8x96xf32> -> vector<8x96xf32>
    %377 = vector.extract_strided_slice %375 {offsets = [0, 0], sizes = [8, 32], strides = [1, 1]} : vector<8x96xf32> to vector<8x32xf32>
    %378 = vector.extract_strided_slice %376 {offsets = [0, 0], sizes = [8, 32], strides = [1, 1]} : vector<8x96xf32> to vector<8x32xf32>
    %379 = arith.addf %377, %378 : vector<8x32xf32>
    %380 = arith.negf %379 : vector<8x32xf32>
    %381 = math.exp %380 : vector<8x32xf32>
    %cst_124 = arith.constant 1.000000e+00 : f32
    %382 = vector.broadcast %cst_124 : f32 to vector<8x32xf32>
    %383 = arith.addf %382, %381 : vector<8x32xf32>
    %384 = arith.divf %382, %383 : vector<8x32xf32>
    %385 = vector.extract_strided_slice %375 {offsets = [0, 32], sizes = [8, 32], strides = [1, 1]} : vector<8x96xf32> to vector<8x32xf32>
    %386 = vector.extract_strided_slice %376 {offsets = [0, 32], sizes = [8, 32], strides = [1, 1]} : vector<8x96xf32> to vector<8x32xf32>
    %387 = arith.addf %385, %386 : vector<8x32xf32>
    %388 = arith.negf %387 : vector<8x32xf32>
    %389 = math.exp %388 : vector<8x32xf32>
    %cst_125 = arith.constant 1.000000e+00 : f32
    %390 = vector.broadcast %cst_125 : f32 to vector<8x32xf32>
    %391 = arith.addf %390, %389 : vector<8x32xf32>
    %392 = arith.divf %390, %391 : vector<8x32xf32>
    %393 = vector.extract_strided_slice %375 {offsets = [0, 64], sizes = [8, 32], strides = [1, 1]} : vector<8x96xf32> to vector<8x32xf32>
    %394 = vector.extract_strided_slice %376 {offsets = [0, 64], sizes = [8, 32], strides = [1, 1]} : vector<8x96xf32> to vector<8x32xf32>
    %395 = arith.mulf %384, %394 : vector<8x32xf32>
    %396 = arith.addf %393, %395 : vector<8x32xf32>
    %397 = math.tanh %396 : vector<8x32xf32>
    %cst_126 = arith.constant 1.000000e+00 : f32
    %398 = vector.broadcast %cst_126 : f32 to vector<8x32xf32>
    %399 = arith.subf %398, %392 : vector<8x32xf32>
    %400 = arith.mulf %399, %397 : vector<8x32xf32>
    %401 = arith.mulf %392, %351 : vector<8x32xf32>
    %402 = arith.addf %400, %401 : vector<8x32xf32>
    %cst_127 = arith.constant dense<0.000000e+00> : vector<8x32xf32>
    %403 = tpu.matmul %402, %3, %cst_127 {dimension_numbers = #tpu.dot_dimension_numbers<[1], [0], [0], [1], [0, 0, 1, 1], [], []>} : vector<8x32xf32>, vector<32x32xf32>, vector<8x32xf32> -> vector<8x32xf32>
    %404 = vector.extract_strided_slice %373 {offsets = [0, 96], sizes = [8, 32], strides = [1, 1]} : vector<8x128xf32> to vector<8x32xf32>
    %405 = arith.addf %403, %404 : vector<8x32xf32>
    %406 = arith.addf %405, %12 : vector<8x32xf32>
    %407 = math.tanh %406 : vector<8x32xf32>
    %cst_128 = arith.constant dense<0.000000e+00> : vector<8x16xf32>
    %408 = tpu.matmul %407, %4, %cst_128 {dimension_numbers = #tpu.dot_dimension_numbers<[1], [0], [0], [1], [0, 0, 1, 1], [], []>} : vector<8x32xf32>, vector<32x16xf32>, vector<8x16xf32> -> vector<8x16xf32>
    %409 = vector.broadcast %5 : vector<1x16xf32> to vector<8x16xf32>
    %410 = arith.addf %408, %409 : vector<8x16xf32>
    %c7_129 = arith.constant 7 : index
    %c0_130 = arith.constant 0 : index
    %c0_131 = arith.constant 0 : index
    %411 = vector.load %arg9[%c7_129, %c0_130, %c0_131] : memref<8x8x16xf32, #tpu.memory_space<vmem>>, vector<1x8x16xf32>
    %412 = vector.shape_cast %411 : vector<1x8x16xf32> to vector<8x16xf32>
    %413 = vector.shape_cast %410 : vector<8x16xf32> to vector<1x8x16xf32>
    tpu.vector_store %arg9[%c7_129, %c0_130, %c0_131], %413 {strides = array<i32>} : memref<8x8x16xf32, #tpu.memory_space<vmem>>, vector<1x8x16xf32>,
    %cst_132 = arith.constant dense<0xFF800000> : vector<8xf32>
    %414 = vector.multi_reduction <maximumf>, %410, %cst_132 [1] : vector<8x16xf32> to vector<8xf32>
    %415 = vector.shape_cast %414 : vector<8xf32> to vector<8x1xf32>
    %416 = vector.broadcast %415 : vector<8x1xf32> to vector<8x16xf32>
    %417 = arith.cmpf oge, %410, %416 : vector<8x16xf32>
    %c16_i32_133 = arith.constant 16 : i32
    %418 = vector.broadcast %c16_i32_133 : i32 to vector<8x16xi32>
    %419 = arith.select %417, %13, %418 : vector<8x16xi1>, vector<8x16xi32>
    %cst_134 = arith.constant dense<2147483647> : vector<8xi32>
    %420 = vector.multi_reduction <minsi>, %419, %cst_134 [1] : vector<8x16xi32> to vector<8xi32>
    %421 = vector.shape_cast %420 : vector<8xi32> to vector<8x1xi32>
    %422 = tpu.concatenate %64, %115, %166, %217, %268, %319, %370, %421 in 1 : vector<8x1xi32>, vector<8x1xi32>, vector<8x1xi32>, vector<8x1xi32>, vector<8x1xi32>, vector<8x1xi32>, vector<8x1xi32>, vector<8x1xi32> -> vector<8x8xi32>
    %c0_135 = arith.constant 0 : index
    %c0_136 = arith.constant 0 : index
    %423 = vector.load %arg10[%c0_135, %c0_136] : memref<8x8xi32, #tpu.memory_space<vmem>>, vector<8x8xi32>
    tpu.vector_store %arg10[%c0_135, %c0_136], %422 {strides = array<i32>} : memref<8x8xi32, #tpu.memory_space<vmem>>, vector<8x8xi32>,
    return
  }
}

</mosaic_0001>

<llo_original>
// kernel: neg.1
$region0: #{neg.1}
  #allocation2 [shape = 's32[1]{0}', space=sflag, size = 0x4, scoped, tag = 'scoped memory for neg.1']
  %s0 = inlined_call_operand.<no memory space> [shape: s32[], index: 0, kind: input, shape index: {}]
  %s1 = inlined_call_operand.hbm [shape: s32[8,8], index: 1, kind: output, shape index: {}]
  %v2 = vstv %s0
  $region1: #{neg.1} parent=0
    #allocation0 [shape = 'u8[4096]{0}', space=vmem, size = 0x1000, scoped, tag = 'operand span for operand 1']
    #allocation1 [shape = 's32[1]{0}', space=sflag, size = 0x4, scoped, tag = 'scoped memory for neg.1']
    %3 = vsyncpa [#allocation1], 0
    %4 = vst [vmem:[#allocation0] sm:$0xff] %v2
    %s6 = ssub.s32 128, 128
    %7 = vsyncadd [#allocation1], %s6
    %s9 = sshll.u32 [#allocation0], 4
    %s10 = int_to_ptr.vmem [resolvable:$true] %s9
    %12 = dma.vmem_to_hbm [thread:$0]  %s10, 128, %s1, [#allocation1]
    %13 = dma.done [#allocation1], 128
    %14 = vsyncpa [#allocation1], 1

// kernel: decoder_forward.1
$region0: #{decoder_forward.1}
  #allocation0 [shape = 'u32[]', space=smem, size = 0x4, offset = 0x4, fixed_abs, tag = 'smem constant byte address 0x4 - core index']
  #allocation1 [shape = 'u32[144,128]{1,0:T(1,128)}', space=vmem, size = 0x12000, scoped, tag = 'internal scratch']
  %s0 = inlined_call_operand.vmem [shape: f32[8,8,16], index: 0, kind: input, shape index: {}]
  %s1 = inlined_call_operand.vmem [shape: f32[8,32], index: 1, kind: input, shape index: {}]
  %s2 = inlined_call_operand.vmem [shape: f32[16,128], index: 2, kind: input, shape index: {}]
  %s3 = inlined_call_operand.vmem [shape: f32[32,128], index: 3, kind: input, shape index: {}]
  %s4 = inlined_call_operand.vmem [shape: f32[32,96], index: 4, kind: input, shape index: {}]
  %s5 = inlined_call_operand.vmem [shape: f32[32,32], index: 5, kind: input, shape index: {}]
  %s6 = inlined_call_operand.vmem [shape: f32[1,32], index: 6, kind: input, shape index: {}]
  %s7 = inlined_call_operand.vmem [shape: f32[32,16], index: 7, kind: input, shape index: {}]
  %s8 = inlined_call_operand.vmem [shape: f32[1,16], index: 8, kind: input, shape index: {}]
  %s9 = inlined_call_operand.vmem [shape: f32[8,8,16], index: 9, kind: output, shape index: {0}]
  %s10 = inlined_call_operand.vmem [shape: s32[8,8], index: 10, kind: output, shape index: {1}]
  %11 = xla_tuple %s9, %s10
  %s12 = sld [smem:[#allocation0]]
  $region54: #{decoder_forward.1} parent=0
    _
  %s14 = ssub.s32 1, %s12
  %s15 = scalar_select 0, %s14, %s12
  // Predicated region
  $region2: #{decoder_forward.1} parent=0 // pred_check
    _
  $region3: #{decoder_forward.1} parent=0 // pred_check_branch
    %17 = sbr.rel (0) target = $region5
  $region4: #{decoder_forward.1} parent=0 // pred_region
    _
  $region5: #{decoder_forward.1} parent=0 // pred_fallthru
    _
  // Predicated region
  $region6: #{decoder_forward.1} parent=0 // pred_check
    _
  $region7: #{decoder_forward.1} parent=0 // pred_check_branch
    %19 = sbr.rel (0) target = $region9
  $region8: #{decoder_forward.1} parent=0 // pred_region
    _
  $region9: #{decoder_forward.1} parent=0 // pred_fallthru
    _
  // Predicated region
  $region10: #{decoder_forward.1} parent=0 // pred_check
    _
  $region11: #{decoder_forward.1} parent=0 // pred_check_branch
    %21 = sbr.rel (0) target = $region13
  $region12: #{decoder_forward.1} parent=0 // pred_region
    _
  $region13: #{decoder_forward.1} parent=0 // pred_fallthru
    _
  // Predicated region
  $region14: #{decoder_forward.1} parent=0 // pred_check
    _
  $region15: #{decoder_forward.1} parent=0 // pred_check_branch
    %23 = sbr.rel (0) target = $region17
  $region16: #{decoder_forward.1} parent=0 // pred_region
    _
  $region17: #{decoder_forward.1} parent=0 // pred_fallthru
    _
  // Predicated region
  $region18: #{decoder_forward.1} parent=0 // pred_check
    _
  $region19: #{decoder_forward.1} parent=0 // pred_check_branch
    %25 = sbr.rel (0) target = $region21
  $region20: #{decoder_forward.1} parent=0 // pred_region
    _
  $region21: #{decoder_forward.1} parent=0 // pred_fallthru
    _
  // Predicated region
  $region22: #{decoder_forward.1} parent=0 // pred_check
    _
  $region23: #{decoder_forward.1} parent=0 // pred_check_branch
    %27 = sbr.rel (0) target = $region25
  $region24: #{decoder_forward.1} parent=0 // pred_region
    _
  $region25: #{decoder_forward.1} parent=0 // pred_fallthru
    _
  // Predicated region
  $region26: #{decoder_forward.1} parent=0 // pred_check
    _
  $region27: #{decoder_forward.1} parent=0 // pred_check_branch
    %29 = sbr.rel (0) target = $region29
  $region28: #{decoder_forward.1} parent=0 // pred_region
    _
  $region29: #{decoder_forward.1} parent=0 // pred_fallthru
    _
  // Predicated region
  $region30: #{decoder_forward.1} parent=0 // pred_check
    _
  $region31: #{decoder_forward.1} parent=0 // pred_check_branch
    %31 = sbr.rel (0) target = $region33
  $region32: #{decoder_forward.1} parent=0 // pred_region
    _
  $region33: #{decoder_forward.1} parent=0 // pred_fallthru
    _
  // Predicated region
  $region34: #{decoder_forward.1} parent=0 // pred_check
    _
  $region35: #{decoder_forward.1} parent=0 // pred_check_branch
    %33 = sbr.rel (0) target = $region37
  $region36: #{decoder_forward.1} parent=0 // pred_region
    _
  $region37: #{decoder_forward.1} parent=0 // pred_fallthru
    _
  %v34 = vld [vmem:[%s1] sm:$0xff]
  %v35 = vld [vmem:[%s2] sm:$0xff]
  %v36 = vld [vmem:[%s2 + $0x8] sm:$0xff]
  %v37 = vld [vmem:[%s4] sm:$0xff]
  %v38 = vld [vmem:[%s4 + $0x8] sm:$0xff]
  %v39 = vld [vmem:[%s4 + $0x10] sm:$0xff]
  %v40 = vld [vmem:[%s4 + $0x18] sm:$0xff]
  %v41 = vld [vmem:[%s5] sm:$0xff]
  %v42 = vld [vmem:[%s5 + $0x8] sm:$0xff]
  %v43 = vld [vmem:[%s5 + $0x10] sm:$0xff]
  %v44 = vld [vmem:[%s5 + $0x18] sm:$0xff]
  %v45 = vld [vmem:[%s7] sm:$0xff]
  %v46 = vld [vmem:[%s7 + $0x8] sm:$0xff]
  %v47 = vld [vmem:[%s7 + $0x10] sm:$0xff]
  %v48 = vld [vmem:[%s7 + $0x18] sm:$0xff]
  %v49 = vld [vmem:[%s8] sm:$0x1]
  %v50 = vld [vmem:[%s3] sm:$0xff]
  %v51 = vld [vmem:[%s3 + $0x8] sm:$0xff]
  %v52 = vld [vmem:[%s3 + $0x10] sm:$0xff]
  %v53 = vld [vmem:[%s3 + $0x18] sm:$0xff]
  %vm54 = vcmask 261120
  %v56 = vsel %vm54, %v34, 0
  %58 = vmatprep.subr.mxu0 0.0
  %59 = vmatpush1.msra.mxu0 %v50
  %60 = vmatprep.subr.mxu0 0.0
  %61 = vmatpush1.msra.mxu0 %v51
  %62 = vmatprep.subr.mxu0 0.0
  %63 = vmatpush1.msra.mxu0 %v52
  %64 = vmatprep.subr.mxu0 0.0
  %65 = vmatpush1.msra.mxu0 %v53
  %66 = vmatprep.subr.mxu0 0.0
  %67 = vmatpush1.msra.mxu0 0.0
  %68 = vmatprep.subr.mxu0 0.0
  %69 = vmatpush1.msra.mxu0 0.0
  %70 = vmatprep.subr.mxu0 0.0
  %71 = vmatpush1.msra.mxu0 0.0
  %72 = vmatprep.subr.mxu0 0.0
  %73 = vmatpush1.msra.mxu0 0.0
  %74 = vmatprep.subr.mxu0 0.0
  %75 = vmatpush1.msra.mxu0 0.0
  %76 = vmatprep.subr.mxu0 0.0
  %77 = vmatpush1.msra.mxu0 0.0
  %78 = vmatprep.subr.mxu0 0.0
  %79 = vmatpush1.msra.mxu0 0.0
  %80 = vmatprep.subr.mxu0 0.0
  %81 = vmatpush1.msra.mxu0 0.0
  %82 = vmatprep.subr.mxu0 0.0
  %83 = vmatpush1.msra.mxu0 0.0
  %84 = vmatprep.subr.mxu0 0.0
  %85 = vmatpush1.msra.mxu0 0.0
  %86 = vmatprep.subr.mxu0 0.0
  %87 = vmatpush1.msra.mxu0 0.0
  %88 = vmatprep.subr.mxu0 0.0
  %89 = vmatpush1.msra.mxu0 0.0
  %90 = vmatprep.subr.mxu0 0.0
  %91 = vmatpush1.msra.mxu0 0.0
  %92 = vmatprep.subr.mxu0 0.0
  %93 = vmatpush1.msra.mxu0 0.0
  %94 = vmatprep.subr.mxu0 0.0
  %95 = vmatpush1.msra.mxu0 0.0
  %96 = vmatprep.subr.mxu0 0.0
  %97 = vmatpush1.msra.mxu0 0.0
  %98 = vmatprep.subr.mxu0 0.0
  %99 = vmatpush1.msra.mxu0 0.0
  %100 = vmatprep.subr.mxu0 0.0
  %101 = vmatpush1.msra.mxu0 0.0
  %102 = vmatprep.subr.mxu0 0.0
  %103 = vmatpush1.msra.mxu0 0.0
  %104 = vmatprep.subr.mxu0 0.0
  %105 = vmatpush1.msra.mxu0 0.0
  %106 = vmatprep.subr.mxu0 0.0
  %107 = vmatpush1.msra.mxu0 0.0
  %108 = vmatprep.subr.mxu0 0.0
  %109 = vmatpush1.msra.mxu0 0.0
  %110 = vmatprep.subr.mxu0 0.0
  %111 = vmatpush1.msra.mxu0 0.0
  %112 = vmatprep.subr.mxu0 0.0
  %113 = vmatpush1.msra.mxu0 0.0
  %114 = vmatprep.subr.mxu0 0.0
  %115 = vmatpush1.msra.mxu0 0.0
  %116 = vmatprep.subr.mxu0 0.0
  %117 = vmatpush1.msra.mxu0 0.0
  %118 = vmatprep.subr.mxu0 0.0
  %119 = vmatpush1.msra.mxu0 0.0
  %120 = vmatprep.subr.mxu0 0.0
  %121 = vmatpush1.msra.mxu0 0.0
  %122 = vmatprep.mubr.f32.mxu0 0.0
  %123 = vmatmul.mubr.f32.gmra.mrb[0].mxu0 %v56
  %v124 = vpop.f32.mrb[0].mxu0
  %v125 = vadd.f32 0.0, %v124
  %v126 = vpop.f32.mrb[0].mxu0
  %127 = vdwg.mxu0
  %v128 = vld [vmem:[%s6] sm:$0x1]
  %v130 = vlaneseq
  %v131 = vshrl.u32 %v130, 7
  %v132 = vsub.s32 0, %v131
  %v133 = vrot.slane %v128, %v132
  %134 = vrot.lane.b32.xlu0 %v133, 96
  %v135 = vpop.permute.xlu0 %134
  %v137 = vadd.f32 %v125, %v135
  %v138 = vlaneseq
  %v139 = vand.u32 %v138, 127
  %v140 = vld [vmem:[%s0] sm:$0xff]
  %vm141 = vcmask 130048
  %v143 = vsel %vm141, %v140, 0
  %145 = vmatprep.subr.mxu0 0.0
  %146 = vmatpush1.msra.mxu0 %v35
  %147 = vmatprep.subr.mxu0 0.0
  %148 = vmatpush1.msra.mxu0 %v36
  %149 = vmatprep.subr.mxu0 0.0
  %150 = vmatpush1.msra.mxu0 0.0
  %151 = vmatprep.subr.mxu0 0.0
  %152 = vmatpush1.msra.mxu0 0.0
  %153 = vmatprep.subr.mxu0 0.0
  %154 = vmatpush1.msra.mxu0 0.0
  %155 = vmatprep.subr.mxu0 0.0
  %156 = vmatpush1.msra.mxu0 0.0
  %157 = vmatprep.subr.mxu0 0.0
  %158 = vmatpush1.msra.mxu0 0.0
  %159 = vmatprep.subr.mxu0 0.0
  %160 = vmatpush1.msra.mxu0 0.0
  %161 = vmatprep.subr.mxu0 0.0
  %162 = vmatpush1.msra.mxu0 0.0
  %163 = vmatprep.subr.mxu0 0.0
  %164 = vmatpush1.msra.mxu0 0.0
  %165 = vmatprep.subr.mxu0 0.0
  %166 = vmatpush1.msra.mxu0 0.0
  %167 = vmatprep.subr.mxu0 0.0
  %168 = vmatpush1.msra.mxu0 0.0
  %169 = vmatprep.subr.mxu0 0.0
  %170 = vmatpush1.msra.mxu0 0.0
  %171 = vmatprep.subr.mxu0 0.0
  %172 = vmatpush1.msra.mxu0 0.0
  %173 = vmatprep.subr.mxu0 0.0
  %174 = vmatpush1.msra.mxu0 0.0
  %175 = vmatprep.subr.mxu0 0.0
  %176 = vmatpush1.msra.mxu0 0.0
  %177 = vmatprep.subr.mxu0 0.0
  %178 = vmatpush1.msra.mxu0 0.0
  %179 = vmatprep.subr.mxu0 0.0
  %180 = vmatpush1.msra.mxu0 0.0
  %181 = vmatprep.subr.mxu0 0.0
  %182 = vmatpush1.msra.mxu0 0.0
  %183 = vmatprep.subr.mxu0 0.0
  %184 = vmatpush1.msra.mxu0 0.0
  %185 = vmatprep.subr.mxu0 0.0
  %186 = vmatpush1.msra.mxu0 0.0
  %187 = vmatprep.subr.mxu0 0.0
  %188 = vmatpush1.msra.mxu0 0.0
  %189 = vmatprep.subr.mxu0 0.0
  %190 = vmatpush1.msra.mxu0 0.0
  %191 = vmatprep.subr.mxu0 0.0
  %192 = vmatpush1.msra.mxu0 0.0
  %193 = vmatprep.subr.mxu0 0.0
  %194 = vmatpush1.msra.mxu0 0.0
  %195 = vmatprep.subr.mxu0 0.0
  %196 = vmatpush1.msra.mxu0 0.0
  %197 = vmatprep.subr.mxu0 0.0
  %198 = vmatpush1.msra.mxu0 0.0
  %199 = vmatprep.subr.mxu0 0.0
  %200 = vmatpush1.msra.mxu0 0.0
  %201 = vmatprep.subr.mxu0 0.0
  %202 = vmatpush1.msra.mxu0 0.0
  %203 = vmatprep.subr.mxu0 0.0
  %204 = vmatpush1.msra.mxu0 0.0
  %205 = vmatprep.subr.mxu0 0.0
  %206 = vmatpush1.msra.mxu0 0.0
  %207 = vmatprep.subr.mxu0 0.0
  %208 = vmatpush1.msra.mxu0 0.0
  %209 = vmatprep.mubr.f32.mxu0 0.0
  %210 = vmatmul.mubr.f32.gmra.mrb[0].mxu0 %v143
  %v211 = vpop.f32.mrb[0].mxu0
  %v212 = vadd.f32 0.0, %v211
  %v213 = vpop.f32.mrb[0].mxu0
  %214 = vdwg.mxu0
  %v215 = vadd.f32 %v212, %v125
  %216 = vmatprep.subr.mxu0 0.0
  %217 = vmatpush1.msra.mxu0 %v37
  %218 = vmatprep.subr.mxu0 0.0
  %219 = vmatpush1.msra.mxu0 %v38
  %220 = vmatprep.subr.mxu0 0.0
  %221 = vmatpush1.msra.mxu0 %v39
  %222 = vmatprep.subr.mxu0 0.0
  %223 = vmatpush1.msra.mxu0 %v40
  %224 = vmatprep.subr.mxu0 0.0
  %225 = vmatpush1.msra.mxu0 0.0
  %226 = vmatprep.subr.mxu0 0.0
  %227 = vmatpush1.msra.mxu0 0.0
  %228 = vmatprep.subr.mxu0 0.0
  %229 = vmatpush1.msra.mxu0 0.0
  %230 = vmatprep.subr.mxu0 0.0
  %231 = vmatpush1.msra.mxu0 0.0
  %232 = vmatprep.subr.mxu0 0.0
  %233 = vmatpush1.msra.mxu0 0.0
  %234 = vmatprep.subr.mxu0 0.0
  %235 = vmatpush1.msra.mxu0 0.0
  %236 = vmatprep.subr.mxu0 0.0
  %237 = vmatpush1.msra.mxu0 0.0
  %238 = vmatprep.subr.mxu0 0.0
  %239 = vmatpush1.msra.mxu0 0.0
  %240 = vmatprep.subr.mxu0 0.0
  %241 = vmatpush1.msra.mxu0 0.0
  %242 = vmatprep.subr.mxu0 0.0
  %243 = vmatpush1.msra.mxu0 0.0
  %244 = vmatprep.subr.mxu0 0.0
  %245 = vmatpush1.msra.mxu0 0.0
  %246 = vmatprep.subr.mxu0 0.0
  %247 = vmatpush1.msra.mxu0 0.0
  %248 = vmatprep.subr.mxu0 0.0
  %249 = vmatpush1.msra.mxu0 0.0
  %250 = vmatprep.subr.mxu0 0.0
  %251 = vmatpush1.msra.mxu0 0.0
  %252 = vmatprep.subr.mxu0 0.0
  %253 = vmatpush1.msra.mxu0 0.0
  %254 = vmatprep.subr.mxu0 0.0
  %255 = vmatpush1.msra.mxu0 0.0
  %256 = vmatprep.subr.mxu0 0.0
  %257 = vmatpush1.msra.mxu0 0.0
  %258 = vmatprep.subr.mxu0 0.0
  %259 = vmatpush1.msra.mxu0 0.0
  %260 = vmatprep.subr.mxu0 0.0
  %261 = vmatpush1.msra.mxu0 0.0
  %262 = vmatprep.subr.mxu0 0.0
  %263 = vmatpush1.msra.mxu0 0.0
  %264 = vmatprep.subr.mxu0 0.0
  %265 = vmatpush1.msra.mxu0 0.0
  %266 = vmatprep.subr.mxu0 0.0
  %267 = vmatpush1.msra.mxu0 0.0
  %268 = vmatprep.subr.mxu0 0.0
  %269 = vmatpush1.msra.mxu0 0.0
  %270 = vmatprep.subr.mxu0 0.0
  %271 = vmatpush1.msra.mxu0 0.0
  %272 = vmatprep.subr.mxu0 0.0
  %273 = vmatpush1.msra.mxu0 0.0
  %274 = vmatprep.subr.mxu0 0.0
  %275 = vmatpush1.msra.mxu0 0.0
  %276 = vmatprep.subr.mxu0 0.0
  %277 = vmatpush1.msra.mxu0 0.0
  %278 = vmatprep.subr.mxu0 0.0
  %279 = vmatpush1.msra.mxu0 0.0
  %280 = vmatprep.mubr.f32.mxu0 0.0
  %281 = vmatmul.mubr.f32.gmra.mrb[0].mxu0 %v56
  %v282 = vpop.f32.mrb[0].mxu0
  %v283 = vadd.f32 0.0, %v282
  %v284 = vpop.f32.mrb[0].mxu0
  %285 = vdwg.mxu0
  %v286 = vadd.f32 %v215, %v283
  %v287 = vxor.u32 %v286, 2147483648
  %v288 = vmul.f32 %v287, 1.442695
  %v289 = vpow.pop %v288
  %v290 = vadd.f32 %v289, 1.0
  %v291 = vrcp.pop %v290
  %v292 = vmul.f32 1.0, %v291
  %294 = vrot.lane.b32.xlu0 %v283, 64
  %v295 = vpop.permute.xlu0 %294
  %v297 = vmul.f32 %v292, %v295
  %299 = vrot.lane.b32.xlu0 %v297, 64
  %v300 = vpop.permute.xlu0 %299
  %v302 = vadd.f32 %v215, %v300
  %v303 = vtanh.pop %v302
  %v304 = vsub.f32 1.0, %v292
  %306 = vrot.lane.b32.xlu0 %v303, 96
  %v307 = vpop.permute.xlu0 %306
  %v309 = vmul.f32 %v304, %v307
  %310 = vrot.lane.b32.xlu0 %v34, 32
  %v311 = vpop.permute.xlu0 %310
  %v313 = vmul.f32 %v292, %v311
  %v314 = vadd.f32 %v309, %v313
  %316 = vrot.lane.b32.xlu0 %v314, 96
  %v317 = vpop.permute.xlu0 %316
  %319 = vrot.lane.b32.xlu0 %v212, 32
  %v320 = vpop.permute.xlu0 %319
  %v322 = vsel %vm54, %v317, 0
  %324 = vmatprep.subr.mxu0 0.0
  %325 = vmatpush1.msra.mxu0 %v41
  %326 = vmatprep.subr.mxu0 0.0
  %327 = vmatpush1.msra.mxu0 %v42
  %328 = vmatprep.subr.mxu0 0.0
  %329 = vmatpush1.msra.mxu0 %v43
  %330 = vmatprep.subr.mxu0 0.0
  %331 = vmatpush1.msra.mxu0 %v44
  %332 = vmatprep.subr.mxu0 0.0
  %333 = vmatpush1.msra.mxu0 0.0
  %334 = vmatprep.subr.mxu0 0.0
  %335 = vmatpush1.msra.mxu0 0.0
  %336 = vmatprep.subr.mxu0 0.0
  %337 = vmatpush1.msra.mxu0 0.0
  %338 = vmatprep.subr.mxu0 0.0
  %339 = vmatpush1.msra.mxu0 0.0
  %340 = vmatprep.subr.mxu0 0.0
  %341 = vmatpush1.msra.mxu0 0.0
  %342 = vmatprep.subr.mxu0 0.0
  %343 = vmatpush1.msra.mxu0 0.0
  %344 = vmatprep.subr.mxu0 0.0
  %345 = vmatpush1.msra.mxu0 0.0
  %346 = vmatprep.subr.mxu0 0.0
  %347 = vmatpush1.msra.mxu0 0.0
  %348 = vmatprep.subr.mxu0 0.0
  %349 = vmatpush1.msra.mxu0 0.0
  %350 = vmatprep.subr.mxu0 0.0
  %351 = vmatpush1.msra.mxu0 0.0
  %352 = vmatprep.subr.mxu0 0.0
  %353 = vmatpush1.msra.mxu0 0.0
  %354 = vmatprep.subr.mxu0 0.0
  %355 = vmatpush1.msra.mxu0 0.0
  %356 = vmatprep.subr.mxu0 0.0
  %357 = vmatpush1.msra.mxu0 0.0
  %358 = vmatprep.subr.mxu0 0.0
  %359 = vmatpush1.msra.mxu0 0.0
  %360 = vmatprep.subr.mxu0 0.0
  %361 = vmatpush1.msra.mxu0 0.0
  %362 = vmatprep.subr.mxu0 0.0
  %363 = vmatpush1.msra.mxu0 0.0
  %364 = vmatprep.subr.mxu0 0.0
  %365 = vmatpush1.msra.mxu0 0.0
  %366 = vmatprep.subr.mxu0 0.0
  %367 = vmatpush1.msra.mxu0 0.0
  %368 = vmatprep.subr.mxu0 0.0
  %369 = vmatpush1.msra.mxu0 0.0
  %370 = vmatprep.subr.mxu0 0.0
  %371 = vmatpush1.msra.mxu0 0.0
  %372 = vmatprep.subr.mxu0 0.0
  %373 = vmatpush1.msra.mxu0 0.0
  %374 = vmatprep.subr.mxu0 0.0
  %375 = vmatpush1.msra.mxu0 0.0
  %376 = vmatprep.subr.mxu0 0.0
  %377 = vmatpush1.msra.mxu0 0.0
  %378 = vmatprep.subr.mxu0 0.0
  %379 = vmatpush1.msra.mxu0 0.0
  %380 = vmatprep.subr.mxu0 0.0
  %381 = vmatpush1.msra.mxu0 0.0
  %382 = vmatprep.subr.mxu0 0.0
  %383 = vmatpush1.msra.mxu0 0.0
  %384 = vmatprep.subr.mxu0 0.0
  %385 = vmatpush1.msra.mxu0 0.0
  %386 = vmatprep.subr.mxu0 0.0
  %387 = vmatpush1.msra.mxu0 0.0
  %388 = vmatprep.mubr.f32.mxu0 0.0
  %389 = vmatmul.mubr.f32.gmra.mrb[0].mxu0 %v322
  %v390 = vpop.f32.mrb[0].mxu0
  %v391 = vadd.f32 %v320, %v390
  %v392 = vpop.f32.mrb[0].mxu0
  %393 = vdwg.mxu0
  %395 = vrot.lane.b32.xlu0 %v137, 32
  %v396 = vpop.permute.xlu0 %395
  %v398 = vadd.f32 %v391, %v396
  %v399 = vtanh.pop %v398
  %v401 = vlaneseq
  %v402 = vshrl.u32 %v401, 7
  %v403 = vsub.s32 0, %v402
  %v404 = vrot.slane %v49, %v403
  %v407 = vsel %vm54, %v399, 0
  %409 = vmatprep.subr.mxu0 0.0
  %410 = vmatpush1.msra.mxu0 %v45
  %411 = vmatprep.subr.mxu0 0.0
  %412 = vmatpush1.msra.mxu0 %v46
  %413 = vmatprep.subr.mxu0 0.0
  %414 = vmatpush1.msra.mxu0 %v47
  %415 = vmatprep.subr.mxu0 0.0
  %416 = vmatpush1.msra.mxu0 %v48
  %417 = vmatprep.subr.mxu0 0.0
  %418 = vmatpush1.msra.mxu0 0.0
  %419 = vmatprep.subr.mxu0 0.0
  %420 = vmatpush1.msra.mxu0 0.0
  %421 = vmatprep.subr.mxu0 0.0
  %422 = vmatpush1.msra.mxu0 0.0
  %423 = vmatprep.subr.mxu0 0.0
  %424 = vmatpush1.msra.mxu0 0.0
  %425 = vmatprep.subr.mxu0 0.0
  %426 = vmatpush1.msra.mxu0 0.0
  %427 = vmatprep.subr.mxu0 0.0
  %428 = vmatpush1.msra.mxu0 0.0
  %429 = vmatprep.subr.mxu0 0.0
  %430 = vmatpush1.msra.mxu0 0.0
  %431 = vmatprep.subr.mxu0 0.0
  %432 = vmatpush1.msra.mxu0 0.0
  %433 = vmatprep.subr.mxu0 0.0
  %434 = vmatpush1.msra.mxu0 0.0
  %435 = vmatprep.subr.mxu0 0.0
  %436 = vmatpush1.msra.mxu0 0.0
  %437 = vmatprep.subr.mxu0 0.0
  %438 = vmatpush1.msra.mxu0 0.0
  %439 = vmatprep.subr.mxu0 0.0
  %440 = vmatpush1.msra.mxu0 0.0
  %441 = vmatprep.subr.mxu0 0.0
  %442 = vmatpush1.msra.mxu0 0.0
  %443 = vmatprep.subr.mxu0 0.0
  %444 = vmatpush1.msra.mxu0 0.0
  %445 = vmatprep.subr.mxu0 0.0
  %446 = vmatpush1.msra.mxu0 0.0
  %447 = vmatprep.subr.mxu0 0.0
  %448 = vmatpush1.msra.mxu0 0.0
  %449 = vmatprep.subr.mxu0 0.0
  %450 = vmatpush1.msra.mxu0 0.0
  %451 = vmatprep.subr.mxu0 0.0
  %452 = vmatpush1.msra.mxu0 0.0
  %453 = vmatprep.subr.mxu0 0.0
  %454 = vmatpush1.msra.mxu0 0.0
  %455 = vmatprep.subr.mxu0 0.0
  %456 = vmatpush1.msra.mxu0 0.0
  %457 = vmatprep.subr.mxu0 0.0
  %458 = vmatpush1.msra.mxu0 0.0
  %459 = vmatprep.subr.mxu0 0.0
  %460 = vmatpush1.msra.mxu0 0.0
  %461 = vmatprep.subr.mxu0 0.0
  %462 = vmatpush1.msra.mxu0 0.0
  %463 = vmatprep.subr.mxu0 0.0
  %464 = vmatpush1.msra.mxu0 0.0
  %465 = vmatprep.subr.mxu0 0.0
  %466 = vmatpush1.msra.mxu0 0.0
  %467 = vmatprep.subr.mxu0 0.0
  %468 = vmatpush1.msra.mxu0 0.0
  %469 = vmatprep.subr.mxu0 0.0
  %470 = vmatpush1.msra.mxu0 0.0
  %471 = vmatprep.subr.mxu0 0.0
  %472 = vmatpush1.msra.mxu0 0.0
  %473 = vmatprep.mubr.f32.mxu0 0.0
  %474 = vmatmul.mubr.f32.gmra.mrb[0].mxu0 %v407
  %v475 = vpop.f32.mrb[0].mxu0
  %v476 = vadd.f32 %v404, %v475
  %v477 = vpop.f32.mrb[0].mxu0
  %478 = vdwg.mxu0
  %479 = vst.msk [vmem:[%s9] sm:$0xff] %vm141, %v476
  %v480 = vsel %vm141, %v476, -inf
  %481 = vmax.xlane.f32.xlu0 %v480
  %v482 = vpop.xlane.xlu0 %481
  %vm483 = vcmp.ge.f32.partialorder %v476, %v482
  %v484 = vsel %vm483, %v139, 16
  %v485 = vsel %vm141, %v484, 2147483647
  %v486 = vand.u32 %v485, 65535
  %v487 = vshra.s32 %v485, 16
  %v488 = vcvt.s32.f32 %v486
  %v489 = vcvt.s32.f32 %v487
  %490 = vmin.xlane.f32.xlu0 %v489
  %v491 = vpop.xlane.xlu0 %490
  %vm492 = vcmp.eq.f32.partialorder %v489, %v491
  %v493 = vsel %vm492, %v488, inf
  %494 = vmin.xlane.f32.xlu0 %v493
  %v495 = vpop.xlane.xlu0 %494
  %v496 = vcvt.f32.s32 %v495
  %v497 = vcvt.f32.s32 %v491
  %v498 = vshll.u32 %v497, 16
  %v499 = vadd.s32 %v498, %v496
  %s500 = scalar_lea.vmem %s0, 8
  %v501 = vld [vmem:[%s500] sm:$0xff]
  %v503 = vsel %vm141, %v501, 0
  %505 = vmatprep.subr.mxu0 0.0
  %506 = vmatpush1.msra.mxu0 %v35
  %507 = vmatprep.subr.mxu0 0.0
  %508 = vmatpush1.msra.mxu0 %v36
  %509 = vmatprep.subr.mxu0 0.0
  %510 = vmatpush1.msra.mxu0 0.0
  %511 = vmatprep.subr.mxu0 0.0
  %512 = vmatpush1.msra.mxu0 0.0
  %513 = vmatprep.subr.mxu0 0.0
  %514 = vmatpush1.msra.mxu0 0.0
  %515 = vmatprep.subr.mxu0 0.0
  %516 = vmatpush1.msra.mxu0 0.0
  %517 = vmatprep.subr.mxu0 0.0
  %518 = vmatpush1.msra.mxu0 0.0
  %519 = vmatprep.subr.mxu0 0.0
  %520 = vmatpush1.msra.mxu0 0.0
  %521 = vmatprep.subr.mxu0 0.0
  %522 = vmatpush1.msra.mxu0 0.0
  %523 = vmatprep.subr.mxu0 0.0
  %524 = vmatpush1.msra.mxu0 0.0
  %525 = vmatprep.subr.mxu0 0.0
  %526 = vmatpush1.msra.mxu0 0.0
  %527 = vmatprep.subr.mxu0 0.0
  %528 = vmatpush1.msra.mxu0 0.0
  %529 = vmatprep.subr.mxu0 0.0
  %530 = vmatpush1.msra.mxu0 0.0
  %531 = vmatprep.subr.mxu0 0.0
  %532 = vmatpush1.msra.mxu0 0.0
  %533 = vmatprep.subr.mxu0 0.0
  %534 = vmatpush1.msra.mxu0 0.0
  %535 = vmatprep.subr.mxu0 0.0
  %536 = vmatpush1.msra.mxu0 0.0
  %537 = vmatprep.subr.mxu0 0.0
  %538 = vmatpush1.msra.mxu0 0.0
  %539 = vmatprep.subr.mxu0 0.0
  %540 = vmatpush1.msra.mxu0 0.0
  %541 = vmatprep.subr.mxu0 0.0
  %542 = vmatpush1.msra.mxu0 0.0
  %543 = vmatprep.subr.mxu0 0.0
  %544 = vmatpush1.msra.mxu0 0.0
  %545 = vmatprep.subr.mxu0 0.0
  %546 = vmatpush1.msra.mxu0 0.0
  %547 = vmatprep.subr.mxu0 0.0
  %548 = vmatpush1.msra.mxu0 0.0
  %549 = vmatprep.subr.mxu0 0.0
  %550 = vmatpush1.msra.mxu0 0.0
  %551 = vmatprep.subr.mxu0 0.0
  %552 = vmatpush1.msra.mxu0 0.0
  %553 = vmatprep.subr.mxu0 0.0
  %554 = vmatpush1.msra.mxu0 0.0
  %555 = vmatprep.subr.mxu0 0.0
  %556 = vmatpush1.msra.mxu0 0.0
  %557 = vmatprep.subr.mxu0 0.0
  %558 = vmatpush1.msra.mxu0 0.0
  %559 = vmatprep.subr.mxu0 0.0
  %560 = vmatpush1.msra.mxu0 0.0
  %561 = vmatprep.subr.mxu0 0.0
  %562 = vmatpush1.msra.mxu0 0.0
  %563 = vmatprep.subr.mxu0 0.0
  %564 = vmatpush1.msra.mxu0 0.0
  %565 = vmatprep.subr.mxu0 0.0
  %566 = vmatpush1.msra.mxu0 0.0
  %567 = vmatprep.subr.mxu0 0.0
  %568 = vmatpush1.msra.mxu0 0.0
  %569 = vmatprep.mubr.f32.mxu0 0.0
  %570 = vmatmul.mubr.f32.gmra.mrb[0].mxu0 %v503
  %v571 = vpop.f32.mrb[0].mxu0
  %v572 = vadd.f32 0.0, %v571
  %v573 = vpop.f32.mrb[0].mxu0
  %574 = vdwg.mxu0
  %v575 = vadd.f32 %v572, %v125
  %576 = vmatprep.subr.mxu0 0.0
  %577 = vmatpush1.msra.mxu0 %v37
  %578 = vmatprep.subr.mxu0 0.0
  %579 = vmatpush1.msra.mxu0 %v38
  %580 = vmatprep.subr.mxu0 0.0
  %581 = vmatpush1.msra.mxu0 %v39
  %582 = vmatprep.subr.mxu0 0.0
  %583 = vmatpush1.msra.mxu0 %v40
  %584 = vmatprep.subr.mxu0 0.0
  %585 = vmatpush1.msra.mxu0 0.0
  %586 = vmatprep.subr.mxu0 0.0
  %587 = vmatpush1.msra.mxu0 0.0
  %588 = vmatprep.subr.mxu0 0.0
  %589 = vmatpush1.msra.mxu0 0.0
  %590 = vmatprep.subr.mxu0 0.0
  %591 = vmatpush1.msra.mxu0 0.0
  %592 = vmatprep.subr.mxu0 0.0
  %593 = vmatpush1.msra.mxu0 0.0
  %594 = vmatprep.subr.mxu0 0.0
  %595 = vmatpush1.msra.mxu0 0.0
  %596 = vmatprep.subr.mxu0 0.0
  %597 = vmatpush1.msra.mxu0 0.0
  %598 = vmatprep.subr.mxu0 0.0
  %599 = vmatpush1.msra.mxu0 0.0
  %600 = vmatprep.subr.mxu0 0.0
  %601 = vmatpush1.msra.mxu0 0.0
  %602 = vmatprep.subr.mxu0 0.0
  %603 = vmatpush1.msra.mxu0 0.0
  %604 = vmatprep.subr.mxu0 0.0
  %605 = vmatpush1.msra.mxu0 0.0
  %606 = vmatprep.subr.mxu0 0.0
  %607 = vmatpush1.msra.mxu0 0.0
  %608 = vmatprep.subr.mxu0 0.0
  %609 = vmatpush1.msra.mxu0 0.0
  %610 = vmatprep.subr.mxu0 0.0
  %611 = vmatpush1.msra.mxu0 0.0
  %612 = vmatprep.subr.mxu0 0.0
  %613 = vmatpush1.msra.mxu0 0.0
  %614 = vmatprep.subr.mxu0 0.0
  %615 = vmatpush1.msra.mxu0 0.0
  %616 = vmatprep.subr.mxu0 0.0
  %617 = vmatpush1.msra.mxu0 0.0
  %618 = vmatprep.subr.mxu0 0.0
  %619 = vmatpush1.msra.mxu0 0.0
  %620 = vmatprep.subr.mxu0 0.0
  %621 = vmatpush1.msra.mxu0 0.0
  %622 = vmatprep.subr.mxu0 0.0
  %623 = vmatpush1.msra.mxu0 0.0
  %624 = vmatprep.subr.mxu0 0.0
  %625 = vmatpush1.msra.mxu0 0.0
  %626 = vmatprep.subr.mxu0 0.0
  %627 = vmatpush1.msra.mxu0 0.0
  %628 = vmatprep.subr.mxu0 0.0
  %629 = vmatpush1.msra.mxu0 0.0
  %630 = vmatprep.subr.mxu0 0.0
  %631 = vmatpush1.msra.mxu0 0.0
  %632 = vmatprep.subr.mxu0 0.0
  %633 = vmatpush1.msra.mxu0 0.0
  %634 = vmatprep.subr.mxu0 0.0
  %635 = vmatpush1.msra.mxu0 0.0
  %636 = vmatprep.subr.mxu0 0.0
  %637 = vmatpush1.msra.mxu0 0.0
  %638 = vmatprep.subr.mxu0 0.0
  %639 = vmatpush1.msra.mxu0 0.0
  %640 = vmatprep.mubr.f32.mxu0 0.0
  %641 = vmatmul.mubr.f32.gmra.mrb[0].mxu0 %v322
  %v642 = vpop.f32.mrb[0].mxu0
  %v643 = vadd.f32 0.0, %v642
  %v644 = vpop.f32.mrb[0].mxu0
  %645 = vdwg.mxu0
  %v646 = vadd.f32 %v575, %v643
  %v647 = vxor.u32 %v646, 2147483648
  %v648 = vmul.f32 %v647, 1.442695
  %v649 = vpow.pop %v648
  %v650 = vadd.f32 %v649, 1.0
  %v651 = vrcp.pop %v650
  %v652 = vmul.f32 1.0, %v651
  %654 = vrot.lane.b32.xlu0 %v643, 64
  %v655 = vpop.permute.xlu0 %654
  %v657 = vmul.f32 %v652, %v655
  %659 = vrot.lane.b32.xlu0 %v657, 64
  %v660 = vpop.permute.xlu0 %659
  %v662 = vadd.f32 %v575, %v660
  %v663 = vtanh.pop %v662
  %v664 = vsub.f32 1.0, %v652
  %666 = vrot.lane.b32.xlu0 %v663, 96
  %v667 = vpop.permute.xlu0 %666
  %v669 = vmul.f32 %v664, %v667
  %v670 = vmul.f32 %v652, %v314
  %v671 = vadd.f32 %v669, %v670
  %673 = vrot.lane.b32.xlu0 %v671, 96
  %v674 = vpop.permute.xlu0 %673
  %676 = vrot.lane.b32.xlu0 %v572, 32
  %v677 = vpop.permute.xlu0 %676
  %v679 = vsel %vm54, %v674, 0
  %681 = vmatprep.subr.mxu0 0.0
  %682 = vmatpush1.msra.mxu0 %v41
  %683 = vmatprep.subr.mxu0 0.0
  %684 = vmatpush1.msra.mxu0 %v42
  %685 = vmatprep.subr.mxu0 0.0
  %686 = vmatpush1.msra.mxu0 %v43
  %687 = vmatprep.subr.mxu0 0.0
  %688 = vmatpush1.msra.mxu0 %v44
  %689 = vmatprep.subr.mxu0 0.0
  %690 = vmatpush1.msra.mxu0 0.0
  %691 = vmatprep.subr.mxu0 0.0
  %692 = vmatpush1.msra.mxu0 0.0
  %693 = vmatprep.subr.mxu0 0.0
  %694 = vmatpush1.msra.mxu0 0.0
  %695 = vmatprep.subr.mxu0 0.0
  %696 = vmatpush1.msra.mxu0 0.0
  %697 = vmatprep.subr.mxu0 0.0
  %698 = vmatpush1.msra.mxu0 0.0
  %699 = vmatprep.subr.mxu0 0.0
  %700 = vmatpush1.msra.mxu0 0.0
  %701 = vmatprep.subr.mxu0 0.0
  %702 = vmatpush1.msra.mxu0 0.0
  %703 = vmatprep.subr.mxu0 0.0
  %704 = vmatpush1.msra.mxu0 0.0
  %705 = vmatprep.subr.mxu0 0.0
  %706 = vmatpush1.msra.mxu0 0.0
  %707 = vmatprep.subr.mxu0 0.0
  %708 = vmatpush1.msra.mxu0 0.0
  %709 = vmatprep.subr.mxu0 0.0
  %710 = vmatpush1.msra.mxu0 0.0
  %711 = vmatprep.subr.mxu0 0.0
  %712 = vmatpush1.msra.mxu0 0.0
  %713 = vmatprep.subr.mxu0 0.0
  %714 = vmatpush1.msra.mxu0 0.0
  %715 = vmatprep.subr.mxu0 0.0
  %716 = vmatpush1.msra.mxu0 0.0
  %717 = vmatprep.subr.mxu0 0.0
  %718 = vmatpush1.msra.mxu0 0.0
  %719 = vmatprep.subr.mxu0 0.0
  %720 = vmatpush1.msra.mxu0 0.0
  %721 = vmatprep.subr.mxu0 0.0
  %722 = vmatpush1.msra.mxu0 0.0
  %723 = vmatprep.subr.mxu0 0.0
  %724 = vmatpush1.msra.mxu0 0.0
  %725 = vmatprep.subr.mxu0 0.0
  %726 = vmatpush1.msra.mxu0 0.0
  %727 = vmatprep.subr.mxu0 0.0
  %728 = vmatpush1.msra.mxu0 0.0
  %729 = vmatprep.subr.mxu0 0.0
  %730 = vmatpush1.msra.mxu0 0.0
  %731 = vmatprep.subr.mxu0 0.0
  %732 = vmatpush1.msra.mxu0 0.0
  %733 = vmatprep.subr.mxu0 0.0
  %734 = vmatpush1.msra.mxu0 0.0
  %735 = vmatprep.subr.mxu0 0.0
  %736 = vmatpush1.msra.mxu0 0.0
  %737 = vmatprep.subr.mxu0 0.0
  %738 = vmatpush1.msra.mxu0 0.0
  %739 = vmatprep.subr.mxu0 0.0
  %740 = vmatpush1.msra.mxu0 0.0
  %741 = vmatprep.subr.mxu0 0.0
  %742 = vmatpush1.msra.mxu0 0.0
  %743 = vmatprep.subr.mxu0 0.0
  %744 = vmatpush1.msra.mxu0 0.0
  %745 = vmatprep.mubr.f32.mxu0 0.0
  %746 = vmatmul.mubr.f32.gmra.mrb[0].mxu0 %v679
  %v747 = vpop.f32.mrb[0].mxu0
  %v748 = vadd.f32 %v677, %v747
  %v749 = vpop.f32.mrb[0].mxu0
  %750 = vdwg.mxu0
  %v751 = vadd.f32 %v748, %v396
  %v752 = vtanh.pop %v751
  %v754 = vsel %vm54, %v752, 0
  %756 = vmatprep.subr.mxu0 0.0
  %757 = vmatpush1.msra.mxu0 %v45
  %758 = vmatprep.subr.mxu0 0.0
  %759 = vmatpush1.msra.mxu0 %v46
  %760 = vmatprep.subr.mxu0 0.0
  %761 = vmatpush1.msra.mxu0 %v47
  %762 = vmatprep.subr.mxu0 0.0
  %763 = vmatpush1.msra.mxu0 %v48
  %764 = vmatprep.subr.mxu0 0.0
  %765 = vmatpush1.msra.mxu0 0.0
  %766 = vmatprep.subr.mxu0 0.0
  %767 = vmatpush1.msra.mxu0 0.0
  %768 = vmatprep.subr.mxu0 0.0
  %769 = vmatpush1.msra.mxu0 0.0
  %770 = vmatprep.subr.mxu0 0.0
  %771 = vmatpush1.msra.mxu0 0.0
  %772 = vmatprep.subr.mxu0 0.0
  %773 = vmatpush1.msra.mxu0 0.0
  %774 = vmatprep.subr.mxu0 0.0
  %775 = vmatpush1.msra.mxu0 0.0
  %776 = vmatprep.subr.mxu0 0.0
  %777 = vmatpush1.msra.mxu0 0.0
  %778 = vmatprep.subr.mxu0 0.0
  %779 = vmatpush1.msra.mxu0 0.0
  %780 = vmatprep.subr.mxu0 0.0
  %781 = vmatpush1.msra.mxu0 0.0
  %782 = vmatprep.subr.mxu0 0.0
  %783 = vmatpush1.msra.mxu0 0.0
  %784 = vmatprep.subr.mxu0 0.0
  %785 = vmatpush1.msra.mxu0 0.0
  %786 = vmatprep.subr.mxu0 0.0
  %787 = vmatpush1.msra.mxu0 0.0
  %788 = vmatprep.subr.mxu0 0.0
  %789 = vmatpush1.msra.mxu0 0.0
  %790 = vmatprep.subr.mxu0 0.0
  %791 = vmatpush1.msra.mxu0 0.0
  %792 = vmatprep.subr.mxu0 0.0
  %793 = vmatpush1.msra.mxu0 0.0
  %794 = vmatprep.subr.mxu0 0.0
  %795 = vmatpush1.msra.mxu0 0.0
  %796 = vmatprep.subr.mxu0 0.0
  %797 = vmatpush1.msra.mxu0 0.0
  %798 = vmatprep.subr.mxu0 0.0
  %799 = vmatpush1.msra.mxu0 0.0
  %800 = vmatprep.subr.mxu0 0.0
  %801 = vmatpush1.msra.mxu0 0.0
  %802 = vmatprep.subr.mxu0 0.0
  %803 = vmatpush1.msra.mxu0 0.0
  %804 = vmatprep.subr.mxu0 0.0
  %805 = vmatpush1.msra.mxu0 0.0
  %806 = vmatprep.subr.mxu0 0.0
  %807 = vmatpush1.msra.mxu0 0.0
  %808 = vmatprep.subr.mxu0 0.0
  %809 = vmatpush1.msra.mxu0 0.0
  %810 = vmatprep.subr.mxu0 0.0
  %811 = vmatpush1.msra.mxu0 0.0
  %812 = vmatprep.subr.mxu0 0.0
  %813 = vmatpush1.msra.mxu0 0.0
  %814 = vmatprep.subr.mxu0 0.0
  %815 = vmatpush1.msra.mxu0 0.0
  %816 = vmatprep.subr.mxu0 0.0
  %817 = vmatpush1.msra.mxu0 0.0
  %818 = vmatprep.subr.mxu0 0.0
  %819 = vmatpush1.msra.mxu0 0.0
  %820 = vmatprep.mubr.f32.mxu0 0.0
  %821 = vmatmul.mubr.f32.gmra.mrb[0].mxu0 %v754
  %v822 = vpop.f32.mrb[0].mxu0
  %v823 = vadd.f32 %v404, %v822
  %v824 = vpop.f32.mrb[0].mxu0
  %825 = vdwg.mxu0
  %s826 = scalar_lea.vmem %s9, 8
  %827 = vst.msk [vmem:[%s826] sm:$0xff] %vm141, %v823
  %v828 = vsel %vm141, %v823, -inf
  %829 = vmax.xlane.f32.xlu0 %v828
  %v830 = vpop.xlane.xlu0 %829
  %vm831 = vcmp.ge.f32.partialorder %v823, %v830
  %v832 = vsel %vm831, %v139, 16
  %v833 = vsel %vm141, %v832, 2147483647
  %v834 = vand.u32 %v833, 65535
  %v835 = vshra.s32 %v833, 16
  %v836 = vcvt.s32.f32 %v834
  %v837 = vcvt.s32.f32 %v835
  %838 = vmin.xlane.f32.xlu0 %v837
  %v839 = vpop.xlane.xlu0 %838
  %vm840 = vcmp.eq.f32.partialorder %v837, %v839
  %v841 = vsel %vm840, %v836, inf
  %842 = vmin.xlane.f32.xlu0 %v841
  %v843 = vpop.xlane.xlu0 %842
  %v844 = vcvt.f32.s32 %v843
  %v845 = vcvt.f32.s32 %v839
  %v846 = vshll.u32 %v845, 16
  %v847 = vadd.s32 %v846, %v844
  %s848 = scalar_lea.vmem %s0, 16
  %v849 = vld [vmem:[%s848] sm:$0xff]
  %v851 = vsel %vm141, %v849, 0
  %853 = vmatprep.subr.mxu0 0.0
  %854 = vmatpush1.msra.mxu0 %v35
  %855 = vmatprep.subr.mxu0 0.0
  %856 = vmatpush1.msra.mxu0 %v36
  %857 = vmatprep.subr.mxu0 0.0
  %858 = vmatpush1.msra.mxu0 0.0
  %859 = vmatprep.subr.mxu0 0.0
  %860 = vmatpush1.msra.mxu0 0.0
  %861 = vmatprep.subr.mxu0 0.0
  %862 = vmatpush1.msra.mxu0 0.0
  %863 = vmatprep.subr.mxu0 0.0
  %864 = vmatpush1.msra.mxu0 0.0
  %865 = vmatprep.subr.mxu0 0.0
  %866 = vmatpush1.msra.mxu0 0.0
  %867 = vmatprep.subr.mxu0 0.0
  %868 = vmatpush1.msra.mxu0 0.0
  %869 = vmatprep.subr.mxu0 0.0
  %870 = vmatpush1.msra.mxu0 0.0
  %871 = vmatprep.subr.mxu0 0.0
  %872 = vmatpush1.msra.mxu0 0.0
  %873 = vmatprep.subr.mxu0 0.0
  %874 = vmatpush1.msra.mxu0 0.0
  %875 = vmatprep.subr.mxu0 0.0
  %876 = vmatpush1.msra.mxu0 0.0
  %877 = vmatprep.subr.mxu0 0.0
  %878 = vmatpush1.msra.mxu0 0.0
  %879 = vmatprep.subr.mxu0 0.0
  %880 = vmatpush1.msra.mxu0 0.0
  %881 = vmatprep.subr.mxu0 0.0
  %882 = vmatpush1.msra.mxu0 0.0
  %883 = vmatprep.subr.mxu0 0.0
  %884 = vmatpush1.msra.mxu0 0.0
  %885 = vmatprep.subr.mxu0 0.0
  %886 = vmatpush1.msra.mxu0 0.0
  %887 = vmatprep.subr.mxu0 0.0
  %888 = vmatpush1.msra.mxu0 0.0
  %889 = vmatprep.subr.mxu0 0.0
  %890 = vmatpush1.msra.mxu0 0.0
  %891 = vmatprep.subr.mxu0 0.0
  %892 = vmatpush1.msra.mxu0 0.0
  %893 = vmatprep.subr.mxu0 0.0
  %894 = vmatpush1.msra.mxu0 0.0
  %895 = vmatprep.subr.mxu0 0.0
  %896 = vmatpush1.msra.mxu0 0.0
  %897 = vmatprep.subr.mxu0 0.0
  %898 = vmatpush1.msra.mxu0 0.0
  %899 = vmatprep.subr.mxu0 0.0
  %900 = vmatpush1.msra.mxu0 0.0
  %901 = vmatprep.subr.mxu0 0.0
  %902 = vmatpush1.msra.mxu0 0.0
  %903 = vmatprep.subr.mxu0 0.0
  %904 = vmatpush1.msra.mxu0 0.0
  %905 = vmatprep.subr.mxu0 0.0
  %906 = vmatpush1.msra.mxu0 0.0
  %907 = vmatprep.subr.mxu0 0.0
  %908 = vmatpush1.msra.mxu0 0.0
  %909 = vmatprep.subr.mxu0 0.0
  %910 = vmatpush1.msra.mxu0 0.0
  %911 = vmatprep.subr.mxu0 0.0
  %912 = vmatpush1.msra.mxu0 0.0
  %913 = vmatprep.subr.mxu0 0.0
  %914 = vmatpush1.msra.mxu0 0.0
  %915 = vmatprep.subr.mxu0 0.0
  %916 = vmatpush1.msra.mxu0 0.0
  %917 = vmatprep.mubr.f32.mxu0 0.0
  %918 = vmatmul.mubr.f32.gmra.mrb[0].mxu0 %v851
  %v919 = vpop.f32.mrb[0].mxu0
  %v920 = vadd.f32 0.0, %v919
  %v921 = vpop.f32.mrb[0].mxu0
  %922 = vdwg.mxu0
  %v923 = vadd.f32 %v920, %v125
  %924 = vmatprep.subr.mxu0 0.0
  %925 = vmatpush1.msra.mxu0 %v37
  %926 = vmatprep.subr.mxu0 0.0
  %927 = vmatpush1.msra.mxu0 %v38
  %928 = vmatprep.subr.mxu0 0.0
  %929 = vmatpush1.msra.mxu0 %v39
  %930 = vmatprep.subr.mxu0 0.0
  %931 = vmatpush1.msra.mxu0 %v40
  %932 = vmatprep.subr.mxu0 0.0
  %933 = vmatpush1.msra.mxu0 0.0
  %934 = vmatprep.subr.mxu0 0.0
  %935 = vmatpush1.msra.mxu0 0.0
  %936 = vmatprep.subr.mxu0 0.0
  %937 = vmatpush1.msra.mxu0 0.0
  %938 = vmatprep.subr.mxu0 0.0
  %939 = vmatpush1.msra.mxu0 0.0
  %940 = vmatprep.subr.mxu0 0.0
  %941 = vmatpush1.msra.mxu0 0.0
  %942 = vmatprep.subr.mxu0 0.0
  %943 = vmatpush1.msra.mxu0 0.0
  %944 = vmatprep.subr.mxu0 0.0
  %945 = vmatpush1.msra.mxu0 0.0
  %946 = vmatprep.subr.mxu0 0.0
  %947 = vmatpush1.msra.mxu0 0.0
  %948 = vmatprep.subr.mxu0 0.0
  %949 = vmatpush1.msra.mxu0 0.0
  %950 = vmatprep.subr.mxu0 0.0
  %951 = vmatpush1.msra.mxu0 0.0
  %952 = vmatprep.subr.mxu0 0.0
  %953 = vmatpush1.msra.mxu0 0.0
  %954 = vmatprep.subr.mxu0 0.0
  %955 = vmatpush1.msra.mxu0 0.0
  %956 = vmatprep.subr.mxu0 0.0
  %957 = vmatpush1.msra.mxu0 0.0
  %958 = vmatprep.subr.mxu0 0.0
  %959 = vmatpush1.msra.mxu0 0.0
  %960 = vmatprep.subr.mxu0 0.0
  %961 = vmatpush1.msra.mxu0 0.0
  %962 = vmatprep.subr.mxu0 0.0
  %963 = vmatpush1.msra.mxu0 0.0
  %964 = vmatprep.subr.mxu0 0.0
  %965 = vmatpush1.msra.mxu0 0.0
  %966 = vmatprep.subr.mxu0 0.0
  %967 = vmatpush1.msra.mxu0 0.0
  %968 = vmatprep.subr.mxu0 0.0
  %969 = vmatpush1.msra.mxu0 0.0
  %970 = vmatprep.subr.mxu0 0.0
  %971 = vmatpush1.msra.mxu0 0.0
  %972 = vmatprep.subr.mxu0 0.0
  %973 = vmatpush1.msra.mxu0 0.0
  %974 = vmatprep.subr.mxu0 0.0
  %975 = vmatpush1.msra.mxu0 0.0
  %976 = vmatprep.subr.mxu0 0.0
  %977 = vmatpush1.msra.mxu0 0.0
  %978 = vmatprep.subr.mxu0 0.0
  %979 = vmatpush1.msra.mxu0 0.0
  %980 = vmatprep.subr.mxu0 0.0
  %981 = vmatpush1.msra.mxu0 0.0
  %982 = vmatprep.subr.mxu0 0.0
  %983 = vmatpush1.msra.mxu0 0.0
  %984 = vmatprep.subr.mxu0 0.0
  %985 = vmatpush1.msra.mxu0 0.0
  %986 = vmatprep.subr.mxu0 0.0
  %987 = vmatpush1.msra.mxu0 0.0
  %988 = vmatprep.mubr.f32.mxu0 0.0
  %989 = vmatmul.mubr.f32.gmra.mrb[0].mxu0 %v679
  %v990 = vpop.f32.mrb[0].mxu0
  %v991 = vadd.f32 0.0, %v990
  %v992 = vpop.f32.mrb[0].mxu0
  %993 = vdwg.mxu0
  %v994 = vadd.f32 %v923, %v991
  %v995 = vxor.u32 %v994, 2147483648
  %v996 = vmul.f32 %v995, 1.442695
  %v997 = vpow.pop %v996
  %v998 = vadd.f32 %v997, 1.0
  %v999 = vrcp.pop %v998
  %v1000 = vmul.f32 1.0, %v999
  %1002 = vrot.lane.b32.xlu0 %v991, 64
  %v1003 = vpop.permute.xlu0 %1002
  %v1005 = vmul.f32 %v1000, %v1003
  %1007 = vrot.lane.b32.xlu0 %v1005, 64
  %v1008 = vpop.permute.xlu0 %1007
  %v1010 = vadd.f32 %v923, %v1008
  %v1011 = vtanh.pop %v1010
  %v1012 = vsub.f32 1.0, %v1000
  %1014 = vrot.lane.b32.xlu0 %v1011, 96
  %v1015 = vpop.permute.xlu0 %1014
  %v1017 = vmul.f32 %v1012, %v1015
  %v1018 = vmul.f32 %v1000, %v671
  %v1019 = vadd.f32 %v1017, %v1018
  %1021 = vrot.lane.b32.xlu0 %v1019, 96
  %v1022 = vpop.permute.xlu0 %1021
  %1024 = vrot.lane.b32.xlu0 %v920, 32
  %v1025 = vpop.permute.xlu0 %1024
  %v1027 = vsel %vm54, %v1022, 0
  %1029 = vmatprep.subr.mxu0 0.0
  %1030 = vmatpush1.msra.mxu0 %v41
  %1031 = vmatprep.subr.mxu0 0.0
  %1032 = vmatpush1.msra.mxu0 %v42
  %1033 = vmatprep.subr.mxu0 0.0
  %1034 = vmatpush1.msra.mxu0 %v43
  %1035 = vmatprep.subr.mxu0 0.0
  %1036 = vmatpush1.msra.mxu0 %v44
  %1037 = vmatprep.subr.mxu0 0.0
  %1038 = vmatpush1.msra.mxu0 0.0
  %1039 = vmatprep.subr.mxu0 0.0
  %1040 = vmatpush1.msra.mxu0 0.0
  %1041 = vmatprep.subr.mxu0 0.0
  %1042 = vmatpush1.msra.mxu0 0.0
  %1043 = vmatprep.subr.mxu0 0.0
  %1044 = vmatpush1.msra.mxu0 0.0
  %1045 = vmatprep.subr.mxu0 0.0
  %1046 = vmatpush1.msra.mxu0 0.0
  %1047 = vmatprep.subr.mxu0 0.0
  %1048 = vmatpush1.msra.mxu0 0.0
  %1049 = vmatprep.subr.mxu0 0.0
  %1050 = vmatpush1.msra.mxu0 0.0
  %1051 = vmatprep.subr.mxu0 0.0
  %1052 = vmatpush1.msra.mxu0 0.0
  %1053 = vmatprep.subr.mxu0 0.0
  %1054 = vmatpush1.msra.mxu0 0.0
  %1055 = vmatprep.subr.mxu0 0.0
  %1056 = vmatpush1.msra.mxu0 0.0
  %1057 = vmatprep.subr.mxu0 0.0
  %1058 = vmatpush1.msra.mxu0 0.0
  %1059 = vmatprep.subr.mxu0 0.0
  %1060 = vmatpush1.msra.mxu0 0.0
  %1061 = vmatprep.subr.mxu0 0.0
  %1062 = vmatpush1.msra.mxu0 0.0
  %1063 = vmatprep.subr.mxu0 0.0
  %1064 = vmatpush1.msra.mxu0 0.0
  %1065 = vmatprep.subr.mxu0 0.0
  %1066 = vmatpush1.msra.mxu0 0.0
  %1067 = vmatprep.subr.mxu0 0.0
  %1068 = vmatpush1.msra.mxu0 0.0
  %1069 = vmatprep.subr.mxu0 0.0
  %1070 = vmatpush1.msra.mxu0 0.0
  %1071 = vmatprep.subr.mxu0 0.0
  %1072 = vmatpush1.msra.mxu0 0.0
  %1073 = vmatprep.subr.mxu0 0.0
  %1074 = vmatpush1.msra.mxu0 0.0
  %1075 = vmatprep.subr.mxu0 0.0
  %1076 = vmatpush1.msra.mxu0 0.0
  %1077 = vmatprep.subr.mxu0 0.0
  %1078 = vmatpush1.msra.mxu0 0.0
  %1079 = vmatprep.subr.mxu0 0.0
  %1080 = vmatpush1.msra.mxu0 0.0
  %1081 = vmatprep.subr.mxu0 0.0
  %1082 = vmatpush1.msra.mxu0 0.0
  %1083 = vmatprep.subr.mxu0 0.0
  %1084 = vmatpush1.msra.mxu0 0.0
  %1085 = vmatprep.subr.mxu0 0.0
  %1086 = vmatpush1.msra.mxu0 0.0
  %1087 = vmatprep.subr.mxu0 0.0
  %1088 = vmatpush1.msra.mxu0 0.0
  %1089 = vmatprep.subr.mxu0 0.0
  %1090 = vmatpush1.msra.mxu0 0.0
  %1091 = vmatprep.subr.mxu0 0.0
  %1092 = vmatpush1.msra.mxu0 0.0
  %1093 = vmatprep.mubr.f32.mxu0 0.0
  %1094 = vmatmul.mubr.f32.gmra.mrb[0].mxu0 %v1027
  %v1095 = vpop.f32.mrb[0].mxu0
  %v1096 = vadd.f32 %v1025, %v1095
  %v1097 = vpop.f32.mrb[0].mxu0
  %1098 = vdwg.mxu0
  %v1099 = vadd.f32 %v1096, %v396
  %v1100 = vtanh.pop %v1099
  %v1102 = vsel %vm54, %v1100, 0
  %1104 = vmatprep.subr.mxu0 0.0
  %1105 = vmatpush1.msra.mxu0 %v45
  %1106 = vmatprep.subr.mxu0 0.0
  %1107 = vmatpush1.msra.mxu0 %v46
  %1108 = vmatprep.subr.mxu0 0.0
  %1109 = vmatpush1.msra.mxu0 %v47
  %1110 = vmatprep.subr.mxu0 0.0
  %1111 = vmatpush1.msra.mxu0 %v48
  %1112 = vmatprep.subr.mxu0 0.0
  %1113 = vmatpush1.msra.mxu0 0.0
  %1114 = vmatprep.subr.mxu0 0.0
  %1115 = vmatpush1.msra.mxu0 0.0
  %1116 = vmatprep.subr.mxu0 0.0
  %1117 = vmatpush1.msra.mxu0 0.0
  %1118 = vmatprep.subr.mxu0 0.0
  %1119 = vmatpush1.msra.mxu0 0.0
  %1120 = vmatprep.subr.mxu0 0.0
  %1121 = vmatpush1.msra.mxu0 0.0
  %1122 = vmatprep.subr.mxu0 0.0
  %1123 = vmatpush1.msra.mxu0 0.0
  %1124 = vmatprep.subr.mxu0 0.0
  %1125 = vmatpush1.msra.mxu0 0.0
  %1126 = vmatprep.subr.mxu0 0.0
  %1127 = vmatpush1.msra.mxu0 0.0
  %1128 = vmatprep.subr.mxu0 0.0
  %1129 = vmatpush1.msra.mxu0 0.0
  %1130 = vmatprep.subr.mxu0 0.0
  %1131 = vmatpush1.msra.mxu0 0.0
  %1132 = vmatprep.subr.mxu0 0.0
  %1133 = vmatpush1.msra.mxu0 0.0
  %1134 = vmatprep.subr.mxu0 0.0
  %1135 = vmatpush1.msra.mxu0 0.0
  %1136 = vmatprep.subr.mxu0 0.0
  %1137 = vmatpush1.msra.mxu0 0.0
  %1138 = vmatprep.subr.mxu0 0.0
  %1139 = vmatpush1.msra.mxu0 0.0
  %1140 = vmatprep.subr.mxu0 0.0
  %1141 = vmatpush1.msra.mxu0 0.0
  %1142 = vmatprep.subr.mxu0 0.0
  %1143 = vmatpush1.msra.mxu0 0.0
  %1144 = vmatprep.subr.mxu0 0.0
  %1145 = vmatpush1.msra.mxu0 0.0
  %1146 = vmatprep.subr.mxu0 0.0
  %1147 = vmatpush1.msra.mxu0 0.0
  %1148 = vmatprep.subr.mxu0 0.0
  %1149 = vmatpush1.msra.mxu0 0.0
  %1150 = vmatprep.subr.mxu0 0.0
  %1151 = vmatpush1.msra.mxu0 0.0
  %1152 = vmatprep.subr.mxu0 0.0
  %1153 = vmatpush1.msra.mxu0 0.0
  %1154 = vmatprep.subr.mxu0 0.0
  %1155 = vmatpush1.msra.mxu0 0.0
  %1156 = vmatprep.subr.mxu0 0.0
  %1157 = vmatpush1.msra.mxu0 0.0
  %1158 = vmatprep.subr.mxu0 0.0
  %1159 = vmatpush1.msra.mxu0 0.0
  %1160 = vmatprep.subr.mxu0 0.0
  %1161 = vmatpush1.msra.mxu0 0.0
  %1162 = vmatprep.subr.mxu0 0.0
  %1163 = vmatpush1.msra.mxu0 0.0
  %1164 = vmatprep.subr.mxu0 0.0
  %1165 = vmatpush1.msra.mxu0 0.0
  %1166 = vmatprep.subr.mxu0 0.0
  %1167 = vmatpush1.msra.mxu0 0.0
  %1168 = vmatprep.mubr.f32.mxu0 0.0
  %1169 = vmatmul.mubr.f32.gmra.mrb[0].mxu0 %v1102
  %v1170 = vpop.f32.mrb[0].mxu0
  %v1171 = vadd.f32 %v404, %v1170
  %v1172 = vpop.f32.mrb[0].mxu0
  %1173 = vdwg.mxu0
  %s1174 = scalar_lea.vmem %s9, 16
  %1175 = vst.msk [vmem:[%s1174] sm:$0xff] %vm141, %v1171
  %v1176 = vsel %vm141, %v1171, -inf
  %1177 = vmax.xlane.f32.xlu0 %v1176
  %v1178 = vpop.xlane.xlu0 %1177
  %vm1179 = vcmp.ge.f32.partialorder %v1171, %v1178
  %v1180 = vsel %vm1179, %v139, 16
  %v1181 = vsel %vm141, %v1180, 2147483647
  %v1182 = vand.u32 %v1181, 65535
  %v1183 = vshra.s32 %v1181, 16
  %v1184 = vcvt.s32.f32 %v1182
  %v1185 = vcvt.s32.f32 %v1183
  %1186 = vmin.xlane.f32.xlu0 %v1185
  %v1187 = vpop.xlane.xlu0 %1186
  %vm1188 = vcmp.eq.f32.partialorder %v1185, %v1187
  %v1189 = vsel %vm1188, %v1184, inf
  %1190 = vmin.xlane.f32.xlu0 %v1189
  %v1191 = vpop.xlane.xlu0 %1190
  %v1192 = vcvt.f32.s32 %v1191
  %v1193 = vcvt.f32.s32 %v1187
  %v1194 = vshll.u32 %v1193, 16
  %v1195 = vadd.s32 %v1194, %v1192
  %s1196 = scalar_lea.vmem %s0, 24
  %v1197 = vld [vmem:[%s1196] sm:$0xff]
  %v1199 = vsel %vm141, %v1197, 0
  %1201 = vmatprep.subr.mxu0 0.0
  %1202 = vmatpush1.msra.mxu0 %v35
  %1203 = vmatprep.subr.mxu0 0.0
  %1204 = vmatpush1.msra.mxu0 %v36
  %1205 = vmatprep.subr.mxu0 0.0
  %1206 = vmatpush1.msra.mxu0 0.0
  %1207 = vmatprep.subr.mxu0 0.0
  %1208 = vmatpush1.msra.mxu0 0.0
  %1209 = vmatprep.subr.mxu0 0.0
  %1210 = vmatpush1.msra.mxu0 0.0
  %1211 = vmatprep.subr.mxu0 0.0
  %1212 = vmatpush1.msra.mxu0 0.0
  %1213 = vmatprep.subr.mxu0 0.0
  %1214 = vmatpush1.msra.mxu0 0.0
  %1215 = vmatprep.subr.mxu0 0.0
  %1216 = vmatpush1.msra.mxu0 0.0
  %1217 = vmatprep.subr.mxu0 0.0
  %1218 = vmatpush1.msra.mxu0 0.0
  %1219 = vmatprep.subr.mxu0 0.0
  %1220 = vmatpush1.msra.mxu0 0.0
  %1221 = vmatprep.subr.mxu0 0.0
  %1222 = vmatpush1.msra.mxu0 0.0
  %1223 = vmatprep.subr.mxu0 0.0
  %1224 = vmatpush1.msra.mxu0 0.0
  %1225 = vmatprep.subr.mxu0 0.0
  %1226 = vmatpush1.msra.mxu0 0.0
  %1227 = vmatprep.subr.mxu0 0.0
  %1228 = vmatpush1.msra.mxu0 0.0
  %1229 = vmatprep.subr.mxu0 0.0
  %1230 = vmatpush1.msra.mxu0 0.0
  %1231 = vmatprep.subr.mxu0 0.0
  %1232 = vmatpush1.msra.mxu0 0.0
  %1233 = vmatprep.subr.mxu0 0.0
  %1234 = vmatpush1.msra.mxu0 0.0
  %1235 = vmatprep.subr.mxu0 0.0
  %1236 = vmatpush1.msra.mxu0 0.0
  %1237 = vmatprep.subr.mxu0 0.0
  %1238 = vmatpush1.msra.mxu0 0.0
  %1239 = vmatprep.subr.mxu0 0.0
  %1240 = vmatpush1.msra.mxu0 0.0
  %1241 = vmatprep.subr.mxu0 0.0
  %1242 = vmatpush1.msra.mxu0 0.0
  %1243 = vmatprep.subr.mxu0 0.0
  %1244 = vmatpush1.msra.mxu0 0.0
  %1245 = vmatprep.subr.mxu0 0.0
  %1246 = vmatpush1.msra.mxu0 0.0
  %1247 = vmatprep.subr.mxu0 0.0
  %1248 = vmatpush1.msra.mxu0 0.0
  %1249 = vmatprep.subr.mxu0 0.0
  %1250 = vmatpush1.msra.mxu0 0.0
  %1251 = vmatprep.subr.mxu0 0.0
  %1252 = vmatpush1.msra.mxu0 0.0
  %1253 = vmatprep.subr.mxu0 0.0
  %1254 = vmatpush1.msra.mxu0 0.0
  %1255 = vmatprep.subr.mxu0 0.0
  %1256 = vmatpush1.msra.mxu0 0.0
  %1257 = vmatprep.subr.mxu0 0.0
  %1258 = vmatpush1.msra.mxu0 0.0
  %1259 = vmatprep.subr.mxu0 0.0
  %1260 = vmatpush1.msra.mxu0 0.0
  %1261 = vmatprep.subr.mxu0 0.0
  %1262 = vmatpush1.msra.mxu0 0.0
  %1263 = vmatprep.subr.mxu0 0.0
  %1264 = vmatpush1.msra.mxu0 0.0
  %1265 = vmatprep.mubr.f32.mxu0 0.0
  %1266 = vmatmul.mubr.f32.gmra.mrb[0].mxu0 %v1199
  %v1267 = vpop.f32.mrb[0].mxu0
  %v1268 = vadd.f32 0.0, %v1267
  %v1269 = vpop.f32.mrb[0].mxu0
  %1270 = vdwg.mxu0
  %v1271 = vadd.f32 %v1268, %v125
  %1272 = vmatprep.subr.mxu0 0.0
  %1273 = vmatpush1.msra.mxu0 %v37
  %1274 = vmatprep.subr.mxu0 0.0
  %1275 = vmatpush1.msra.mxu0 %v38
  %1276 = vmatprep.subr.mxu0 0.0
  %1277 = vmatpush1.msra.mxu0 %v39
  %1278 = vmatprep.subr.mxu0 0.0
  %1279 = vmatpush1.msra.mxu0 %v40
  %1280 = vmatprep.subr.mxu0 0.0
  %1281 = vmatpush1.msra.mxu0 0.0
  %1282 = vmatprep.subr.mxu0 0.0
  %1283 = vmatpush1.msra.mxu0 0.0
  %1284 = vmatprep.subr.mxu0 0.0
  %1285 = vmatpush1.msra.mxu0 0.0
  %1286 = vmatprep.subr.mxu0 0.0
  %1287 = vmatpush1.msra.mxu0 0.0
  %1288 = vmatprep.subr.mxu0 0.0
  %1289 = vmatpush1.msra.mxu0 0.0
  %1290 = vmatprep.subr.mxu0 0.0
  %1291 = vmatpush1.msra.mxu0 0.0
  %1292 = vmatprep.subr.mxu0 0.0
  %1293 = vmatpush1.msra.mxu0 0.0
  %1294 = vmatprep.subr.mxu0 0.0
  %1295 = vmatpush1.msra.mxu0 0.0
  %1296 = vmatprep.subr.mxu0 0.0
  %1297 = vmatpush1.msra.mxu0 0.0
  %1298 = vmatprep.subr.mxu0 0.0
  %1299 = vmatpush1.msra.mxu0 0.0
  %1300 = vmatprep.subr.mxu0 0.0
  %1301 = vmatpush1.msra.mxu0 0.0
  %1302 = vmatprep.subr.mxu0 0.0
  %1303 = vmatpush1.msra.mxu0 0.0
  %1304 = vmatprep.subr.mxu0 0.0
  %1305 = vmatpush1.msra.mxu0 0.0
  %1306 = vmatprep.subr.mxu0 0.0
  %1307 = vmatpush1.msra.mxu0 0.0
  %1308 = vmatprep.subr.mxu0 0.0
  %1309 = vmatpush1.msra.mxu0 0.0
  %1310 = vmatprep.subr.mxu0 0.0
  %1311 = vmatpush1.msra.mxu0 0.0
  %1312 = vmatprep.subr.mxu0 0.0
  %1313 = vmatpush1.msra.mxu0 0.0
  %1314 = vmatprep.subr.mxu0 0.0
  %1315 = vmatpush1.msra.mxu0 0.0
  %1316 = vmatprep.subr.mxu0 0.0
  %1317 = vmatpush1.msra.mxu0 0.0
  %1318 = vmatprep.subr.mxu0 0.0
  %1319 = vmatpush1.msra.mxu0 0.0
  %1320 = vmatprep.subr.mxu0 0.0
  %1321 = vmatpush1.msra.mxu0 0.0
  %1322 = vmatprep.subr.mxu0 0.0
  %1323 = vmatpush1.msra.mxu0 0.0
  %1324 = vmatprep.subr.mxu0 0.0
  %1325 = vmatpush1.msra.mxu0 0.0
  %1326 = vmatprep.subr.mxu0 0.0
  %1327 = vmatpush1.msra.mxu0 0.0
  %1328 = vmatprep.subr.mxu0 0.0
  %1329 = vmatpush1.msra.mxu0 0.0
  %1330 = vmatprep.subr.mxu0 0.0
  %1331 = vmatpush1.msra.mxu0 0.0
  %1332 = vmatprep.subr.mxu0 0.0
  %1333 = vmatpush1.msra.mxu0 0.0
  %1334 = vmatprep.subr.mxu0 0.0
  %1335 = vmatpush1.msra.mxu0 0.0
  %1336 = vmatprep.mubr.f32.mxu0 0.0
  %1337 = vmatmul.mubr.f32.gmra.mrb[0].mxu0 %v1027
  %v1338 = vpop.f32.mrb[0].mxu0
  %v1339 = vadd.f32 0.0, %v1338
  %v1340 = vpop.f32.mrb[0].mxu0
  %1341 = vdwg.mxu0
  %v1342 = vadd.f32 %v1271, %v1339
  %v1343 = vxor.u32 %v1342, 2147483648
  %v1344 = vmul.f32 %v1343, 1.442695
  %v1345 = vpow.pop %v1344
  %v1346 = vadd.f32 %v1345, 1.0
  %v1347 = vrcp.pop %v1346
  %v1348 = vmul.f32 1.0, %v1347
  %1350 = vrot.lane.b32.xlu0 %v1339, 64
  %v1351 = vpop.permute.xlu0 %1350
  %v1353 = vmul.f32 %v1348, %v1351
  %1355 = vrot.lane.b32.xlu0 %v1353, 64
  %v1356 = vpop.permute.xlu0 %1355
  %v1358 = vadd.f32 %v1271, %v1356
  %v1359 = vtanh.pop %v1358
  %v1360 = vsub.f32 1.0, %v1348
  %1362 = vrot.lane.b32.xlu0 %v1359, 96
  %v1363 = vpop.permute.xlu0 %1362
  %v1365 = vmul.f32 %v1360, %v1363
  %v1366 = vmul.f32 %v1348, %v1019
  %v1367 = vadd.f32 %v1365, %v1366
  %1369 = vrot.lane.b32.xlu0 %v1367, 96
  %v1370 = vpop.permute.xlu0 %1369
  %1372 = vrot.lane.b32.xlu0 %v1268, 32
  %v1373 = vpop.permute.xlu0 %1372
  %v1375 = vsel %vm54, %v1370, 0
  %1377 = vmatprep.subr.mxu0 0.0
  %1378 = vmatpush1.msra.mxu0 %v41
  %1379 = vmatprep.subr.mxu0 0.0
  %1380 = vmatpush1.msra.mxu0 %v42
  %1381 = vmatprep.subr.mxu0 0.0
  %1382 = vmatpush1.msra.mxu0 %v43
  %1383 = vmatprep.subr.mxu0 0.0
  %1384 = vmatpush1.msra.mxu0 %v44
  %1385 = vmatprep.subr.mxu0 0.0
  %1386 = vmatpush1.msra.mxu0 0.0
  %1387 = vmatprep.subr.mxu0 0.0
  %1388 = vmatpush1.msra.mxu0 0.0
  %1389 = vmatprep.subr.mxu0 0.0
  %1390 = vmatpush1.msra.mxu0 0.0
  %1391 = vmatprep.subr.mxu0 0.0
  %1392 = vmatpush1.msra.mxu0 0.0
  %1393 = vmatprep.subr.mxu0 0.0
  %1394 = vmatpush1.msra.mxu0 0.0
  %1395 = vmatprep.subr.mxu0 0.0
  %1396 = vmatpush1.msra.mxu0 0.0
  %1397 = vmatprep.subr.mxu0 0.0
  %1398 = vmatpush1.msra.mxu0 0.0
  %1399 = vmatprep.subr.mxu0 0.0
  %1400 = vmatpush1.msra.mxu0 0.0
  %1401 = vmatprep.subr.mxu0 0.0
  %1402 = vmatpush1.msra.mxu0 0.0
  %1403 = vmatprep.subr.mxu0 0.0
  %1404 = vmatpush1.msra.mxu0 0.0
  %1405 = vmatprep.subr.mxu0 0.0
  %1406 = vmatpush1.msra.mxu0 0.0
  %1407 = vmatprep.subr.mxu0 0.0
  %1408 = vmatpush1.msra.mxu0 0.0
  %1409 = vmatprep.subr.mxu0 0.0
  %1410 = vmatpush1.msra.mxu0 0.0
  %1411 = vmatprep.subr.mxu0 0.0
  %1412 = vmatpush1.msra.mxu0 0.0
  %1413 = vmatprep.subr.mxu0 0.0
  %1414 = vmatpush1.msra.mxu0 0.0
  %1415 = vmatprep.subr.mxu0 0.0
  %1416 = vmatpush1.msra.mxu0 0.0
  %1417 = vmatprep.subr.mxu0 0.0
  %1418 = vmatpush1.msra.mxu0 0.0
  %1419 = vmatprep.subr.mxu0 0.0
  %1420 = vmatpush1.msra.mxu0 0.0
  %1421 = vmatprep.subr.mxu0 0.0
  %1422 = vmatpush1.msra.mxu0 0.0
  %1423 = vmatprep.subr.mxu0 0.0
  %1424 = vmatpush1.msra.mxu0 0.0
  %1425 = vmatprep.subr.mxu0 0.0
  %1426 = vmatpush1.msra.mxu0 0.0
  %1427 = vmatprep.subr.mxu0 0.0
  %1428 = vmatpush1.msra.mxu0 0.0
  %1429 = vmatprep.subr.mxu0 0.0
  %1430 = vmatpush1.msra.mxu0 0.0
  %1431 = vmatprep.subr.mxu0 0.0
  %1432 = vmatpush1.msra.mxu0 0.0
  %1433 = vmatprep.subr.mxu0 0.0
  %1434 = vmatpush1.msra.mxu0 0.0
  %1435 = vmatprep.subr.mxu0 0.0
  %1436 = vmatpush1.msra.mxu0 0.0
  %1437 = vmatprep.subr.mxu0 0.0
  %1438 = vmatpush1.msra.mxu0 0.0
  %1439 = vmatprep.subr.mxu0 0.0
  %1440 = vmatpush1.msra.mxu0 0.0
  %1441 = vmatprep.mubr.f32.mxu0 0.0
  %1442 = vmatmul.mubr.f32.gmra.mrb[0].mxu0 %v1375
  %v1443 = vpop.f32.mrb[0].mxu0
  %v1444 = vadd.f32 %v1373, %v1443
  %v1445 = vpop.f32.mrb[0].mxu0
  %1446 = vdwg.mxu0
  %v1447 = vadd.f32 %v1444, %v396
  %v1448 = vtanh.pop %v1447
  %v1450 = vsel %vm54, %v1448, 0
  %1452 = vmatprep.subr.mxu0 0.0
  %1453 = vmatpush1.msra.mxu0 %v45
  %1454 = vmatprep.subr.mxu0 0.0
  %1455 = vmatpush1.msra.mxu0 %v46
  %1456 = vmatprep.subr.mxu0 0.0
  %1457 = vmatpush1.msra.mxu0 %v47
  %1458 = vmatprep.subr.mxu0 0.0
  %1459 = vmatpush1.msra.mxu0 %v48
  %1460 = vmatprep.subr.mxu0 0.0
  %1461 = vmatpush1.msra.mxu0 0.0
  %1462 = vmatprep.subr.mxu0 0.0
  %1463 = vmatpush1.msra.mxu0 0.0
  %1464 = vmatprep.subr.mxu0 0.0
  %1465 = vmatpush1.msra.mxu0 0.0
  %1466 = vmatprep.subr.mxu0 0.0
  %1467 = vmatpush1.msra.mxu0 0.0
  %1468 = vmatprep.subr.mxu0 0.0
  %1469 = vmatpush1.msra.mxu0 0.0
  %1470 = vmatprep.subr.mxu0 0.0
  %1471 = vmatpush1.msra.mxu0 0.0
  %1472 = vmatprep.subr.mxu0 0.0
  %1473 = vmatpush1.msra.mxu0 0.0
  %1474 = vmatprep.subr.mxu0 0.0
  %1475 = vmatpush1.msra.mxu0 0.0
  %1476 = vmatprep.subr.mxu0 0.0
  %1477 = vmatpush1.msra.mxu0 0.0
  %1478 = vmatprep.subr.mxu0 0.0
  %1479 = vmatpush1.msra.mxu0 0.0
  %1480 = vmatprep.subr.mxu0 0.0
  %1481 = vmatpush1.msra.mxu0 0.0
  %1482 = vmatprep.subr.mxu0 0.0
  %1483 = vmatpush1.msra.mxu0 0.0
  %1484 = vmatprep.subr.mxu0 0.0
  %1485 = vmatpush1.msra.mxu0 0.0
  %1486 = vmatprep.subr.mxu0 0.0
  %1487 = vmatpush1.msra.mxu0 0.0
  %1488 = vmatprep.subr.mxu0 0.0
  %1489 = vmatpush1.msra.mxu0 0.0
  %1490 = vmatprep.subr.mxu0 0.0
  %1491 = vmatpush1.msra.mxu0 0.0
  %1492 = vmatprep.subr.mxu0 0.0
  %1493 = vmatpush1.msra.mxu0 0.0
  %1494 = vmatprep.subr.mxu0 0.0
  %1495 = vmatpush1.msra.mxu0 0.0
  %1496 = vmatprep.subr.mxu0 0.0
  %1497 = vmatpush1.msra.mxu0 0.0
  %1498 = vmatprep.subr.mxu0 0.0
  %1499 = vmatpush1.msra.mxu0 0.0
  %1500 = vmatprep.subr.mxu0 0.0
  %1501 = vmatpush1.msra.mxu0 0.0
  %1502 = vmatprep.subr.mxu0 0.0
  %1503 = vmatpush1.msra.mxu0 0.0
  %1504 = vmatprep.subr.mxu0 0.0
  %1505 = vmatpush1.msra.mxu0 0.0
  %1506 = vmatprep.subr.mxu0 0.0
  %1507 = vmatpush1.msra.mxu0 0.0
  %1508 = vmatprep.subr.mxu0 0.0
  %1509 = vmatpush1.msra.mxu0 0.0
  %1510 = vmatprep.subr.mxu0 0.0
  %1511 = vmatpush1.msra.mxu0 0.0
  %1512 = vmatprep.subr.mxu0 0.0
  %1513 = vmatpush1.msra.mxu0 0.0
  %1514 = vmatprep.subr.mxu0 0.0
  %1515 = vmatpush1.msra.mxu0 0.0
  %1516 = vmatprep.mubr.f32.mxu0 0.0
  %1517 = vmatmul.mubr.f32.gmra.mrb[0].mxu0 %v1450
  %v1518 = vpop.f32.mrb[0].mxu0
  %v1519 = vadd.f32 %v404, %v1518
  %v1520 = vpop.f32.mrb[0].mxu0
  %1521 = vdwg.mxu0
  %s1522 = scalar_lea.vmem %s9, 24
  %1523 = vst.msk [vmem:[%s1522] sm:$0xff] %vm141, %v1519
  %v1524 = vsel %vm141, %v1519, -inf
  %1525 = vmax.xlane.f32.xlu0 %v1524
  %v1526 = vpop.xlane.xlu0 %1525
  %vm1527 = vcmp.ge.f32.partialorder %v1519, %v1526
  %v1528 = vsel %vm1527, %v139, 16
  %v1529 = vsel %vm141, %v1528, 2147483647
  %v1530 = vand.u32 %v1529, 65535
  %v1531 = vshra.s32 %v1529, 16
  %v1532 = vcvt.s32.f32 %v1530
  %v1533 = vcvt.s32.f32 %v1531
  %1534 = vmin.xlane.f32.xlu0 %v1533
  %v1535 = vpop.xlane.xlu0 %1534
  %vm1536 = vcmp.eq.f32.partialorder %v1533, %v1535
  %v1537 = vsel %vm1536, %v1532, inf
  %1538 = vmin.xlane.f32.xlu0 %v1537
  %v1539 = vpop.xlane.xlu0 %1538
  %v1540 = vcvt.f32.s32 %v1539
  %v1541 = vcvt.f32.s32 %v1535
  %v1542 = vshll.u32 %v1541, 16
  %v1543 = vadd.s32 %v1542, %v1540
  %s1544 = scalar_lea.vmem %s0, 32
  %v1545 = vld [vmem:[%s1544] sm:$0xff]
  %v1547 = vsel %vm141, %v1545, 0
  %1549 = vmatprep.subr.mxu0 0.0
  %1550 = vmatpush1.msra.mxu0 %v35
  %1551 = vmatprep.subr.mxu0 0.0
  %1552 = vmatpush1.msra.mxu0 %v36
  %1553 = vmatprep.subr.mxu0 0.0
  %1554 = vmatpush1.msra.mxu0 0.0
  %1555 = vmatprep.subr.mxu0 0.0
  %1556 = vmatpush1.msra.mxu0 0.0
  %1557 = vmatprep.subr.mxu0 0.0
  %1558 = vmatpush1.msra.mxu0 0.0
  %1559 = vmatprep.subr.mxu0 0.0
  %1560 = vmatpush1.msra.mxu0 0.0
  %1561 = vmatprep.subr.mxu0 0.0
  %1562 = vmatpush1.msra.mxu0 0.0
  %1563 = vmatprep.subr.mxu0 0.0
  %1564 = vmatpush1.msra.mxu0 0.0
  %1565 = vmatprep.subr.mxu0 0.0
  %1566 = vmatpush1.msra.mxu0 0.0
  %1567 = vmatprep.subr.mxu0 0.0
  %1568 = vmatpush1.msra.mxu0 0.0
  %1569 = vmatprep.subr.mxu0 0.0
  %1570 = vmatpush1.msra.mxu0 0.0
  %1571 = vmatprep.subr.mxu0 0.0
  %1572 = vmatpush1.msra.mxu0 0.0
  %1573 = vmatprep.subr.mxu0 0.0
  %1574 = vmatpush1.msra.mxu0 0.0
  %1575 = vmatprep.subr.mxu0 0.0
  %1576 = vmatpush1.msra.mxu0 0.0
  %1577 = vmatprep.subr.mxu0 0.0
  %1578 = vmatpush1.msra.mxu0 0.0
  %1579 = vmatprep.subr.mxu0 0.0
  %1580 = vmatpush1.msra.mxu0 0.0
  %1581 = vmatprep.subr.mxu0 0.0
  %1582 = vmatpush1.msra.mxu0 0.0
  %1583 = vmatprep.subr.mxu0 0.0
  %1584 = vmatpush1.msra.mxu0 0.0
  %1585 = vmatprep.subr.mxu0 0.0
  %1586 = vmatpush1.msra.mxu0 0.0
  %1587 = vmatprep.subr.mxu0 0.0
  %1588 = vmatpush1.msra.mxu0 0.0
  %1589 = vmatprep.subr.mxu0 0.0
  %1590 = vmatpush1.msra.mxu0 0.0
  %1591 = vmatprep.subr.mxu0 0.0
  %1592 = vmatpush1.msra.mxu0 0.0
  %1593 = vmatprep.subr.mxu0 0.0
  %1594 = vmatpush1.msra.mxu0 0.0
  %1595 = vmatprep.subr.mxu0 0.0
  %1596 = vmatpush1.msra.mxu0 0.0
  %1597 = vmatprep.subr.mxu0 0.0
  %1598 = vmatpush1.msra.mxu0 0.0
  %1599 = vmatprep.subr.mxu0 0.0
  %1600 = vmatpush1.msra.mxu0 0.0
  %1601 = vmatprep.subr.mxu0 0.0
  %1602 = vmatpush1.msra.mxu0 0.0
  %1603 = vmatprep.subr.mxu0 0.0
  %1604 = vmatpush1.msra.mxu0 0.0
  %1605 = vmatprep.subr.mxu0 0.0
  %1606 = vmatpush1.msra.mxu0 0.0
  %1607 = vmatprep.subr.mxu0 0.0
  %1608 = vmatpush1.msra.mxu0 0.0
  %1609 = vmatprep.subr.mxu0 0.0
  %1610 = vmatpush1.msra.mxu0 0.0
  %1611 = vmatprep.subr.mxu0 0.0
  %1612 = vmatpush1.msra.mxu0 0.0
  %1613 = vmatprep.mubr.f32.mxu0 0.0
  %1614 = vmatmul.mubr.f32.gmra.mrb[0].mxu0 %v1547
  %v1615 = vpop.f32.mrb[0].mxu0
  %v1616 = vadd.f32 0.0, %v1615
  %v1617 = vpop.f32.mrb[0].mxu0
  %1618 = vdwg.mxu0
  %v1619 = vadd.f32 %v1616, %v125
  %1620 = vmatprep.subr.mxu0 0.0
  %1621 = vmatpush1.msra.mxu0 %v37
  %1622 = vmatprep.subr.mxu0 0.0
  %1623 = vmatpush1.msra.mxu0 %v38
  %1624 = vmatprep.subr.mxu0 0.0
  %1625 = vmatpush1.msra.mxu0 %v39
  %1626 = vmatprep.subr.mxu0 0.0
  %1627 = vmatpush1.msra.mxu0 %v40
  %1628 = vmatprep.subr.mxu0 0.0
  %1629 = vmatpush1.msra.mxu0 0.0
  %1630 = vmatprep.subr.mxu0 0.0
  %1631 = vmatpush1.msra.mxu0 0.0
  %1632 = vmatprep.subr.mxu0 0.0
  %1633 = vmatpush1.msra.mxu0 0.0
  %1634 = vmatprep.subr.mxu0 0.0
  %1635 = vmatpush1.msra.mxu0 0.0
  %1636 = vmatprep.subr.mxu0 0.0
  %1637 = vmatpush1.msra.mxu0 0.0
  %1638 = vmatprep.subr.mxu0 0.0
  %1639 = vmatpush1.msra.mxu0 0.0
  %1640 = vmatprep.subr.mxu0 0.0
  %1641 = vmatpush1.msra.mxu0 0.0
  %1642 = vmatprep.subr.mxu0 0.0
  %1643 = vmatpush1.msra.mxu0 0.0
  %1644 = vmatprep.subr.mxu0 0.0
  %1645 = vmatpush1.msra.mxu0 0.0
  %1646 = vmatprep.subr.mxu0 0.0
  %1647 = vmatpush1.msra.mxu0 0.0
  %1648 = vmatprep.subr.mxu0 0.0
  %1649 = vmatpush1.msra.mxu0 0.0
  %1650 = vmatprep.subr.mxu0 0.0
  %1651 = vmatpush1.msra.mxu0 0.0
  %1652 = vmatprep.subr.mxu0 0.0
  %1653 = vmatpush1.msra.mxu0 0.0
  %1654 = vmatprep.subr.mxu0 0.0
  %1655 = vmatpush1.msra.mxu0 0.0
  %1656 = vmatprep.subr.mxu0 0.0
  %1657 = vmatpush1.msra.mxu0 0.0
  %1658 = vmatprep.subr.mxu0 0.0
  %1659 = vmatpush1.msra.mxu0 0.0
  %1660 = vmatprep.subr.mxu0 0.0
  %1661 = vmatpush1.msra.mxu0 0.0
  %1662 = vmatprep.subr.mxu0 0.0
  %1663 = vmatpush1.msra.mxu0 0.0
  %1664 = vmatprep.subr.mxu0 0.0
  %1665 = vmatpush1.msra.mxu0 0.0
  %1666 = vmatprep.subr.mxu0 0.0
  %1667 = vmatpush1.msra.mxu0 0.0
  %1668 = vmatprep.subr.mxu0 0.0
  %1669 = vmatpush1.msra.mxu0 0.0
  %1670 = vmatprep.subr.mxu0 0.0
  %1671 = vmatpush1.msra.mxu0 0.0
  %1672 = vmatprep.subr.mxu0 0.0
  %1673 = vmatpush1.msra.mxu0 0.0
  %1674 = vmatprep.subr.mxu0 0.0
  %1675 = vmatpush1.msra.mxu0 0.0
  %1676 = vmatprep.subr.mxu0 0.0
  %1677 = vmatpush1.msra.mxu0 0.0
  %1678 = vmatprep.subr.mxu0 0.0
  %1679 = vmatpush1.msra.mxu0 0.0
  %1680 = vmatprep.subr.mxu0 0.0
  %1681 = vmatpush1.msra.mxu0 0.0
  %1682 = vmatprep.subr.mxu0 0.0
  %1683 = vmatpush1.msra.mxu0 0.0
  %1684 = vmatprep.mubr.f32.mxu0 0.0
  %1685 = vmatmul.mubr.f32.gmra.mrb[0].mxu0 %v1375
  %v1686 = vpop.f32.mrb[0].mxu0
  %v1687 = vadd.f32 0.0, %v1686
  %v1688 = vpop.f32.mrb[0].mxu0
  %1689 = vdwg.mxu0
  %v1690 = vadd.f32 %v1619, %v1687
  %v1691 = vxor.u32 %v1690, 2147483648
  %v1692 = vmul.f32 %v1691, 1.442695
  %v1693 = vpow.pop %v1692
  %v1694 = vadd.f32 %v1693, 1.0
  %v1695 = vrcp.pop %v1694
  %v1696 = vmul.f32 1.0, %v1695
  %1698 = vrot.lane.b32.xlu0 %v1687, 64
  %v1699 = vpop.permute.xlu0 %1698
  %v1701 = vmul.f32 %v1696, %v1699
  %1703 = vrot.lane.b32.xlu0 %v1701, 64
  %v1704 = vpop.permute.xlu0 %1703
  %v1706 = vadd.f32 %v1619, %v1704
  %v1707 = vtanh.pop %v1706
  %v1708 = vsub.f32 1.0, %v1696
  %1710 = vrot.lane.b32.xlu0 %v1707, 96
  %v1711 = vpop.permute.xlu0 %1710
  %v1713 = vmul.f32 %v1708, %v1711
  %v1714 = vmul.f32 %v1696, %v1367
  %v1715 = vadd.f32 %v1713, %v1714
  %1717 = vrot.lane.b32.xlu0 %v1715, 96
  %v1718 = vpop.permute.xlu0 %1717
  %1720 = vrot.lane.b32.xlu0 %v1616, 32
  %v1721 = vpop.permute.xlu0 %1720
  %v1723 = vsel %vm54, %v1718, 0
  %1725 = vmatprep.subr.mxu0 0.0
  %1726 = vmatpush1.msra.mxu0 %v41
  %1727 = vmatprep.subr.mxu0 0.0
  %1728 = vmatpush1.msra.mxu0 %v42
  %1729 = vmatprep.subr.mxu0 0.0
  %1730 = vmatpush1.msra.mxu0 %v43
  %1731 = vmatprep.subr.mxu0 0.0
  %1732 = vmatpush1.msra.mxu0 %v44
  %1733 = vmatprep.subr.mxu0 0.0
  %1734 = vmatpush1.msra.mxu0 0.0
  %1735 = vmatprep.subr.mxu0 0.0
  %1736 = vmatpush1.msra.mxu0 0.0
  %1737 = vmatprep.subr.mxu0 0.0
  %1738 = vmatpush1.msra.mxu0 0.0
  %1739 = vmatprep.subr.mxu0 0.0
  %1740 = vmatpush1.msra.mxu0 0.0
  %1741 = vmatprep.subr.mxu0 0.0
  %1742 = vmatpush1.msra.mxu0 0.0
  %1743 = vmatprep.subr.mxu0 0.0
  %1744 = vmatpush1.msra.mxu0 0.0
  %1745 = vmatprep.subr.mxu0 0.0
  %1746 = vmatpush1.msra.mxu0 0.0
  %1747 = vmatprep.subr.mxu0 0.0
  %1748 = vmatpush1.msra.mxu0 0.0
  %1749 = vmatprep.subr.mxu0 0.0
  %1750 = vmatpush1.msra.mxu0 0.0
  %1751 = vmatprep.subr.mxu0 0.0
  %1752 = vmatpush1.msra.mxu0 0.0
  %1753 = vmatprep.subr.mxu0 0.0
  %1754 = vmatpush1.msra.mxu0 0.0
  %1755 = vmatprep.subr.mxu0 0.0
  %1756 = vmatpush1.msra.mxu0 0.0
  %1757 = vmatprep.subr.mxu0 0.0
  %1758 = vmatpush1.msra.mxu0 0.0
  %1759 = vmatprep.subr.mxu0 0.0
  %1760 = vmatpush1.msra.mxu0 0.0
  %1761 = vmatprep.subr.mxu0 0.0
  %1762 = vmatpush1.msra.mxu0 0.0
  %1763 = vmatprep.subr.mxu0 0.0
  %1764 = vmatpush1.msra.mxu0 0.0
  %1765 = vmatprep.subr.mxu0 0.0
  %1766 = vmatpush1.msra.mxu0 0.0
  %1767 = vmatprep.subr.mxu0 0.0
  %1768 = vmatpush1.msra.mxu0 0.0
  %1769 = vmatprep.subr.mxu0 0.0
  %1770 = vmatpush1.msra.mxu0 0.0
  %1771 = vmatprep.subr.mxu0 0.0
  %1772 = vmatpush1.msra.mxu0 0.0
  %1773 = vmatprep.subr.mxu0 0.0
  %1774 = vmatpush1.msra.mxu0 0.0
  %1775 = vmatprep.subr.mxu0 0.0
  %1776 = vmatpush1.msra.mxu0 0.0
  %1777 = vmatprep.subr.mxu0 0.0
  %1778 = vmatpush1.msra.mxu0 0.0
  %1779 = vmatprep.subr.mxu0 0.0
  %1780 = vmatpush1.msra.mxu0 0.0
  %1781 = vmatprep.subr.mxu0 0.0
  %1782 = vmatpush1.msra.mxu0 0.0
  %1783 = vmatprep.subr.mxu0 0.0
  %1784 = vmatpush1.msra.mxu0 0.0
  %1785 = vmatprep.subr.mxu0 0.0
  %1786 = vmatpush1.msra.mxu0 0.0
  %1787 = vmatprep.subr.mxu0 0.0
  %1788 = vmatpush1.msra.mxu0 0.0
  %1789 = vmatprep.mubr.f32.mxu0 0.0
  %1790 = vmatmul.mubr.f32.gmra.mrb[0].mxu0 %v1723
  %v1791 = vpop.f32.mrb[0].mxu0
  %v1792 = vadd.f32 %v1721, %v1791
  %v1793 = vpop.f32.mrb[0].mxu0
  %1794 = vdwg.mxu0
  %v1795 = vadd.f32 %v1792, %v396
  %v1796 = vtanh.pop %v1795
  %v1798 = vsel %vm54, %v1796, 0
  %1800 = vmatprep.subr.mxu0 0.0
  %1801 = vmatpush1.msra.mxu0 %v45
  %1802 = vmatprep.subr.mxu0 0.0
  %1803 = vmatpush1.msra.mxu0 %v46
  %1804 = vmatprep.subr.mxu0 0.0
  %1805 = vmatpush1.msra.mxu0 %v47
  %1806 = vmatprep.subr.mxu0 0.0
  %1807 = vmatpush1.msra.mxu0 %v48
  %1808 = vmatprep.subr.mxu0 0.0
  %1809 = vmatpush1.msra.mxu0 0.0
  %1810 = vmatprep.subr.mxu0 0.0
  %1811 = vmatpush1.msra.mxu0 0.0
  %1812 = vmatprep.subr.mxu0 0.0
  %1813 = vmatpush1.msra.mxu0 0.0
  %1814 = vmatprep.subr.mxu0 0.0
  %1815 = vmatpush1.msra.mxu0 0.0
  %1816 = vmatprep.subr.mxu0 0.0
  %1817 = vmatpush1.msra.mxu0 0.0
  %1818 = vmatprep.subr.mxu0 0.0
  %1819 = vmatpush1.msra.mxu0 0.0
  %1820 = vmatprep.subr.mxu0 0.0
  %1821 = vmatpush1.msra.mxu0 0.0
  %1822 = vmatprep.subr.mxu0 0.0
  %1823 = vmatpush1.msra.mxu0 0.0
  %1824 = vmatprep.subr.mxu0 0.0
  %1825 = vmatpush1.msra.mxu0 0.0
  %1826 = vmatprep.subr.mxu0 0.0
  %1827 = vmatpush1.msra.mxu0 0.0
  %1828 = vmatprep.subr.mxu0 0.0
  %1829 = vmatpush1.msra.mxu0 0.0
  %1830 = vmatprep.subr.mxu0 0.0
  %1831 = vmatpush1.msra.mxu0 0.0
  %1832 = vmatprep.subr.mxu0 0.0
  %1833 = vmatpush1.msra.mxu0 0.0
  %1834 = vmatprep.subr.mxu0 0.0
  %1835 = vmatpush1.msra.mxu0 0.0
  %1836 = vmatprep.subr.mxu0 0.0
  %1837 = vmatpush1.msra.mxu0 0.0
  %1838 = vmatprep.subr.mxu0 0.0
  %1839 = vmatpush1.msra.mxu0 0.0
  %1840 = vmatprep.subr.mxu0 0.0
  %1841 = vmatpush1.msra.mxu0 0.0
  %1842 = vmatprep.subr.mxu0 0.0
  %1843 = vmatpush1.msra.mxu0 0.0
  %1844 = vmatprep.subr.mxu0 0.0
  %1845 = vmatpush1.msra.mxu0 0.0
  %1846 = vmatprep.subr.mxu0 0.0
  %1847 = vmatpush1.msra.mxu0 0.0
  %1848 = vmatprep.subr.mxu0 0.0
  %1849 = vmatpush1.msra.mxu0 0.0
  %1850 = vmatprep.subr.mxu0 0.0
  %1851 = vmatpush1.msra.mxu0 0.0
  %1852 = vmatprep.subr.mxu0 0.0
  %1853 = vmatpush1.msra.mxu0 0.0
  %1854 = vmatprep.subr.mxu0 0.0
  %1855 = vmatpush1.msra.mxu0 0.0
  %1856 = vmatprep.subr.mxu0 0.0
  %1857 = vmatpush1.msra.mxu0 0.0
  %1858 = vmatprep.subr.mxu0 0.0
  %1859 = vmatpush1.msra.mxu0 0.0
  %1860 = vmatprep.subr.mxu0 0.0
  %1861 = vmatpush1.msra.mxu0 0.0
  %1862 = vmatprep.subr.mxu0 0.0
  %1863 = vmatpush1.msra.mxu0 0.0
  %1864 = vmatprep.mubr.f32.mxu0 0.0
  %1865 = vmatmul.mubr.f32.gmra.mrb[0].mxu0 %v1798
  %v1866 = vpop.f32.mrb[0].mxu0
  %v1867 = vadd.f32 %v404, %v1866
  %v1868 = vpop.f32.mrb[0].mxu0
  %1869 = vdwg.mxu0
  %s1870 = scalar_lea.vmem %s9, 32
  %1871 = vst.msk [vmem:[%s1870] sm:$0xff] %vm141, %v1867
  %v1872 = vsel %vm141, %v1867, -inf
  %1873 = vmax.xlane.f32.xlu0 %v1872
  %v1874 = vpop.xlane.xlu0 %1873
  %vm1875 = vcmp.ge.f32.partialorder %v1867, %v1874
  %v1876 = vsel %vm1875, %v139, 16
  %v1877 = vsel %vm141, %v1876, 2147483647
  %v1878 = vand.u32 %v1877, 65535
  %v1879 = vshra.s32 %v1877, 16
  %v1880 = vcvt.s32.f32 %v1878
  %v1881 = vcvt.s32.f32 %v1879
  %1882 = vmin.xlane.f32.xlu0 %v1881
  %v1883 = vpop.xlane.xlu0 %1882
  %vm1884 = vcmp.eq.f32.partialorder %v1881, %v1883
  %v1885 = vsel %vm1884, %v1880, inf
  %1886 = vmin.xlane.f32.xlu0 %v1885
  %v1887 = vpop.xlane.xlu0 %1886
  %v1888 = vcvt.f32.s32 %v1887
  %v1889 = vcvt.f32.s32 %v1883
  %v1890 = vshll.u32 %v1889, 16
  %v1891 = vadd.s32 %v1890, %v1888
  %s1892 = scalar_lea.vmem %s0, 40
  %v1893 = vld [vmem:[%s1892] sm:$0xff]
  %v1895 = vsel %vm141, %v1893, 0
  %1897 = vmatprep.subr.mxu0 0.0
  %1898 = vmatpush1.msra.mxu0 %v35
  %1899 = vmatprep.subr.mxu0 0.0
  %1900 = vmatpush1.msra.mxu0 %v36
  %1901 = vmatprep.subr.mxu0 0.0
  %1902 = vmatpush1.msra.mxu0 0.0
  %1903 = vmatprep.subr.mxu0 0.0
  %1904 = vmatpush1.msra.mxu0 0.0
  %1905 = vmatprep.subr.mxu0 0.0
  %1906 = vmatpush1.msra.mxu0 0.0
  %1907 = vmatprep.subr.mxu0 0.0
  %1908 = vmatpush1.msra.mxu0 0.0
  %1909 = vmatprep.subr.mxu0 0.0
  %1910 = vmatpush1.msra.mxu0 0.0
  %1911 = vmatprep.subr.mxu0 0.0
  %1912 = vmatpush1.msra.mxu0 0.0
  %1913 = vmatprep.subr.mxu0 0.0
  %1914 = vmatpush1.msra.mxu0 0.0
  %1915 = vmatprep.subr.mxu0 0.0
  %1916 = vmatpush1.msra.mxu0 0.0
  %1917 = vmatprep.subr.mxu0 0.0
  %1918 = vmatpush1.msra.mxu0 0.0
  %1919 = vmatprep.subr.mxu0 0.0
  %1920 = vmatpush1.msra.mxu0 0.0
  %1921 = vmatprep.subr.mxu0 0.0
  %1922 = vmatpush1.msra.mxu0 0.0
  %1923 = vmatprep.subr.mxu0 0.0
  %1924 = vmatpush1.msra.mxu0 0.0
  %1925 = vmatprep.subr.mxu0 0.0
  %1926 = vmatpush1.msra.mxu0 0.0
  %1927 = vmatprep.subr.mxu0 0.0
  %1928 = vmatpush1.msra.mxu0 0.0
  %1929 = vmatprep.subr.mxu0 0.0
  %1930 = vmatpush1.msra.mxu0 0.0
  %1931 = vmatprep.subr.mxu0 0.0
  %1932 = vmatpush1.msra.mxu0 0.0
  %1933 = vmatprep.subr.mxu0 0.0
  %1934 = vmatpush1.msra.mxu0 0.0
  %1935 = vmatprep.subr.mxu0 0.0
  %1936 = vmatpush1.msra.mxu0 0.0
  %1937 = vmatprep.subr.mxu0 0.0
  %1938 = vmatpush1.msra.mxu0 0.0
  %1939 = vmatprep.subr.mxu0 0.0
  %1940 = vmatpush1.msra.mxu0 0.0
  %1941 = vmatprep.subr.mxu0 0.0
  %1942 = vmatpush1.msra.mxu0 0.0
  %1943 = vmatprep.subr.mxu0 0.0
  %1944 = vmatpush1.msra.mxu0 0.0
  %1945 = vmatprep.subr.mxu0 0.0
  %1946 = vmatpush1.msra.mxu0 0.0
  %1947 = vmatprep.subr.mxu0 0.0
  %1948 = vmatpush1.msra.mxu0 0.0
  %1949 = vmatprep.subr.mxu0 0.0
  %1950 = vmatpush1.msra.mxu0 0.0
  %1951 = vmatprep.subr.mxu0 0.0
  %1952 = vmatpush1.msra.mxu0 0.0
  %1953 = vmatprep.subr.mxu0 0.0
  %1954 = vmatpush1.msra.mxu0 0.0
  %1955 = vmatprep.subr.mxu0 0.0
  %1956 = vmatpush1.msra.mxu0 0.0
  %1957 = vmatprep.subr.mxu0 0.0
  %1958 = vmatpush1.msra.mxu0 0.0
  %1959 = vmatprep.subr.mxu0 0.0
  %1960 = vmatpush1.msra.mxu0 0.0
  %1961 = vmatprep.mubr.f32.mxu0 0.0
  %1962 = vmatmul.mubr.f32.gmra.mrb[0].mxu0 %v1895
  %v1963 = vpop.f32.mrb[0].mxu0
  %v1964 = vadd.f32 0.0, %v1963
  %v1965 = vpop.f32.mrb[0].mxu0
  %1966 = vdwg.mxu0
  %v1967 = vadd.f32 %v1964, %v125
  %1968 = vmatprep.subr.mxu0 0.0
  %1969 = vmatpush1.msra.mxu0 %v37
  %1970 = vmatprep.subr.mxu0 0.0
  %1971 = vmatpush1.msra.mxu0 %v38
  %1972 = vmatprep.subr.mxu0 0.0
  %1973 = vmatpush1.msra.mxu0 %v39
  %1974 = vmatprep.subr.mxu0 0.0
  %1975 = vmatpush1.msra.mxu0 %v40
  %1976 = vmatprep.subr.mxu0 0.0
  %1977 = vmatpush1.msra.mxu0 0.0
  %1978 = vmatprep.subr.mxu0 0.0
  %1979 = vmatpush1.msra.mxu0 0.0
  %1980 = vmatprep.subr.mxu0 0.0
  %1981 = vmatpush1.msra.mxu0 0.0
  %1982 = vmatprep.subr.mxu0 0.0
  %1983 = vmatpush1.msra.mxu0 0.0
  %1984 = vmatprep.subr.mxu0 0.0
  %1985 = vmatpush1.msra.mxu0 0.0
  %1986 = vmatprep.subr.mxu0 0.0
  %1987 = vmatpush1.msra.mxu0 0.0
  %1988 = vmatprep.subr.mxu0 0.0
  %1989 = vmatpush1.msra.mxu0 0.0
  %1990 = vmatprep.subr.mxu0 0.0
  %1991 = vmatpush1.msra.mxu0 0.0
  %1992 = vmatprep.subr.mxu0 0.0
  %1993 = vmatpush1.msra.mxu0 0.0
  %1994 = vmatprep.subr.mxu0 0.0
  %1995 = vmatpush1.msra.mxu0 0.0
  %1996 = vmatprep.subr.mxu0 0.0
  %1997 = vmatpush1.msra.mxu0 0.0
  %1998 = vmatprep.subr.mxu0 0.0
  %1999 = vmatpush1.msra.mxu0 0.0
  %2000 = vmatprep.subr.mxu0 0.0
  %2001 = vmatpush1.msra.mxu0 0.0
  %2002 = vmatprep.subr.mxu0 0.0
  %2003 = vmatpush1.msra.mxu0 0.0
  %2004 = vmatprep.subr.mxu0 0.0
  %2005 = vmatpush1.msra.mxu0 0.0
  %2006 = vmatprep.subr.mxu0 0.0
  %2007 = vmatpush1.msra.mxu0 0.0
  %2008 = vmatprep.subr.mxu0 0.0
  %2009 = vmatpush1.msra.mxu0 0.0
  %2010 = vmatprep.subr.mxu0 0.0
  %2011 = vmatpush1.msra.mxu0 0.0
  %2012 = vmatprep.subr.mxu0 0.0
  %2013 = vmatpush1.msra.mxu0 0.0
  %2014 = vmatprep.subr.mxu0 0.0
  %2015 = vmatpush1.msra.mxu0 0.0
  %2016 = vmatprep.subr.mxu0 0.0
  %2017 = vmatpush1.msra.mxu0 0.0
  %2018 = vmatprep.subr.mxu0 0.0
  %2019 = vmatpush1.msra.mxu0 0.0
  %2020 = vmatprep.subr.mxu0 0.0
  %2021 = vmatpush1.msra.mxu0 0.0
  %2022 = vmatprep.subr.mxu0 0.0
  %2023 = vmatpush1.msra.mxu0 0.0
  %2024 = vmatprep.subr.mxu0 0.0
  %2025 = vmatpush1.msra.mxu0 0.0
  %2026 = vmatprep.subr.mxu0 0.0
  %2027 = vmatpush1.msra.mxu0 0.0
  %2028 = vmatprep.subr.mxu0 0.0
  %2029 = vmatpush1.msra.mxu0 0.0
  %2030 = vmatprep.subr.mxu0 0.0
  %2031 = vmatpush1.msra.mxu0 0.0
  %2032 = vmatprep.mubr.f32.mxu0 0.0
  %2033 = vmatmul.mubr.f32.gmra.mrb[0].mxu0 %v1723
  %v2034 = vpop.f32.mrb[0].mxu0
  %v2035 = vadd.f32 0.0, %v2034
  %v2036 = vpop.f32.mrb[0].mxu0
  %2037 = vdwg.mxu0
  %v2038 = vadd.f32 %v1967, %v2035
  %v2039 = vxor.u32 %v2038, 2147483648
  %v2040 = vmul.f32 %v2039, 1.442695
  %v2041 = vpow.pop %v2040
  %v2042 = vadd.f32 %v2041, 1.0
  %v2043 = vrcp.pop %v2042
  %v2044 = vmul.f32 1.0, %v2043
  %2046 = vrot.lane.b32.xlu0 %v2035, 64
  %v2047 = vpop.permute.xlu0 %2046
  %v2049 = vmul.f32 %v2044, %v2047
  %2051 = vrot.lane.b32.xlu0 %v2049, 64
  %v2052 = vpop.permute.xlu0 %2051
  %v2054 = vadd.f32 %v1967, %v2052
  %v2055 = vtanh.pop %v2054
  %v2056 = vsub.f32 1.0, %v2044
  %2058 = vrot.lane.b32.xlu0 %v2055, 96
  %v2059 = vpop.permute.xlu0 %2058
  %v2061 = vmul.f32 %v2056, %v2059
  %v2062 = vmul.f32 %v2044, %v1715
  %v2063 = vadd.f32 %v2061, %v2062
  %2065 = vrot.lane.b32.xlu0 %v2063, 96
  %v2066 = vpop.permute.xlu0 %2065
  %2068 = vrot.lane.b32.xlu0 %v1964, 32
  %v2069 = vpop.permute.xlu0 %2068
  %v2071 = vsel %vm54, %v2066, 0
  %2073 = vmatprep.subr.mxu0 0.0
  %2074 = vmatpush1.msra.mxu0 %v41
  %2075 = vmatprep.subr.mxu0 0.0
  %2076 = vmatpush1.msra.mxu0 %v42
  %2077 = vmatprep.subr.mxu0 0.0
  %2078 = vmatpush1.msra.mxu0 %v43
  %2079 = vmatprep.subr.mxu0 0.0
  %2080 = vmatpush1.msra.mxu0 %v44
  %2081 = vmatprep.subr.mxu0 0.0
  %2082 = vmatpush1.msra.mxu0 0.0
  %2083 = vmatprep.subr.mxu0 0.0
  %2084 = vmatpush1.msra.mxu0 0.0
  %2085 = vmatprep.subr.mxu0 0.0
  %2086 = vmatpush1.msra.mxu0 0.0
  %2087 = vmatprep.subr.mxu0 0.0
  %2088 = vmatpush1.msra.mxu0 0.0
  %2089 = vmatprep.subr.mxu0 0.0
  %2090 = vmatpush1.msra.mxu0 0.0
  %2091 = vmatprep.subr.mxu0 0.0
  %2092 = vmatpush1.msra.mxu0 0.0
  %2093 = vmatprep.subr.mxu0 0.0
  %2094 = vmatpush1.msra.mxu0 0.0
  %2095 = vmatprep.subr.mxu0 0.0
  %2096 = vmatpush1.msra.mxu0 0.0
  %2097 = vmatprep.subr.mxu0 0.0
  %2098 = vmatpush1.msra.mxu0 0.0
  %2099 = vmatprep.subr.mxu0 0.0
  %2100 = vmatpush1.msra.mxu0 0.0
  %2101 = vmatprep.subr.mxu0 0.0
  %2102 = vmatpush1.msra.mxu0 0.0
  %2103 = vmatprep.subr.mxu0 0.0
  %2104 = vmatpush1.msra.mxu0 0.0
  %2105 = vmatprep.subr.mxu0 0.0
  %2106 = vmatpush1.msra.mxu0 0.0
  %2107 = vmatprep.subr.mxu0 0.0
  %2108 = vmatpush1.msra.mxu0 0.0
  %2109 = vmatprep.subr.mxu0 0.0
  %2110 = vmatpush1.msra.mxu0 0.0
  %2111 = vmatprep.subr.mxu0 0.0
  %2112 = vmatpush1.msra.mxu0 0.0
  %2113 = vmatprep.subr.mxu0 0.0
  %2114 = vmatpush1.msra.mxu0 0.0
  %2115 = vmatprep.subr.mxu0 0.0
  %2116 = vmatpush1.msra.mxu0 0.0
  %2117 = vmatprep.subr.mxu0 0.0
  %2118 = vmatpush1.msra.mxu0 0.0
  %2119 = vmatprep.subr.mxu0 0.0
  %2120 = vmatpush1.msra.mxu0 0.0
  %2121 = vmatprep.subr.mxu0 0.0
  %2122 = vmatpush1.msra.mxu0 0.0
  %2123 = vmatprep.subr.mxu0 0.0
  %2124 = vmatpush1.msra.mxu0 0.0
  %2125 = vmatprep.subr.mxu0 0.0
  %2126 = vmatpush1.msra.mxu0 0.0
  %2127 = vmatprep.subr.mxu0 0.0
  %2128 = vmatpush1.msra.mxu0 0.0
  %2129 = vmatprep.subr.mxu0 0.0
  %2130 = vmatpush1.msra.mxu0 0.0
  %2131 = vmatprep.subr.mxu0 0.0
  %2132 = vmatpush1.msra.mxu0 0.0
  %2133 = vmatprep.subr.mxu0 0.0
  %2134 = vmatpush1.msra.mxu0 0.0
  %2135 = vmatprep.subr.mxu0 0.0
  %2136 = vmatpush1.msra.mxu0 0.0
  %2137 = vmatprep.mubr.f32.mxu0 0.0
  %2138 = vmatmul.mubr.f32.gmra.mrb[0].mxu0 %v2071
  %v2139 = vpop.f32.mrb[0].mxu0
  %v2140 = vadd.f32 %v2069, %v2139
  %v2141 = vpop.f32.mrb[0].mxu0
  %2142 = vdwg.mxu0
  %v2143 = vadd.f32 %v2140, %v396
  %v2144 = vtanh.pop %v2143
  %v2146 = vsel %vm54, %v2144, 0
  %2148 = vmatprep.subr.mxu0 0.0
  %2149 = vmatpush1.msra.mxu0 %v45
  %2150 = vmatprep.subr.mxu0 0.0
  %2151 = vmatpush1.msra.mxu0 %v46
  %2152 = vmatprep.subr.mxu0 0.0
  %2153 = vmatpush1.msra.mxu0 %v47
  %2154 = vmatprep.subr.mxu0 0.0
  %2155 = vmatpush1.msra.mxu0 %v48
  %2156 = vmatprep.subr.mxu0 0.0
  %2157 = vmatpush1.msra.mxu0 0.0
  %2158 = vmatprep.subr.mxu0 0.0
  %2159 = vmatpush1.msra.mxu0 0.0
  %2160 = vmatprep.subr.mxu0 0.0
  %2161 = vmatpush1.msra.mxu0 0.0
  %2162 = vmatprep.subr.mxu0 0.0
  %2163 = vmatpush1.msra.mxu0 0.0
  %2164 = vmatprep.subr.mxu0 0.0
  %2165 = vmatpush1.msra.mxu0 0.0
  %2166 = vmatprep.subr.mxu0 0.0
  %2167 = vmatpush1.msra.mxu0 0.0
  %2168 = vmatprep.subr.mxu0 0.0
  %2169 = vmatpush1.msra.mxu0 0.0
  %2170 = vmatprep.subr.mxu0 0.0
  %2171 = vmatpush1.msra.mxu0 0.0
  %2172 = vmatprep.subr.mxu0 0.0
  %2173 = vmatpush1.msra.mxu0 0.0
  %2174 = vmatprep.subr.mxu0 0.0
  %2175 = vmatpush1.msra.mxu0 0.0
  %2176 = vmatprep.subr.mxu0 0.0
  %2177 = vmatpush1.msra.mxu0 0.0
  %2178 = vmatprep.subr.mxu0 0.0
  %2179 = vmatpush1.msra.mxu0 0.0
  %2180 = vmatprep.subr.mxu0 0.0
  %2181 = vmatpush1.msra.mxu0 0.0
  %2182 = vmatprep.subr.mxu0 0.0
  %2183 = vmatpush1.msra.mxu0 0.0
  %2184 = vmatprep.subr.mxu0 0.0
  %2185 = vmatpush1.msra.mxu0 0.0
  %2186 = vmatprep.subr.mxu0 0.0
  %2187 = vmatpush1.msra.mxu0 0.0
  %2188 = vmatprep.subr.mxu0 0.0
  %2189 = vmatpush1.msra.mxu0 0.0
  %2190 = vmatprep.subr.mxu0 0.0
  %2191 = vmatpush1.msra.mxu0 0.0
  %2192 = vmatprep.subr.mxu0 0.0
  %2193 = vmatpush1.msra.mxu0 0.0
  %2194 = vmatprep.subr.mxu0 0.0
  %2195 = vmatpush1.msra.mxu0 0.0
  %2196 = vmatprep.subr.mxu0 0.0
  %2197 = vmatpush1.msra.mxu0 0.0
  %2198 = vmatprep.subr.mxu0 0.0
  %2199 = vmatpush1.msra.mxu0 0.0
  %2200 = vmatprep.subr.mxu0 0.0
  %2201 = vmatpush1.msra.mxu0 0.0
  %2202 = vmatprep.subr.mxu0 0.0
  %2203 = vmatpush1.msra.mxu0 0.0
  %2204 = vmatprep.subr.mxu0 0.0
  %2205 = vmatpush1.msra.mxu0 0.0
  %2206 = vmatprep.subr.mxu0 0.0
  %2207 = vmatpush1.msra.mxu0 0.0
  %2208 = vmatprep.subr.mxu0 0.0
  %2209 = vmatpush1.msra.mxu0 0.0
  %2210 = vmatprep.subr.mxu0 0.0
  %2211 = vmatpush1.msra.mxu0 0.0
  %2212 = vmatprep.mubr.f32.mxu0 0.0
  %2213 = vmatmul.mubr.f32.gmra.mrb[0].mxu0 %v2146
  %v2214 = vpop.f32.mrb[0].mxu0
  %v2215 = vadd.f32 %v404, %v2214
  %v2216 = vpop.f32.mrb[0].mxu0
  %2217 = vdwg.mxu0
  %s2218 = scalar_lea.vmem %s9, 40
  %2219 = vst.msk [vmem:[%s2218] sm:$0xff] %vm141, %v2215
  %v2220 = vsel %vm141, %v2215, -inf
  %2221 = vmax.xlane.f32.xlu0 %v2220
  %v2222 = vpop.xlane.xlu0 %2221
  %vm2223 = vcmp.ge.f32.partialorder %v2215, %v2222
  %v2224 = vsel %vm2223, %v139, 16
  %v2225 = vsel %vm141, %v2224, 2147483647
  %v2226 = vand.u32 %v2225, 65535
  %v2227 = vshra.s32 %v2225, 16
  %v2228 = vcvt.s32.f32 %v2226
  %v2229 = vcvt.s32.f32 %v2227
  %2230 = vmin.xlane.f32.xlu0 %v2229
  %v2231 = vpop.xlane.xlu0 %2230
  %vm2232 = vcmp.eq.f32.partialorder %v2229, %v2231
  %v2233 = vsel %vm2232, %v2228, inf
  %2234 = vmin.xlane.f32.xlu0 %v2233
  %v2235 = vpop.xlane.xlu0 %2234
  %v2236 = vcvt.f32.s32 %v2235
  %v2237 = vcvt.f32.s32 %v2231
  %v2238 = vshll.u32 %v2237, 16
  %v2239 = vadd.s32 %v2238, %v2236
  %s2240 = scalar_lea.vmem %s0, 48
  %v2241 = vld [vmem:[%s2240] sm:$0xff]
  %v2243 = vsel %vm141, %v2241, 0
  %2245 = vmatprep.subr.mxu0 0.0
  %2246 = vmatpush1.msra.mxu0 %v35
  %2247 = vmatprep.subr.mxu0 0.0
  %2248 = vmatpush1.msra.mxu0 %v36
  %2249 = vmatprep.subr.mxu0 0.0
  %2250 = vmatpush1.msra.mxu0 0.0
  %2251 = vmatprep.subr.mxu0 0.0
  %2252 = vmatpush1.msra.mxu0 0.0
  %2253 = vmatprep.subr.mxu0 0.0
  %2254 = vmatpush1.msra.mxu0 0.0
  %2255 = vmatprep.subr.mxu0 0.0
  %2256 = vmatpush1.msra.mxu0 0.0
  %2257 = vmatprep.subr.mxu0 0.0
  %2258 = vmatpush1.msra.mxu0 0.0
  %2259 = vmatprep.subr.mxu0 0.0
  %2260 = vmatpush1.msra.mxu0 0.0
  %2261 = vmatprep.subr.mxu0 0.0
  %2262 = vmatpush1.msra.mxu0 0.0
  %2263 = vmatprep.subr.mxu0 0.0
  %2264 = vmatpush1.msra.mxu0 0.0
  %2265 = vmatprep.subr.mxu0 0.0
  %2266 = vmatpush1.msra.mxu0 0.0
  %2267 = vmatprep.subr.mxu0 0.0
  %2268 = vmatpush1.msra.mxu0 0.0
  %2269 = vmatprep.subr.mxu0 0.0
  %2270 = vmatpush1.msra.mxu0 0.0
  %2271 = vmatprep.subr.mxu0 0.0
  %2272 = vmatpush1.msra.mxu0 0.0
  %2273 = vmatprep.subr.mxu0 0.0
  %2274 = vmatpush1.msra.mxu0 0.0
  %2275 = vmatprep.subr.mxu0 0.0
  %2276 = vmatpush1.msra.mxu0 0.0
  %2277 = vmatprep.subr.mxu0 0.0
  %2278 = vmatpush1.msra.mxu0 0.0
  %2279 = vmatprep.subr.mxu0 0.0
  %2280 = vmatpush1.msra.mxu0 0.0
  %2281 = vmatprep.subr.mxu0 0.0
  %2282 = vmatpush1.msra.mxu0 0.0
  %2283 = vmatprep.subr.mxu0 0.0
  %2284 = vmatpush1.msra.mxu0 0.0
  %2285 = vmatprep.subr.mxu0 0.0
  %2286 = vmatpush1.msra.mxu0 0.0
  %2287 = vmatprep.subr.mxu0 0.0
  %2288 = vmatpush1.msra.mxu0 0.0
  %2289 = vmatprep.subr.mxu0 0.0
  %2290 = vmatpush1.msra.mxu0 0.0
  %2291 = vmatprep.subr.mxu0 0.0
  %2292 = vmatpush1.msra.mxu0 0.0
  %2293 = vmatprep.subr.mxu0 0.0
  %2294 = vmatpush1.msra.mxu0 0.0
  %2295 = vmatprep.subr.mxu0 0.0
  %2296 = vmatpush1.msra.mxu0 0.0
  %2297 = vmatprep.subr.mxu0 0.0
  %2298 = vmatpush1.msra.mxu0 0.0
  %2299 = vmatprep.subr.mxu0 0.0
  %2300 = vmatpush1.msra.mxu0 0.0
  %2301 = vmatprep.subr.mxu0 0.0
  %2302 = vmatpush1.msra.mxu0 0.0
  %2303 = vmatprep.subr.mxu0 0.0
  %2304 = vmatpush1.msra.mxu0 0.0
  %2305 = vmatprep.subr.mxu0 0.0
  %2306 = vmatpush1.msra.mxu0 0.0
  %2307 = vmatprep.subr.mxu0 0.0
  %2308 = vmatpush1.msra.mxu0 0.0
  %2309 = vmatprep.mubr.f32.mxu0 0.0
  %2310 = vmatmul.mubr.f32.gmra.mrb[0].mxu0 %v2243
  %v2311 = vpop.f32.mrb[0].mxu0
  %v2312 = vadd.f32 0.0, %v2311
  %v2313 = vpop.f32.mrb[0].mxu0
  %2314 = vdwg.mxu0
  %v2315 = vadd.f32 %v2312, %v125
  %2316 = vmatprep.subr.mxu0 0.0
  %2317 = vmatpush1.msra.mxu0 %v37
  %2318 = vmatprep.subr.mxu0 0.0
  %2319 = vmatpush1.msra.mxu0 %v38
  %2320 = vmatprep.subr.mxu0 0.0
  %2321 = vmatpush1.msra.mxu0 %v39
  %2322 = vmatprep.subr.mxu0 0.0
  %2323 = vmatpush1.msra.mxu0 %v40
  %2324 = vmatprep.subr.mxu0 0.0
  %2325 = vmatpush1.msra.mxu0 0.0
  %2326 = vmatprep.subr.mxu0 0.0
  %2327 = vmatpush1.msra.mxu0 0.0
  %2328 = vmatprep.subr.mxu0 0.0
  %2329 = vmatpush1.msra.mxu0 0.0
  %2330 = vmatprep.subr.mxu0 0.0
  %2331 = vmatpush1.msra.mxu0 0.0
  %2332 = vmatprep.subr.mxu0 0.0
  %2333 = vmatpush1.msra.mxu0 0.0
  %2334 = vmatprep.subr.mxu0 0.0
  %2335 = vmatpush1.msra.mxu0 0.0
  %2336 = vmatprep.subr.mxu0 0.0
  %2337 = vmatpush1.msra.mxu0 0.0
  %2338 = vmatprep.subr.mxu0 0.0
  %2339 = vmatpush1.msra.mxu0 0.0
  %2340 = vmatprep.subr.mxu0 0.0
  %2341 = vmatpush1.msra.mxu0 0.0
  %2342 = vmatprep.subr.mxu0 0.0
  %2343 = vmatpush1.msra.mxu0 0.0
  %2344 = vmatprep.subr.mxu0 0.0
  %2345 = vmatpush1.msra.mxu0 0.0
  %2346 = vmatprep.subr.mxu0 0.0
  %2347 = vmatpush1.msra.mxu0 0.0
  %2348 = vmatprep.subr.mxu0 0.0
  %2349 = vmatpush1.msra.mxu0 0.0
  %2350 = vmatprep.subr.mxu0 0.0
  %2351 = vmatpush1.msra.mxu0 0.0
  %2352 = vmatprep.subr.mxu0 0.0
  %2353 = vmatpush1.msra.mxu0 0.0
  %2354 = vmatprep.subr.mxu0 0.0
  %2355 = vmatpush1.msra.mxu0 0.0
  %2356 = vmatprep.subr.mxu0 0.0
  %2357 = vmatpush1.msra.mxu0 0.0
  %2358 = vmatprep.subr.mxu0 0.0
  %2359 = vmatpush1.msra.mxu0 0.0
  %2360 = vmatprep.subr.mxu0 0.0
  %2361 = vmatpush1.msra.mxu0 0.0
  %2362 = vmatprep.subr.mxu0 0.0
  %2363 = vmatpush1.msra.mxu0 0.0
  %2364 = vmatprep.subr.mxu0 0.0
  %2365 = vmatpush1.msra.mxu0 0.0
  %2366 = vmatprep.subr.mxu0 0.0
  %2367 = vmatpush1.msra.mxu0 0.0
  %2368 = vmatprep.subr.mxu0 0.0
  %2369 = vmatpush1.msra.mxu0 0.0
  %2370 = vmatprep.subr.mxu0 0.0
  %2371 = vmatpush1.msra.mxu0 0.0
  %2372 = vmatprep.subr.mxu0 0.0
  %2373 = vmatpush1.msra.mxu0 0.0
  %2374 = vmatprep.subr.mxu0 0.0
  %2375 = vmatpush1.msra.mxu0 0.0
  %2376 = vmatprep.subr.mxu0 0.0
  %2377 = vmatpush1.msra.mxu0 0.0
  %2378 = vmatprep.subr.mxu0 0.0
  %2379 = vmatpush1.msra.mxu0 0.0
  %2380 = vmatprep.mubr.f32.mxu0 0.0
  %2381 = vmatmul.mubr.f32.gmra.mrb[0].mxu0 %v2071
  %v2382 = vpop.f32.mrb[0].mxu0
  %v2383 = vadd.f32 0.0, %v2382
  %v2384 = vpop.f32.mrb[0].mxu0
  %2385 = vdwg.mxu0
  %v2386 = vadd.f32 %v2315, %v2383
  %v2387 = vxor.u32 %v2386, 2147483648
  %v2388 = vmul.f32 %v2387, 1.442695
  %v2389 = vpow.pop %v2388
  %v2390 = vadd.f32 %v2389, 1.0
  %v2391 = vrcp.pop %v2390
  %v2392 = vmul.f32 1.0, %v2391
  %2394 = vrot.lane.b32.xlu0 %v2383, 64
  %v2395 = vpop.permute.xlu0 %2394
  %v2397 = vmul.f32 %v2392, %v2395
  %2399 = vrot.lane.b32.xlu0 %v2397, 64
  %v2400 = vpop.permute.xlu0 %2399
  %v2402 = vadd.f32 %v2315, %v2400
  %v2403 = vtanh.pop %v2402
  %v2404 = vsub.f32 1.0, %v2392
  %2406 = vrot.lane.b32.xlu0 %v2403, 96
  %v2407 = vpop.permute.xlu0 %2406
  %v2409 = vmul.f32 %v2404, %v2407
  %v2410 = vmul.f32 %v2392, %v2063
  %v2411 = vadd.f32 %v2409, %v2410
  %2413 = vrot.lane.b32.xlu0 %v2411, 96
  %v2414 = vpop.permute.xlu0 %2413
  %2416 = vrot.lane.b32.xlu0 %v2312, 32
  %v2417 = vpop.permute.xlu0 %2416
  %v2419 = vsel %vm54, %v2414, 0
  %2421 = vmatprep.subr.mxu0 0.0
  %2422 = vmatpush1.msra.mxu0 %v41
  %2423 = vmatprep.subr.mxu0 0.0
  %2424 = vmatpush1.msra.mxu0 %v42
  %2425 = vmatprep.subr.mxu0 0.0
  %2426 = vmatpush1.msra.mxu0 %v43
  %2427 = vmatprep.subr.mxu0 0.0
  %2428 = vmatpush1.msra.mxu0 %v44
  %2429 = vmatprep.subr.mxu0 0.0
  %2430 = vmatpush1.msra.mxu0 0.0
  %2431 = vmatprep.subr.mxu0 0.0
  %2432 = vmatpush1.msra.mxu0 0.0
  %2433 = vmatprep.subr.mxu0 0.0
  %2434 = vmatpush1.msra.mxu0 0.0
  %2435 = vmatprep.subr.mxu0 0.0
  %2436 = vmatpush1.msra.mxu0 0.0
  %2437 = vmatprep.subr.mxu0 0.0
  %2438 = vmatpush1.msra.mxu0 0.0
  %2439 = vmatprep.subr.mxu0 0.0
  %2440 = vmatpush1.msra.mxu0 0.0
  %2441 = vmatprep.subr.mxu0 0.0
  %2442 = vmatpush1.msra.mxu0 0.0
  %2443 = vmatprep.subr.mxu0 0.0
  %2444 = vmatpush1.msra.mxu0 0.0
  %2445 = vmatprep.subr.mxu0 0.0
  %2446 = vmatpush1.msra.mxu0 0.0
  %2447 = vmatprep.subr.mxu0 0.0
  %2448 = vmatpush1.msra.mxu0 0.0
  %2449 = vmatprep.subr.mxu0 0.0
  %2450 = vmatpush1.msra.mxu0 0.0
  %2451 = vmatprep.subr.mxu0 0.0
  %2452 = vmatpush1.msra.mxu0 0.0
  %2453 = vmatprep.subr.mxu0 0.0
  %2454 = vmatpush1.msra.mxu0 0.0
  %2455 = vmatprep.subr.mxu0 0.0
  %2456 = vmatpush1.msra.mxu0 0.0
  %2457 = vmatprep.subr.mxu0 0.0
  %2458 = vmatpush1.msra.mxu0 0.0
  %2459 = vmatprep.subr.mxu0 0.0
  %2460 = vmatpush1.msra.mxu0 0.0
  %2461 = vmatprep.subr.mxu0 0.0
  %2462 = vmatpush1.msra.mxu0 0.0
  %2463 = vmatprep.subr.mxu0 0.0
  %2464 = vmatpush1.msra.mxu0 0.0
  %2465 = vmatprep.subr.mxu0 0.0
  %2466 = vmatpush1.msra.mxu0 0.0
  %2467 = vmatprep.subr.mxu0 0.0
  %2468 = vmatpush1.msra.mxu0 0.0
  %2469 = vmatprep.subr.mxu0 0.0
  %2470 = vmatpush1.msra.mxu0 0.0
  %2471 = vmatprep.subr.mxu0 0.0
  %2472 = vmatpush1.msra.mxu0 0.0
  %2473 = vmatprep.subr.mxu0 0.0
  %2474 = vmatpush1.msra.mxu0 0.0
  %2475 = vmatprep.subr.mxu0 0.0
  %2476 = vmatpush1.msra.mxu0 0.0
  %2477 = vmatprep.subr.mxu0 0.0
  %2478 = vmatpush1.msra.mxu0 0.0
  %2479 = vmatprep.subr.mxu0 0.0
  %2480 = vmatpush1.msra.mxu0 0.0
  %2481 = vmatprep.subr.mxu0 0.0
  %2482 = vmatpush1.msra.mxu0 0.0
  %2483 = vmatprep.subr.mxu0 0.0
  %2484 = vmatpush1.msra.mxu0 0.0
  %2485 = vmatprep.mubr.f32.mxu0 0.0
  %2486 = vmatmul.mubr.f32.gmra.mrb[0].mxu0 %v2419
  %v2487 = vpop.f32.mrb[0].mxu0
  %v2488 = vadd.f32 %v2417, %v2487
  %v2489 = vpop.f32.mrb[0].mxu0
  %2490 = vdwg.mxu0
  %v2491 = vadd.f32 %v2488, %v396
  %v2492 = vtanh.pop %v2491
  %v2494 = vsel %vm54, %v2492, 0
  %2496 = vmatprep.subr.mxu0 0.0
  %2497 = vmatpush1.msra.mxu0 %v45
  %2498 = vmatprep.subr.mxu0 0.0
  %2499 = vmatpush1.msra.mxu0 %v46
  %2500 = vmatprep.subr.mxu0 0.0
  %2501 = vmatpush1.msra.mxu0 %v47
  %2502 = vmatprep.subr.mxu0 0.0
  %2503 = vmatpush1.msra.mxu0 %v48
  %2504 = vmatprep.subr.mxu0 0.0
  %2505 = vmatpush1.msra.mxu0 0.0
  %2506 = vmatprep.subr.mxu0 0.0
  %2507 = vmatpush1.msra.mxu0 0.0
  %2508 = vmatprep.subr.mxu0 0.0
  %2509 = vmatpush1.msra.mxu0 0.0
  %2510 = vmatprep.subr.mxu0 0.0
  %2511 = vmatpush1.msra.mxu0 0.0
  %2512 = vmatprep.subr.mxu0 0.0
  %2513 = vmatpush1.msra.mxu0 0.0
  %2514 = vmatprep.subr.mxu0 0.0
  %2515 = vmatpush1.msra.mxu0 0.0
  %2516 = vmatprep.subr.mxu0 0.0
  %2517 = vmatpush1.msra.mxu0 0.0
  %2518 = vmatprep.subr.mxu0 0.0
  %2519 = vmatpush1.msra.mxu0 0.0
  %2520 = vmatprep.subr.mxu0 0.0
  %2521 = vmatpush1.msra.mxu0 0.0
  %2522 = vmatprep.subr.mxu0 0.0
  %2523 = vmatpush1.msra.mxu0 0.0
  %2524 = vmatprep.subr.mxu0 0.0
  %2525 = vmatpush1.msra.mxu0 0.0
  %2526 = vmatprep.subr.mxu0 0.0
  %2527 = vmatpush1.msra.mxu0 0.0
  %2528 = vmatprep.subr.mxu0 0.0
  %2529 = vmatpush1.msra.mxu0 0.0
  %2530 = vmatprep.subr.mxu0 0.0
  %2531 = vmatpush1.msra.mxu0 0.0
  %2532 = vmatprep.subr.mxu0 0.0
  %2533 = vmatpush1.msra.mxu0 0.0
  %2534 = vmatprep.subr.mxu0 0.0
  %2535 = vmatpush1.msra.mxu0 0.0
  %2536 = vmatprep.subr.mxu0 0.0
  %2537 = vmatpush1.msra.mxu0 0.0
  %2538 = vmatprep.subr.mxu0 0.0
  %2539 = vmatpush1.msra.mxu0 0.0
  %2540 = vmatprep.subr.mxu0 0.0
  %2541 = vmatpush1.msra.mxu0 0.0
  %2542 = vmatprep.subr.mxu0 0.0
  %2543 = vmatpush1.msra.mxu0 0.0
  %2544 = vmatprep.subr.mxu0 0.0
  %2545 = vmatpush1.msra.mxu0 0.0
  %2546 = vmatprep.subr.mxu0 0.0
  %2547 = vmatpush1.msra.mxu0 0.0
  %2548 = vmatprep.subr.mxu0 0.0
  %2549 = vmatpush1.msra.mxu0 0.0
  %2550 = vmatprep.subr.mxu0 0.0
  %2551 = vmatpush1.msra.mxu0 0.0
  %2552 = vmatprep.subr.mxu0 0.0
  %2553 = vmatpush1.msra.mxu0 0.0
  %2554 = vmatprep.subr.mxu0 0.0
  %2555 = vmatpush1.msra.mxu0 0.0
  %2556 = vmatprep.subr.mxu0 0.0
  %2557 = vmatpush1.msra.mxu0 0.0
  %2558 = vmatprep.subr.mxu0 0.0
  %2559 = vmatpush1.msra.mxu0 0.0
  %2560 = vmatprep.mubr.f32.mxu0 0.0
  %2561 = vmatmul.mubr.f32.gmra.mrb[0].mxu0 %v2494
  %v2562 = vpop.f32.mrb[0].mxu0
  %v2563 = vadd.f32 %v404, %v2562
  %v2564 = vpop.f32.mrb[0].mxu0
  %2565 = vdwg.mxu0
  %s2566 = scalar_lea.vmem %s9, 48
  %2567 = vst.msk [vmem:[%s2566] sm:$0xff] %vm141, %v2563
  %v2568 = vsel %vm141, %v2563, -inf
  %2569 = vmax.xlane.f32.xlu0 %v2568
  %v2570 = vpop.xlane.xlu0 %2569
  %vm2571 = vcmp.ge.f32.partialorder %v2563, %v2570
  %v2572 = vsel %vm2571, %v139, 16
  %v2573 = vsel %vm141, %v2572, 2147483647
  %v2574 = vand.u32 %v2573, 65535
  %v2575 = vshra.s32 %v2573, 16
  %v2576 = vcvt.s32.f32 %v2574
  %v2577 = vcvt.s32.f32 %v2575
  %2578 = vmin.xlane.f32.xlu0 %v2577
  %v2579 = vpop.xlane.xlu0 %2578
  %vm2580 = vcmp.eq.f32.partialorder %v2577, %v2579
  %v2581 = vsel %vm2580, %v2576, inf
  %2582 = vmin.xlane.f32.xlu0 %v2581
  %v2583 = vpop.xlane.xlu0 %2582
  %v2584 = vcvt.f32.s32 %v2583
  %v2585 = vcvt.f32.s32 %v2579
  %v2586 = vshll.u32 %v2585, 16
  %v2587 = vadd.s32 %v2586, %v2584
  %s2588 = scalar_lea.vmem %s0, 56
  %v2589 = vld [vmem:[%s2588] sm:$0xff]
  %v2591 = vsel %vm141, %v2589, 0
  %2593 = vmatprep.subr.mxu0 0.0
  %2594 = vmatpush1.msra.mxu0 %v35
  %2595 = vmatprep.subr.mxu0 0.0
  %2596 = vmatpush1.msra.mxu0 %v36
  %2597 = vmatprep.subr.mxu0 0.0
  %2598 = vmatpush1.msra.mxu0 0.0
  %2599 = vmatprep.subr.mxu0 0.0
  %2600 = vmatpush1.msra.mxu0 0.0
  %2601 = vmatprep.subr.mxu0 0.0
  %2602 = vmatpush1.msra.mxu0 0.0
  %2603 = vmatprep.subr.mxu0 0.0
  %2604 = vmatpush1.msra.mxu0 0.0
  %2605 = vmatprep.subr.mxu0 0.0
  %2606 = vmatpush1.msra.mxu0 0.0
  %2607 = vmatprep.subr.mxu0 0.0
  %2608 = vmatpush1.msra.mxu0 0.0
  %2609 = vmatprep.subr.mxu0 0.0
  %2610 = vmatpush1.msra.mxu0 0.0
  %2611 = vmatprep.subr.mxu0 0.0
  %2612 = vmatpush1.msra.mxu0 0.0
  %2613 = vmatprep.subr.mxu0 0.0
  %2614 = vmatpush1.msra.mxu0 0.0
  %2615 = vmatprep.subr.mxu0 0.0
  %2616 = vmatpush1.msra.mxu0 0.0
  %2617 = vmatprep.subr.mxu0 0.0
  %2618 = vmatpush1.msra.mxu0 0.0
  %2619 = vmatprep.subr.mxu0 0.0
  %2620 = vmatpush1.msra.mxu0 0.0
  %2621 = vmatprep.subr.mxu0 0.0
  %2622 = vmatpush1.msra.mxu0 0.0
  %2623 = vmatprep.subr.mxu0 0.0
  %2624 = vmatpush1.msra.mxu0 0.0
  %2625 = vmatprep.subr.mxu0 0.0
  %2626 = vmatpush1.msra.mxu0 0.0
  %2627 = vmatprep.subr.mxu0 0.0
  %2628 = vmatpush1.msra.mxu0 0.0
  %2629 = vmatprep.subr.mxu0 0.0
  %2630 = vmatpush1.msra.mxu0 0.0
  %2631 = vmatprep.subr.mxu0 0.0
  %2632 = vmatpush1.msra.mxu0 0.0
  %2633 = vmatprep.subr.mxu0 0.0
  %2634 = vmatpush1.msra.mxu0 0.0
  %2635 = vmatprep.subr.mxu0 0.0
  %2636 = vmatpush1.msra.mxu0 0.0
  %2637 = vmatprep.subr.mxu0 0.0
  %2638 = vmatpush1.msra.mxu0 0.0
  %2639 = vmatprep.subr.mxu0 0.0
  %2640 = vmatpush1.msra.mxu0 0.0
  %2641 = vmatprep.subr.mxu0 0.0
  %2642 = vmatpush1.msra.mxu0 0.0
  %2643 = vmatprep.subr.mxu0 0.0
  %2644 = vmatpush1.msra.mxu0 0.0
  %2645 = vmatprep.subr.mxu0 0.0
  %2646 = vmatpush1.msra.mxu0 0.0
  %2647 = vmatprep.subr.mxu0 0.0
  %2648 = vmatpush1.msra.mxu0 0.0
  %2649 = vmatprep.subr.mxu0 0.0
  %2650 = vmatpush1.msra.mxu0 0.0
  %2651 = vmatprep.subr.mxu0 0.0
  %2652 = vmatpush1.msra.mxu0 0.0
  %2653 = vmatprep.subr.mxu0 0.0
  %2654 = vmatpush1.msra.mxu0 0.0
  %2655 = vmatprep.subr.mxu0 0.0
  %2656 = vmatpush1.msra.mxu0 0.0
  %2657 = vmatprep.mubr.f32.mxu0 0.0
  %2658 = vmatmul.mubr.f32.gmra.mrb[0].mxu0 %v2591
  %v2659 = vpop.f32.mrb[0].mxu0
  %v2660 = vadd.f32 0.0, %v2659
  %v2661 = vpop.f32.mrb[0].mxu0
  %2662 = vdwg.mxu0
  %v2663 = vadd.f32 %v2660, %v125
  %2664 = vmatprep.subr.mxu0 0.0
  %2665 = vmatpush1.msra.mxu0 %v37
  %2666 = vmatprep.subr.mxu0 0.0
  %2667 = vmatpush1.msra.mxu0 %v38
  %2668 = vmatprep.subr.mxu0 0.0
  %2669 = vmatpush1.msra.mxu0 %v39
  %2670 = vmatprep.subr.mxu0 0.0
  %2671 = vmatpush1.msra.mxu0 %v40
  %2672 = vmatprep.subr.mxu0 0.0
  %2673 = vmatpush1.msra.mxu0 0.0
  %2674 = vmatprep.subr.mxu0 0.0
  %2675 = vmatpush1.msra.mxu0 0.0
  %2676 = vmatprep.subr.mxu0 0.0
  %2677 = vmatpush1.msra.mxu0 0.0
  %2678 = vmatprep.subr.mxu0 0.0
  %2679 = vmatpush1.msra.mxu0 0.0
  %2680 = vmatprep.subr.mxu0 0.0
  %2681 = vmatpush1.msra.mxu0 0.0
  %2682 = vmatprep.subr.mxu0 0.0
  %2683 = vmatpush1.msra.mxu0 0.0
  %2684 = vmatprep.subr.mxu0 0.0
  %2685 = vmatpush1.msra.mxu0 0.0
  %2686 = vmatprep.subr.mxu0 0.0
  %2687 = vmatpush1.msra.mxu0 0.0
  %2688 = vmatprep.subr.mxu0 0.0
  %2689 = vmatpush1.msra.mxu0 0.0
  %2690 = vmatprep.subr.mxu0 0.0
  %2691 = vmatpush1.msra.mxu0 0.0
  %2692 = vmatprep.subr.mxu0 0.0
  %2693 = vmatpush1.msra.mxu0 0.0
  %2694 = vmatprep.subr.mxu0 0.0
  %2695 = vmatpush1.msra.mxu0 0.0
  %2696 = vmatprep.subr.mxu0 0.0
  %2697 = vmatpush1.msra.mxu0 0.0
  %2698 = vmatprep.subr.mxu0 0.0
  %2699 = vmatpush1.msra.mxu0 0.0
  %2700 = vmatprep.subr.mxu0 0.0
  %2701 = vmatpush1.msra.mxu0 0.0
  %2702 = vmatprep.subr.mxu0 0.0
  %2703 = vmatpush1.msra.mxu0 0.0
  %2704 = vmatprep.subr.mxu0 0.0
  %2705 = vmatpush1.msra.mxu0 0.0
  %2706 = vmatprep.subr.mxu0 0.0
  %2707 = vmatpush1.msra.mxu0 0.0
  %2708 = vmatprep.subr.mxu0 0.0
  %2709 = vmatpush1.msra.mxu0 0.0
  %2710 = vmatprep.subr.mxu0 0.0
  %2711 = vmatpush1.msra.mxu0 0.0
  %2712 = vmatprep.subr.mxu0 0.0
  %2713 = vmatpush1.msra.mxu0 0.0
  %2714 = vmatprep.subr.mxu0 0.0
  %2715 = vmatpush1.msra.mxu0 0.0
  %2716 = vmatprep.subr.mxu0 0.0
  %2717 = vmatpush1.msra.mxu0 0.0
  %2718 = vmatprep.subr.mxu0 0.0
  %2719 = vmatpush1.msra.mxu0 0.0
  %2720 = vmatprep.subr.mxu0 0.0
  %2721 = vmatpush1.msra.mxu0 0.0
  %2722 = vmatprep.subr.mxu0 0.0
  %2723 = vmatpush1.msra.mxu0 0.0
  %2724 = vmatprep.subr.mxu0 0.0
  %2725 = vmatpush1.msra.mxu0 0.0
  %2726 = vmatprep.subr.mxu0 0.0
  %2727 = vmatpush1.msra.mxu0 0.0
  %2728 = vmatprep.mubr.f32.mxu0 0.0
  %2729 = vmatmul.mubr.f32.gmra.mrb[0].mxu0 %v2419
  %v2730 = vpop.f32.mrb[0].mxu0
  %v2731 = vadd.f32 0.0, %v2730
  %v2732 = vpop.f32.mrb[0].mxu0
  %2733 = vdwg.mxu0
  %v2734 = vadd.f32 %v2663, %v2731
  %v2735 = vxor.u32 %v2734, 2147483648
  %v2736 = vmul.f32 %v2735, 1.442695
  %v2737 = vpow.pop %v2736
  %v2738 = vadd.f32 %v2737, 1.0
  %v2739 = vrcp.pop %v2738
  %v2740 = vmul.f32 1.0, %v2739
  %2742 = vrot.lane.b32.xlu0 %v2731, 64
  %v2743 = vpop.permute.xlu0 %2742
  %v2745 = vmul.f32 %v2740, %v2743
  %2747 = vrot.lane.b32.xlu0 %v2745, 64
  %v2748 = vpop.permute.xlu0 %2747
  %v2750 = vadd.f32 %v2663, %v2748
  %v2751 = vtanh.pop %v2750
  %v2752 = vsub.f32 1.0, %v2740
  %2754 = vrot.lane.b32.xlu0 %v2751, 96
  %v2755 = vpop.permute.xlu0 %2754
  %v2757 = vmul.f32 %v2752, %v2755
  %v2758 = vmul.f32 %v2740, %v2411
  %v2759 = vadd.f32 %v2757, %v2758
  %2761 = vrot.lane.b32.xlu0 %v2759, 96
  %v2762 = vpop.permute.xlu0 %2761
  %2764 = vrot.lane.b32.xlu0 %v2660, 32
  %v2765 = vpop.permute.xlu0 %2764
  %v2767 = vsel %vm54, %v2762, 0
  %2769 = vmatprep.subr.mxu0 0.0
  %2770 = vmatpush1.msra.mxu0 %v41
  %2771 = vmatprep.subr.mxu0 0.0
  %2772 = vmatpush1.msra.mxu0 %v42
  %2773 = vmatprep.subr.mxu0 0.0
  %2774 = vmatpush1.msra.mxu0 %v43
  %2775 = vmatprep.subr.mxu0 0.0
  %2776 = vmatpush1.msra.mxu0 %v44
  %2777 = vmatprep.subr.mxu0 0.0
  %2778 = vmatpush1.msra.mxu0 0.0
  %2779 = vmatprep.subr.mxu0 0.0
  %2780 = vmatpush1.msra.mxu0 0.0
  %2781 = vmatprep.subr.mxu0 0.0
  %2782 = vmatpush1.msra.mxu0 0.0
  %2783 = vmatprep.subr.mxu0 0.0
  %2784 = vmatpush1.msra.mxu0 0.0
  %2785 = vmatprep.subr.mxu0 0.0
  %2786 = vmatpush1.msra.mxu0 0.0
  %2787 = vmatprep.subr.mxu0 0.0
  %2788 = vmatpush1.msra.mxu0 0.0
  %2789 = vmatprep.subr.mxu0 0.0
  %2790 = vmatpush1.msra.mxu0 0.0
  %2791 = vmatprep.subr.mxu0 0.0
  %2792 = vmatpush1.msra.mxu0 0.0
  %2793 = vmatprep.subr.mxu0 0.0
  %2794 = vmatpush1.msra.mxu0 0.0
  %2795 = vmatprep.subr.mxu0 0.0
  %2796 = vmatpush1.msra.mxu0 0.0
  %2797 = vmatprep.subr.mxu0 0.0
  %2798 = vmatpush1.msra.mxu0 0.0
  %2799 = vmatprep.subr.mxu0 0.0
  %2800 = vmatpush1.msra.mxu0 0.0
  %2801 = vmatprep.subr.mxu0 0.0
  %2802 = vmatpush1.msra.mxu0 0.0
  %2803 = vmatprep.subr.mxu0 0.0
  %2804 = vmatpush1.msra.mxu0 0.0
  %2805 = vmatprep.subr.mxu0 0.0
  %2806 = vmatpush1.msra.mxu0 0.0
  %2807 = vmatprep.subr.mxu0 0.0
  %2808 = vmatpush1.msra.mxu0 0.0
  %2809 = vmatprep.subr.mxu0 0.0
  %2810 = vmatpush1.msra.mxu0 0.0
  %2811 = vmatprep.subr.mxu0 0.0
  %2812 = vmatpush1.msra.mxu0 0.0
  %2813 = vmatprep.subr.mxu0 0.0
  %2814 = vmatpush1.msra.mxu0 0.0
  %2815 = vmatprep.subr.mxu0 0.0
  %2816 = vmatpush1.msra.mxu0 0.0
  %2817 = vmatprep.subr.mxu0 0.0
  %2818 = vmatpush1.msra.mxu0 0.0
  %2819 = vmatprep.subr.mxu0 0.0
  %2820 = vmatpush1.msra.mxu0 0.0
  %2821 = vmatprep.subr.mxu0 0.0
  %2822 = vmatpush1.msra.mxu0 0.0
  %2823 = vmatprep.subr.mxu0 0.0
  %2824 = vmatpush1.msra.mxu0 0.0
  %2825 = vmatprep.subr.mxu0 0.0
  %2826 = vmatpush1.msra.mxu0 0.0
  %2827 = vmatprep.subr.mxu0 0.0
  %2828 = vmatpush1.msra.mxu0 0.0
  %2829 = vmatprep.subr.mxu0 0.0
  %2830 = vmatpush1.msra.mxu0 0.0
  %2831 = vmatprep.subr.mxu0 0.0
  %2832 = vmatpush1.msra.mxu0 0.0
  %2833 = vmatprep.mubr.f32.mxu0 0.0
  %2834 = vmatmul.mubr.f32.gmra.mrb[0].mxu0 %v2767
  %v2835 = vpop.f32.mrb[0].mxu0
  %v2836 = vadd.f32 %v2765, %v2835
  %v2837 = vpop.f32.mrb[0].mxu0
  %2838 = vdwg.mxu0
  %v2839 = vadd.f32 %v2836, %v396
  %v2840 = vtanh.pop %v2839
  %v2842 = vsel %vm54, %v2840, 0
  %2844 = vmatprep.subr.mxu0 0.0
  %2845 = vmatpush1.msra.mxu0 %v45
  %2846 = vmatprep.subr.mxu0 0.0
  %2847 = vmatpush1.msra.mxu0 %v46
  %2848 = vmatprep.subr.mxu0 0.0
  %2849 = vmatpush1.msra.mxu0 %v47
  %2850 = vmatprep.subr.mxu0 0.0
  %2851 = vmatpush1.msra.mxu0 %v48
  %2852 = vmatprep.subr.mxu0 0.0
  %2853 = vmatpush1.msra.mxu0 0.0
  %2854 = vmatprep.subr.mxu0 0.0
  %2855 = vmatpush1.msra.mxu0 0.0
  %2856 = vmatprep.subr.mxu0 0.0
  %2857 = vmatpush1.msra.mxu0 0.0
  %2858 = vmatprep.subr.mxu0 0.0
  %2859 = vmatpush1.msra.mxu0 0.0
  %2860 = vmatprep.subr.mxu0 0.0
  %2861 = vmatpush1.msra.mxu0 0.0
  %2862 = vmatprep.subr.mxu0 0.0
  %2863 = vmatpush1.msra.mxu0 0.0
  %2864 = vmatprep.subr.mxu0 0.0
  %2865 = vmatpush1.msra.mxu0 0.0
  %2866 = vmatprep.subr.mxu0 0.0
  %2867 = vmatpush1.msra.mxu0 0.0
  %2868 = vmatprep.subr.mxu0 0.0
  %2869 = vmatpush1.msra.mxu0 0.0
  %2870 = vmatprep.subr.mxu0 0.0
  %2871 = vmatpush1.msra.mxu0 0.0
  %2872 = vmatprep.subr.mxu0 0.0
  %2873 = vmatpush1.msra.mxu0 0.0
  %2874 = vmatprep.subr.mxu0 0.0
  %2875 = vmatpush1.msra.mxu0 0.0
  %2876 = vmatprep.subr.mxu0 0.0
  %2877 = vmatpush1.msra.mxu0 0.0
  %2878 = vmatprep.subr.mxu0 0.0
  %2879 = vmatpush1.msra.mxu0 0.0
  %2880 = vmatprep.subr.mxu0 0.0
  %2881 = vmatpush1.msra.mxu0 0.0
  %2882 = vmatprep.subr.mxu0 0.0
  %2883 = vmatpush1.msra.mxu0 0.0
  %2884 = vmatprep.subr.mxu0 0.0
  %2885 = vmatpush1.msra.mxu0 0.0
  %2886 = vmatprep.subr.mxu0 0.0
  %2887 = vmatpush1.msra.mxu0 0.0
  %2888 = vmatprep.subr.mxu0 0.0
  %2889 = vmatpush1.msra.mxu0 0.0
  %2890 = vmatprep.subr.mxu0 0.0
  %2891 = vmatpush1.msra.mxu0 0.0
  %2892 = vmatprep.subr.mxu0 0.0
  %2893 = vmatpush1.msra.mxu0 0.0
  %2894 = vmatprep.subr.mxu0 0.0
  %2895 = vmatpush1.msra.mxu0 0.0
  %2896 = vmatprep.subr.mxu0 0.0
  %2897 = vmatpush1.msra.mxu0 0.0
  %2898 = vmatprep.subr.mxu0 0.0
  %2899 = vmatpush1.msra.mxu0 0.0
  %2900 = vmatprep.subr.mxu0 0.0
  %2901 = vmatpush1.msra.mxu0 0.0
  %2902 = vmatprep.subr.mxu0 0.0
  %2903 = vmatpush1.msra.mxu0 0.0
  %2904 = vmatprep.subr.mxu0 0.0
  %2905 = vmatpush1.msra.mxu0 0.0
  %2906 = vmatprep.subr.mxu0 0.0
  %2907 = vmatpush1.msra.mxu0 0.0
  %2908 = vmatprep.mubr.f32.mxu0 0.0
  %2909 = vmatmul.mubr.f32.gmra.mrb[0].mxu0 %v2842
  %v2910 = vpop.f32.mrb[0].mxu0
  %v2911 = vadd.f32 %v404, %v2910
  %v2912 = vpop.f32.mrb[0].mxu0
  %2913 = vdwg.mxu0
  %s2914 = scalar_lea.vmem %s9, 56
  %2915 = vst.msk [vmem:[%s2914] sm:$0xff] %vm141, %v2911
  %v2916 = vsel %vm141, %v2911, -inf
  %2917 = vmax.xlane.f32.xlu0 %v2916
  %v2918 = vpop.xlane.xlu0 %2917
  %vm2919 = vcmp.ge.f32.partialorder %v2911, %v2918
  %v2920 = vsel %vm2919, %v139, 16
  %v2921 = vsel %vm141, %v2920, 2147483647
  %v2922 = vand.u32 %v2921, 65535
  %v2923 = vshra.s32 %v2921, 16
  %v2924 = vcvt.s32.f32 %v2922
  %v2925 = vcvt.s32.f32 %v2923
  %2926 = vmin.xlane.f32.xlu0 %v2925
  %v2927 = vpop.xlane.xlu0 %2926
  %vm2928 = vcmp.eq.f32.partialorder %v2925, %v2927
  %v2929 = vsel %vm2928, %v2924, inf
  %2930 = vmin.xlane.f32.xlu0 %v2929
  %v2931 = vpop.xlane.xlu0 %2930
  %v2932 = vcvt.f32.s32 %v2931
  %v2933 = vcvt.f32.s32 %v2927
  %v2934 = vshll.u32 %v2933, 16
  %v2935 = vadd.s32 %v2934, %v2932
  %vm2936 = vcmask 7168
  %v2937 = vsel %vm2936, %v499, %v847
  %vm2938 = vcmask 15360
  %v2939 = vsel %vm2938, %v2937, %v1195
  %vm2940 = vcmask 23552
  %v2941 = vsel %vm2940, %v2939, %v1543
  %vm2942 = vcmask 31744
  %v2943 = vsel %vm2942, %v2941, %v1891
  %vm2944 = vcmask 39936
  %v2945 = vsel %vm2944, %v2943, %v2239
  %vm2946 = vcmask 48128
  %v2947 = vsel %vm2946, %v2945, %v2587
  %vm2948 = vcmask 56320
  %v2949 = vsel %vm2948, %v2947, %v2935
  %vm2950 = vcmask 64512
  %2951 = vst.msk [vmem:[%s10] sm:$0xff] %vm2950, %v2949
  // Predicated region
  $region38: #{decoder_forward.1} parent=0 // pred_check
    _
  $region39: #{decoder_forward.1} parent=0 // pred_check_branch
    %2953 = sbr.rel (0) target = $region41
  $region40: #{decoder_forward.1} parent=0 // pred_region
    _
  $region41: #{decoder_forward.1} parent=0 // pred_fallthru
    _
  // Predicated region
  $region42: #{decoder_forward.1} parent=0 // pred_check
    _
  $region43: #{decoder_forward.1} parent=0 // pred_check_branch
    %2955 = sbr.rel (0) target = $region45
  $region44: #{decoder_forward.1} parent=0 // pred_region
    _
  $region45: #{decoder_forward.1} parent=0 // pred_fallthru
    _
  // Predicated region
  $region46: #{decoder_forward.1} parent=0 // pred_check
    _
  $region47: #{decoder_forward.1} parent=0 // pred_check_branch
    %2957 = sbr.rel (0) target = $region49
  $region48: #{decoder_forward.1} parent=0 // pred_region
    _
  $region49: #{decoder_forward.1} parent=0 // pred_fallthru
    _
  // Predicated region
  $region50: #{decoder_forward.1} parent=0 // pred_check
    _
  $region51: #{decoder_forward.1} parent=0 // pred_check_branch
    %2959 = sbr.rel (0) target = $region53
  $region52: #{decoder_forward.1} parent=0 // pred_region
    _
  $region53: #{decoder_forward.1} parent=0 // pred_fallthru
    _

</llo_original>
